<compile_context>
chip_gen: v7x
topology: tpu7x:2x2x1
jax: 0.10.0
libtpu: 0.0.40
codegen_flags: <defaults>
</compile_context>

<pallas_src>
import functools
import math

import jax
import jax.numpy as jnp
from jax.experimental import pallas as pl
from jax.experimental.pallas import tpu as pltpu  # noqa: F401  (TPU backend)


# ---------------------------------------------------------------------------
# Kernel
# ---------------------------------------------------------------------------

def _layernorm(z, g, b, eps):
    # z: (N, E) f32, g/b: (1, E)
    mean = jnp.mean(z, axis=-1, keepdims=True)
    var = jnp.mean(jnp.square(z - mean), axis=-1, keepdims=True)
    return (z - mean) * jax.lax.rsqrt(var + eps) * g + b


def _gpt_kernel(
    x_ref,                       # (B*S, In)
    we_ref, be_ref,              # (In, E), (1, E)
    wqkv_ref, bqkv_ref,          # (L, E, 3E), (L, 1, 3E)
    wo_ref, bo_ref,              # (L, E, E), (L, 1, E)
    g1_ref, bln1_ref,            # (L, 1, E), (L, 1, E)
    w1_ref, bm1_ref,             # (L, E, M), (L, 1, M)
    w2_ref, bm2_ref,             # (L, M, E), (L, 1, E)
    g2_ref, bln2_ref,            # (L, 1, E), (L, 1, E)
    wh_ref, bh_ref,              # (E, Out), (1, Out)
    o_ref,                       # (B*S, Out)
    *, num_layers, nheads, batch, seq, eps,
):
    BS = batch * seq
    x = x_ref[...].astype(jnp.float32)                                    # (BS, In)

    # --- embed -----------------------------------------------------------
    z = jnp.dot(x, we_ref[...], preferred_element_type=jnp.float32) + be_ref[...]
    E = z.shape[-1]
    D = E // nheads
    scale = 1.0 / math.sqrt(D)

    # --- transformer blocks (unrolled over layers) -------------------------
    for l in range(num_layers):
        # Fused QKV projection, lane-dense (E, 3E).
        qkv = jnp.dot(z, wqkv_ref[l], preferred_element_type=jnp.float32) + bqkv_ref[l]
        wo = wo_ref[l]                                                     # (E, E)

        # Multi-head attention, batched over B; output projection folded
        # into the head accumulation (no concat).
        y = jnp.zeros((BS, E), jnp.float32)
        for h in range(nheads):                                            # tiny H, unrolled
            lo = h * D
            q = qkv[:, lo:lo + D].reshape(batch, seq, D) * scale           # (B,S,D)
            k = qkv[:, E + lo:E + lo + D].reshape(batch, seq, D)
            v = qkv[:, 2 * E + lo:2 * E + lo + D].reshape(batch, seq, D)
            s = jnp.einsum('bqd,bkd->bqk', q, k,
                           preferred_element_type=jnp.float32)             # (B,S,S)
            m = jnp.max(s, axis=-1, keepdims=True)
            p = jnp.exp(s - m)
            p = p / jnp.sum(p, axis=-1, keepdims=True)
            a = jnp.einsum('bqk,bkd->bqd', p, v,
                           preferred_element_type=jnp.float32)             # (B,S,D)
            y = y + jnp.dot(a.reshape(BS, D), wo[lo:lo + D, :],
                            preferred_element_type=jnp.float32)
        attn = y + bo_ref[l]

        # residual + LN1
        z = _layernorm(z + attn, g1_ref[l], bln1_ref[l], eps)

        # MLP: Linear -> ReLU -> Linear
        h1 = jnp.dot(z, w1_ref[l], preferred_element_type=jnp.float32) + bm1_ref[l]
        h1 = jnp.maximum(h1, 0.0)
        mlp = jnp.dot(h1, w2_ref[l], preferred_element_type=jnp.float32) + bm2_ref[l]

        # residual + LN2
        z = _layernorm(z + mlp, g2_ref[l], bln2_ref[l], eps)

    # --- head --------------------------------------------------------------
    out = jnp.dot(z, wh_ref[...], preferred_element_type=jnp.float32) + bh_ref[...]
    o_ref[...] = out.astype(o_ref.dtype)


# ---------------------------------------------------------------------------
# Wrapper
# ---------------------------------------------------------------------------

def prepare_params(params):
    """One-time packing of per-layer weights into stacked, lane-dense layouts."""
    blocks = params["blocks"]
    row = lambda v: v.reshape(1, -1)
    return {
        "embed_w": params["embed"]["w"],
        "embed_b": row(params["embed"]["b"]),
        "wqkv": jnp.stack([jnp.concatenate(
            [b["wq"]["w"], b["wk"]["w"], b["wv"]["w"]], axis=1) for b in blocks]),
        "bqkv": jnp.stack([row(jnp.concatenate(
            [b["wq"]["b"], b["wk"]["b"], b["wv"]["b"]])) for b in blocks]),
        "wo": jnp.stack([b["wo"]["w"] for b in blocks]),
        "bo": jnp.stack([row(b["wo"]["b"]) for b in blocks]),
        "ln1_g": jnp.stack([row(b["ln1"]["g"]) for b in blocks]),
        "ln1_b": jnp.stack([row(b["ln1"]["b"]) for b in blocks]),
        "w1": jnp.stack([b["mlp1"]["w"] for b in blocks]),
        "b1": jnp.stack([row(b["mlp1"]["b"]) for b in blocks]),
        "w2": jnp.stack([b["mlp2"]["w"] for b in blocks]),
        "b2": jnp.stack([row(b["mlp2"]["b"]) for b in blocks]),
        "ln2_g": jnp.stack([row(b["ln2"]["g"]) for b in blocks]),
        "ln2_b": jnp.stack([row(b["ln2"]["b"]) for b in blocks]),
        "head_w": params["head"]["w"],
        "head_b": row(params["head"]["b"]),
    }


def gpt_forward(x, pp, nheads):
    # mirrors GPT.forward: unsqueeze(1) for 2-D input, squeeze(1) at the end
    if x.ndim == 2:
        x = x[:, None, :]
    B, S, In = x.shape
    L, E = pp["wqkv"].shape[0], pp["wqkv"].shape[1]
    Out = pp["head_w"].shape[1]

    out = pl.pallas_call(
        functools.partial(_gpt_kernel, num_layers=L, nheads=nheads,
                          batch=B, seq=S, eps=1e-5),
        out_shape=jax.ShapeDtypeStruct((B * S, Out), x.dtype),
        # No grid: whole problem in one invocation, all operands resident in
        # VMEM (total < 100 KiB f32 at these sizes).
        # TODO(synk): for realistic GPT sizes (E>=1024, Mh=4E) this must be
        # tiled over S/Mh with a reduction grid axis and an explicit
        # vmem_limit_bytes (weights no longer fit v7x's 64 MiB VMEM).
    )(
        x.reshape(B * S, In),
        pp["embed_w"], pp["embed_b"],
        pp["wqkv"], pp["bqkv"], pp["wo"], pp["bo"],
        pp["ln1_g"], pp["ln1_b"], pp["w1"], pp["b1"], pp["w2"], pp["b2"],
        pp["ln2_g"], pp["ln2_b"],
        pp["head_w"], pp["head_b"],
    )
    out = out.reshape(B, S, Out)
    if S == 1:  # torch .squeeze(1) semantics
        out = jnp.squeeze(out, axis=1)
    return out


# ---------------------------------------------------------------------------
# Deterministic parameter init (PyTorch nn.Linear default: U(-1/sqrt(fan_in),.))
# ---------------------------------------------------------------------------

def init_linear(key, fan_in, fan_out):
    kw, kb = jax.random.split(key)
    bound = 1.0 / math.sqrt(fan_in)
    return {
        "w": jax.random.uniform(kw, (fan_in, fan_out), jnp.float32, -bound, bound),
        "b": jax.random.uniform(kb, (fan_out,), jnp.float32, -bound, bound),
    }


def init_block(key, E, mlp_hidden):
    ks = jax.random.split(key, 6)
    ln = lambda: {"g": jnp.ones((E,), jnp.float32), "b": jnp.zeros((E,), jnp.float32)}
    return {
        "wq": init_linear(ks[0], E, E),
        "wk": init_linear(ks[1], E, E),
        "wv": init_linear(ks[2], E, E),
        "wo": init_linear(ks[3], E, E),
        "ln1": ln(),
        "ln2": ln(),
        "mlp1": init_linear(ks[4], E, mlp_hidden),
        "mlp2": init_linear(ks[5], mlp_hidden, E),
    }


def init_gpt(key, input_size, embed_size, output_size, mlp_hidden, num_layers):
    ks = jax.random.split(key, num_layers + 2)
    return {
        "embed": init_linear(ks[0], input_size, embed_size),
        "blocks": [init_block(ks[1 + i], embed_size, mlp_hidden) for i in range(num_layers)],
        "head": init_linear(ks[-1], embed_size, output_size),
    }


if __name__ == "__main__":
    # small config: GPT(input_size=16, embed_size=32, output_size=16,
    #                  nheads=4, mlp_hidden_size=64, num_layers=2)
    B, S = 2, 8
    input_size, embed_size, output_size = 16, 32, 16
    nheads, mlp_hidden, num_layers = 4, 64, 2

    key = jax.random.PRNGKey(0)
    kp, kx = jax.random.split(key)
    params = init_gpt(kp, input_size, embed_size, output_size, mlp_hidden, num_layers)
    packed = prepare_params(params)          # one-time weight packing (outside jit)
    x = jax.random.normal(kx, (B, S, input_size), dtype=jnp.float32)

    fwd = jax.jit(gpt_forward, static_argnums=2)
    out = fwd(x, packed, nheads)
    out = jax.block_until_ready(out)
    assert out.shape == (B, S, output_size), out.shape
    assert jnp.all(jnp.isfinite(out))
    print("KERNEL_OK")
</pallas_src>

<mosaic_0001>
module attributes {stable_mosaic.version = 11 : i64} {
  func.func @_gpt_kernel(%arg0: memref<16x16xf32, #tpu.memory_space<vmem>>, %arg1: memref<16x32xf32, #tpu.memory_space<vmem>>, %arg2: memref<1x32xf32, #tpu.memory_space<vmem>>, %arg3: memref<2x32x96xf32, #tpu.memory_space<vmem>>, %arg4: memref<2x1x96xf32, #tpu.memory_space<vmem>>, %arg5: memref<2x32x32xf32, #tpu.memory_space<vmem>>, %arg6: memref<2x1x32xf32, #tpu.memory_space<vmem>>, %arg7: memref<2x1x32xf32, #tpu.memory_space<vmem>>, %arg8: memref<2x1x32xf32, #tpu.memory_space<vmem>>, %arg9: memref<2x32x64xf32, #tpu.memory_space<vmem>>, %arg10: memref<2x1x64xf32, #tpu.memory_space<vmem>>, %arg11: memref<2x64x32xf32, #tpu.memory_space<vmem>>, %arg12: memref<2x1x32xf32, #tpu.memory_space<vmem>>, %arg13: memref<2x1x32xf32, #tpu.memory_space<vmem>>, %arg14: memref<2x1x32xf32, #tpu.memory_space<vmem>>, %arg15: memref<32x16xf32, #tpu.memory_space<vmem>>, %arg16: memref<1x16xf32, #tpu.memory_space<vmem>>, %arg17: memref<16x16xf32, #tpu.memory_space<vmem>>) attributes {dimension_semantics = [], scalar_prefetch = 0 : i64, scratch_operands = 0 : i64, tpu.core_type = #tpu.core_type<tc>} {
    %c0 = arith.constant 0 : index
    %c0_0 = arith.constant 0 : index
    %0 = vector.load %arg0[%c0, %c0_0] : memref<16x16xf32, #tpu.memory_space<vmem>>, vector<16x16xf32>
    %c0_1 = arith.constant 0 : index
    %c0_2 = arith.constant 0 : index
    %1 = vector.load %arg1[%c0_1, %c0_2] : memref<16x32xf32, #tpu.memory_space<vmem>>, vector<16x32xf32>
    %cst = arith.constant dense<0.000000e+00> : vector<16x32xf32>
    %2 = tpu.matmul %0, %1, %cst {dimension_numbers = #tpu.dot_dimension_numbers<[1], [0], [0], [1], [0, 0, 1, 1], [], []>} : vector<16x16xf32>, vector<16x32xf32>, vector<16x32xf32> -> vector<16x32xf32>
    %c0_3 = arith.constant 0 : index
    %c0_4 = arith.constant 0 : index
    %3 = vector.load %arg2[%c0_3, %c0_4] : memref<1x32xf32, #tpu.memory_space<vmem>>, vector<1x32xf32>
    %4 = vector.broadcast %3 : vector<1x32xf32> to vector<16x32xf32>
    %5 = arith.addf %2, %4 : vector<16x32xf32>
    %c0_5 = arith.constant 0 : index
    %c0_6 = arith.constant 0 : index
    %c0_7 = arith.constant 0 : index
    %6 = vector.load %arg3[%c0_5, %c0_6, %c0_7] : memref<2x32x96xf32, #tpu.memory_space<vmem>>, vector<1x32x96xf32>
    %7 = vector.shape_cast %6 : vector<1x32x96xf32> to vector<32x96xf32>
    %cst_8 = arith.constant dense<0.000000e+00> : vector<16x96xf32>
    %8 = tpu.matmul %5, %7, %cst_8 {dimension_numbers = #tpu.dot_dimension_numbers<[1], [0], [0], [1], [0, 0, 1, 1], [], []>} : vector<16x32xf32>, vector<32x96xf32>, vector<16x96xf32> -> vector<16x96xf32>
    %c0_9 = arith.constant 0 : index
    %c0_10 = arith.constant 0 : index
    %c0_11 = arith.constant 0 : index
    %9 = vector.load %arg4[%c0_9, %c0_10, %c0_11] : memref<2x1x96xf32, #tpu.memory_space<vmem>>, vector<1x1x96xf32>
    %10 = vector.shape_cast %9 : vector<1x1x96xf32> to vector<1x96xf32>
    %11 = vector.broadcast %10 : vector<1x96xf32> to vector<16x96xf32>
    %12 = arith.addf %8, %11 : vector<16x96xf32>
    %c0_12 = arith.constant 0 : index
    %c0_13 = arith.constant 0 : index
    %c0_14 = arith.constant 0 : index
    %13 = vector.load %arg5[%c0_12, %c0_13, %c0_14] : memref<2x32x32xf32, #tpu.memory_space<vmem>>, vector<1x32x32xf32>
    %14 = vector.shape_cast %13 : vector<1x32x32xf32> to vector<32x32xf32>
    %cst_15 = arith.constant 0.000000e+00 : f32
    %15 = vector.broadcast %cst_15 : f32 to vector<16x32xf32>
    %16 = vector.extract_strided_slice %12 {offsets = [0, 0], sizes = [16, 8], strides = [1, 1]} : vector<16x96xf32> to vector<16x8xf32>
    %17 = vector.shape_cast %16 : vector<16x8xf32> to vector<2x8x8xf32>
    %cst_16 = arith.constant 0.353553385 : f32
    %18 = vector.broadcast %cst_16 : f32 to vector<2x8x8xf32>
    %19 = arith.mulf %17, %18 : vector<2x8x8xf32>
    %20 = vector.extract_strided_slice %12 {offsets = [0, 32], sizes = [16, 8], strides = [1, 1]} : vector<16x96xf32> to vector<16x8xf32>
    %21 = vector.shape_cast %20 : vector<16x8xf32> to vector<2x8x8xf32>
    %22 = vector.extract_strided_slice %12 {offsets = [0, 64], sizes = [16, 8], strides = [1, 1]} : vector<16x96xf32> to vector<16x8xf32>
    %23 = vector.shape_cast %22 : vector<16x8xf32> to vector<2x8x8xf32>
    "tpu.trace_start"() <{level = 10 : i32, message = "bqd,bkd->bqk"}> : () -> ()
    %cst_17 = arith.constant dense<0.000000e+00> : vector<2x8x8xf32>
    %24 = tpu.matmul %19, %21, %cst_17 {dimension_numbers = #tpu.dot_dimension_numbers<[2], [2], [1], [1], [0, 0, 0, 1, 1, 1], [0], [0]>} : vector<2x8x8xf32>, vector<2x8x8xf32>, vector<2x8x8xf32> -> vector<2x8x8xf32>
    "tpu.trace_stop"() : () -> ()
    %cst_18 = arith.constant dense<0xFF800000> : vector<2x8xf32>
    %25 = vector.multi_reduction <maximumf>, %24, %cst_18 [2] : vector<2x8x8xf32> to vector<2x8xf32>
    %26 = vector.shape_cast %25 : vector<2x8xf32> to vector<2x8x1xf32>
    %27 = vector.broadcast %26 : vector<2x8x1xf32> to vector<2x8x8xf32>
    %28 = arith.subf %24, %27 : vector<2x8x8xf32>
    %29 = math.exp %28 : vector<2x8x8xf32>
    %cst_19 = arith.constant dense<0.000000e+00> : vector<2x8xf32>
    %30 = vector.multi_reduction <add>, %29, %cst_19 [2] : vector<2x8x8xf32> to vector<2x8xf32>
    %31 = vector.shape_cast %30 : vector<2x8xf32> to vector<2x8x1xf32>
    %32 = vector.broadcast %31 : vector<2x8x1xf32> to vector<2x8x8xf32>
    %33 = arith.divf %29, %32 : vector<2x8x8xf32>
    "tpu.trace_start"() <{level = 10 : i32, message = "bqk,bkd->bqd"}> : () -> ()
    %cst_20 = arith.constant dense<0.000000e+00> : vector<2x8x8xf32>
    %34 = tpu.matmul %33, %23, %cst_20 {dimension_numbers = #tpu.dot_dimension_numbers<[2], [1], [1], [2], [0, 0, 0, 1, 1, 2], [0], [0]>} : vector<2x8x8xf32>, vector<2x8x8xf32>, vector<2x8x8xf32> -> vector<2x8x8xf32>
    "tpu.trace_stop"() : () -> ()
    %35 = vector.shape_cast %34 : vector<2x8x8xf32> to vector<16x8xf32>
    %36 = vector.extract_strided_slice %14 {offsets = [0, 0], sizes = [8, 32], strides = [1, 1]} : vector<32x32xf32> to vector<8x32xf32>
    %cst_21 = arith.constant dense<0.000000e+00> : vector<16x32xf32>
    %37 = tpu.matmul %35, %36, %cst_21 {dimension_numbers = #tpu.dot_dimension_numbers<[1], [0], [0], [1], [0, 0, 1, 1], [], []>} : vector<16x8xf32>, vector<8x32xf32>, vector<16x32xf32> -> vector<16x32xf32>
    %38 = arith.addf %15, %37 : vector<16x32xf32>
    %39 = vector.extract_strided_slice %12 {offsets = [0, 8], sizes = [16, 8], strides = [1, 1]} : vector<16x96xf32> to vector<16x8xf32>
    %40 = vector.shape_cast %39 : vector<16x8xf32> to vector<2x8x8xf32>
    %cst_22 = arith.constant 0.353553385 : f32
    %41 = vector.broadcast %cst_22 : f32 to vector<2x8x8xf32>
    %42 = arith.mulf %40, %41 : vector<2x8x8xf32>
    %43 = vector.extract_strided_slice %12 {offsets = [0, 40], sizes = [16, 8], strides = [1, 1]} : vector<16x96xf32> to vector<16x8xf32>
    %44 = vector.shape_cast %43 : vector<16x8xf32> to vector<2x8x8xf32>
    %45 = vector.extract_strided_slice %12 {offsets = [0, 72], sizes = [16, 8], strides = [1, 1]} : vector<16x96xf32> to vector<16x8xf32>
    %46 = vector.shape_cast %45 : vector<16x8xf32> to vector<2x8x8xf32>
    "tpu.trace_start"() <{level = 10 : i32, message = "bqd,bkd->bqk"}> : () -> ()
    %cst_23 = arith.constant dense<0.000000e+00> : vector<2x8x8xf32>
    %47 = tpu.matmul %42, %44, %cst_23 {dimension_numbers = #tpu.dot_dimension_numbers<[2], [2], [1], [1], [0, 0, 0, 1, 1, 1], [0], [0]>} : vector<2x8x8xf32>, vector<2x8x8xf32>, vector<2x8x8xf32> -> vector<2x8x8xf32>
    "tpu.trace_stop"() : () -> ()
    %cst_24 = arith.constant dense<0xFF800000> : vector<2x8xf32>
    %48 = vector.multi_reduction <maximumf>, %47, %cst_24 [2] : vector<2x8x8xf32> to vector<2x8xf32>
    %49 = vector.shape_cast %48 : vector<2x8xf32> to vector<2x8x1xf32>
    %50 = vector.broadcast %49 : vector<2x8x1xf32> to vector<2x8x8xf32>
    %51 = arith.subf %47, %50 : vector<2x8x8xf32>
    %52 = math.exp %51 : vector<2x8x8xf32>
    %cst_25 = arith.constant dense<0.000000e+00> : vector<2x8xf32>
    %53 = vector.multi_reduction <add>, %52, %cst_25 [2] : vector<2x8x8xf32> to vector<2x8xf32>
    %54 = vector.shape_cast %53 : vector<2x8xf32> to vector<2x8x1xf32>
    %55 = vector.broadcast %54 : vector<2x8x1xf32> to vector<2x8x8xf32>
    %56 = arith.divf %52, %55 : vector<2x8x8xf32>
    "tpu.trace_start"() <{level = 10 : i32, message = "bqk,bkd->bqd"}> : () -> ()
    %cst_26 = arith.constant dense<0.000000e+00> : vector<2x8x8xf32>
    %57 = tpu.matmul %56, %46, %cst_26 {dimension_numbers = #tpu.dot_dimension_numbers<[2], [1], [1], [2], [0, 0, 0, 1, 1, 2], [0], [0]>} : vector<2x8x8xf32>, vector<2x8x8xf32>, vector<2x8x8xf32> -> vector<2x8x8xf32>
    "tpu.trace_stop"() : () -> ()
    %58 = vector.shape_cast %57 : vector<2x8x8xf32> to vector<16x8xf32>
    %59 = vector.extract_strided_slice %14 {offsets = [8, 0], sizes = [8, 32], strides = [1, 1]} : vector<32x32xf32> to vector<8x32xf32>
    %cst_27 = arith.constant dense<0.000000e+00> : vector<16x32xf32>
    %60 = tpu.matmul %58, %59, %cst_27 {dimension_numbers = #tpu.dot_dimension_numbers<[1], [0], [0], [1], [0, 0, 1, 1], [], []>} : vector<16x8xf32>, vector<8x32xf32>, vector<16x32xf32> -> vector<16x32xf32>
    %61 = arith.addf %38, %60 : vector<16x32xf32>
    %62 = vector.extract_strided_slice %12 {offsets = [0, 16], sizes = [16, 8], strides = [1, 1]} : vector<16x96xf32> to vector<16x8xf32>
    %63 = vector.shape_cast %62 : vector<16x8xf32> to vector<2x8x8xf32>
    %cst_28 = arith.constant 0.353553385 : f32
    %64 = vector.broadcast %cst_28 : f32 to vector<2x8x8xf32>
    %65 = arith.mulf %63, %64 : vector<2x8x8xf32>
    %66 = vector.extract_strided_slice %12 {offsets = [0, 48], sizes = [16, 8], strides = [1, 1]} : vector<16x96xf32> to vector<16x8xf32>
    %67 = vector.shape_cast %66 : vector<16x8xf32> to vector<2x8x8xf32>
    %68 = vector.extract_strided_slice %12 {offsets = [0, 80], sizes = [16, 8], strides = [1, 1]} : vector<16x96xf32> to vector<16x8xf32>
    %69 = vector.shape_cast %68 : vector<16x8xf32> to vector<2x8x8xf32>
    "tpu.trace_start"() <{level = 10 : i32, message = "bqd,bkd->bqk"}> : () -> ()
    %cst_29 = arith.constant dense<0.000000e+00> : vector<2x8x8xf32>
    %70 = tpu.matmul %65, %67, %cst_29 {dimension_numbers = #tpu.dot_dimension_numbers<[2], [2], [1], [1], [0, 0, 0, 1, 1, 1], [0], [0]>} : vector<2x8x8xf32>, vector<2x8x8xf32>, vector<2x8x8xf32> -> vector<2x8x8xf32>
    "tpu.trace_stop"() : () -> ()
    %cst_30 = arith.constant dense<0xFF800000> : vector<2x8xf32>
    %71 = vector.multi_reduction <maximumf>, %70, %cst_30 [2] : vector<2x8x8xf32> to vector<2x8xf32>
    %72 = vector.shape_cast %71 : vector<2x8xf32> to vector<2x8x1xf32>
    %73 = vector.broadcast %72 : vector<2x8x1xf32> to vector<2x8x8xf32>
    %74 = arith.subf %70, %73 : vector<2x8x8xf32>
    %75 = math.exp %74 : vector<2x8x8xf32>
    %cst_31 = arith.constant dense<0.000000e+00> : vector<2x8xf32>
    %76 = vector.multi_reduction <add>, %75, %cst_31 [2] : vector<2x8x8xf32> to vector<2x8xf32>
    %77 = vector.shape_cast %76 : vector<2x8xf32> to vector<2x8x1xf32>
    %78 = vector.broadcast %77 : vector<2x8x1xf32> to vector<2x8x8xf32>
    %79 = arith.divf %75, %78 : vector<2x8x8xf32>
    "tpu.trace_start"() <{level = 10 : i32, message = "bqk,bkd->bqd"}> : () -> ()
    %cst_32 = arith.constant dense<0.000000e+00> : vector<2x8x8xf32>
    %80 = tpu.matmul %79, %69, %cst_32 {dimension_numbers = #tpu.dot_dimension_numbers<[2], [1], [1], [2], [0, 0, 0, 1, 1, 2], [0], [0]>} : vector<2x8x8xf32>, vector<2x8x8xf32>, vector<2x8x8xf32> -> vector<2x8x8xf32>
    "tpu.trace_stop"() : () -> ()
    %81 = vector.shape_cast %80 : vector<2x8x8xf32> to vector<16x8xf32>
    %82 = vector.extract_strided_slice %14 {offsets = [16, 0], sizes = [8, 32], strides = [1, 1]} : vector<32x32xf32> to vector<8x32xf32>
    %cst_33 = arith.constant dense<0.000000e+00> : vector<16x32xf32>
    %83 = tpu.matmul %81, %82, %cst_33 {dimension_numbers = #tpu.dot_dimension_numbers<[1], [0], [0], [1], [0, 0, 1, 1], [], []>} : vector<16x8xf32>, vector<8x32xf32>, vector<16x32xf32> -> vector<16x32xf32>
    %84 = arith.addf %61, %83 : vector<16x32xf32>
    %85 = vector.extract_strided_slice %12 {offsets = [0, 24], sizes = [16, 8], strides = [1, 1]} : vector<16x96xf32> to vector<16x8xf32>
    %86 = vector.shape_cast %85 : vector<16x8xf32> to vector<2x8x8xf32>
    %cst_34 = arith.constant 0.353553385 : f32
    %87 = vector.broadcast %cst_34 : f32 to vector<2x8x8xf32>
    %88 = arith.mulf %86, %87 : vector<2x8x8xf32>
    %89 = vector.extract_strided_slice %12 {offsets = [0, 56], sizes = [16, 8], strides = [1, 1]} : vector<16x96xf32> to vector<16x8xf32>
    %90 = vector.shape_cast %89 : vector<16x8xf32> to vector<2x8x8xf32>
    %91 = vector.extract_strided_slice %12 {offsets = [0, 88], sizes = [16, 8], strides = [1, 1]} : vector<16x96xf32> to vector<16x8xf32>
    %92 = vector.shape_cast %91 : vector<16x8xf32> to vector<2x8x8xf32>
    "tpu.trace_start"() <{level = 10 : i32, message = "bqd,bkd->bqk"}> : () -> ()
    %cst_35 = arith.constant dense<0.000000e+00> : vector<2x8x8xf32>
    %93 = tpu.matmul %88, %90, %cst_35 {dimension_numbers = #tpu.dot_dimension_numbers<[2], [2], [1], [1], [0, 0, 0, 1, 1, 1], [0], [0]>} : vector<2x8x8xf32>, vector<2x8x8xf32>, vector<2x8x8xf32> -> vector<2x8x8xf32>
    "tpu.trace_stop"() : () -> ()
    %cst_36 = arith.constant dense<0xFF800000> : vector<2x8xf32>
    %94 = vector.multi_reduction <maximumf>, %93, %cst_36 [2] : vector<2x8x8xf32> to vector<2x8xf32>
    %95 = vector.shape_cast %94 : vector<2x8xf32> to vector<2x8x1xf32>
    %96 = vector.broadcast %95 : vector<2x8x1xf32> to vector<2x8x8xf32>
    %97 = arith.subf %93, %96 : vector<2x8x8xf32>
    %98 = math.exp %97 : vector<2x8x8xf32>
    %cst_37 = arith.constant dense<0.000000e+00> : vector<2x8xf32>
    %99 = vector.multi_reduction <add>, %98, %cst_37 [2] : vector<2x8x8xf32> to vector<2x8xf32>
    %100 = vector.shape_cast %99 : vector<2x8xf32> to vector<2x8x1xf32>
    %101 = vector.broadcast %100 : vector<2x8x1xf32> to vector<2x8x8xf32>
    %102 = arith.divf %98, %101 : vector<2x8x8xf32>
    "tpu.trace_start"() <{level = 10 : i32, message = "bqk,bkd->bqd"}> : () -> ()
    %cst_38 = arith.constant dense<0.000000e+00> : vector<2x8x8xf32>
    %103 = tpu.matmul %102, %92, %cst_38 {dimension_numbers = #tpu.dot_dimension_numbers<[2], [1], [1], [2], [0, 0, 0, 1, 1, 2], [0], [0]>} : vector<2x8x8xf32>, vector<2x8x8xf32>, vector<2x8x8xf32> -> vector<2x8x8xf32>
    "tpu.trace_stop"() : () -> ()
    %104 = vector.shape_cast %103 : vector<2x8x8xf32> to vector<16x8xf32>
    %105 = vector.extract_strided_slice %14 {offsets = [24, 0], sizes = [8, 32], strides = [1, 1]} : vector<32x32xf32> to vector<8x32xf32>
    %cst_39 = arith.constant dense<0.000000e+00> : vector<16x32xf32>
    %106 = tpu.matmul %104, %105, %cst_39 {dimension_numbers = #tpu.dot_dimension_numbers<[1], [0], [0], [1], [0, 0, 1, 1], [], []>} : vector<16x8xf32>, vector<8x32xf32>, vector<16x32xf32> -> vector<16x32xf32>
    %107 = arith.addf %84, %106 : vector<16x32xf32>
    %c0_40 = arith.constant 0 : index
    %c0_41 = arith.constant 0 : index
    %c0_42 = arith.constant 0 : index
    %108 = vector.load %arg6[%c0_40, %c0_41, %c0_42] : memref<2x1x32xf32, #tpu.memory_space<vmem>>, vector<1x1x32xf32>
    %109 = vector.shape_cast %108 : vector<1x1x32xf32> to vector<1x32xf32>
    %110 = vector.broadcast %109 : vector<1x32xf32> to vector<16x32xf32>
    %111 = arith.addf %107, %110 : vector<16x32xf32>
    %112 = arith.addf %5, %111 : vector<16x32xf32>
    %c0_43 = arith.constant 0 : index
    %c0_44 = arith.constant 0 : index
    %c0_45 = arith.constant 0 : index
    %113 = vector.load %arg7[%c0_43, %c0_44, %c0_45] : memref<2x1x32xf32, #tpu.memory_space<vmem>>, vector<1x1x32xf32>
    %114 = vector.shape_cast %113 : vector<1x1x32xf32> to vector<1x32xf32>
    %c0_46 = arith.constant 0 : index
    %c0_47 = arith.constant 0 : index
    %c0_48 = arith.constant 0 : index
    %115 = vector.load %arg8[%c0_46, %c0_47, %c0_48] : memref<2x1x32xf32, #tpu.memory_space<vmem>>, vector<1x1x32xf32>
    %116 = vector.shape_cast %115 : vector<1x1x32xf32> to vector<1x32xf32>
    %cst_49 = arith.constant dense<0.000000e+00> : vector<16xf32>
    %117 = vector.multi_reduction <add>, %112, %cst_49 [1] : vector<16x32xf32> to vector<16xf32>
    %118 = vector.shape_cast %117 : vector<16xf32> to vector<16x1xf32>
    %cst_50 = arith.constant 3.200000e+01 : f32
    %119 = vector.broadcast %cst_50 : f32 to vector<16x1xf32>
    %120 = arith.divf %118, %119 : vector<16x1xf32>
    %121 = vector.broadcast %120 : vector<16x1xf32> to vector<16x32xf32>
    %122 = arith.subf %112, %121 : vector<16x32xf32>
    %123 = arith.mulf %122, %122 : vector<16x32xf32>
    %cst_51 = arith.constant dense<0.000000e+00> : vector<16xf32>
    %124 = vector.multi_reduction <add>, %123, %cst_51 [1] : vector<16x32xf32> to vector<16xf32>
    %125 = vector.shape_cast %124 : vector<16xf32> to vector<16x1xf32>
    %cst_52 = arith.constant 3.200000e+01 : f32
    %126 = vector.broadcast %cst_52 : f32 to vector<16x1xf32>
    %127 = arith.divf %125, %126 : vector<16x1xf32>
    %128 = vector.broadcast %120 : vector<16x1xf32> to vector<16x32xf32>
    %129 = arith.subf %112, %128 : vector<16x32xf32>
    %cst_53 = arith.constant 9.99999974E-6 : f32
    %130 = vector.broadcast %cst_53 : f32 to vector<16x1xf32>
    %131 = arith.addf %127, %130 : vector<16x1xf32>
    %132 = math.rsqrt %131 : vector<16x1xf32>
    %133 = vector.broadcast %132 : vector<16x1xf32> to vector<16x32xf32>
    %134 = arith.mulf %129, %133 : vector<16x32xf32>
    %135 = vector.broadcast %114 : vector<1x32xf32> to vector<16x32xf32>
    %136 = arith.mulf %134, %135 : vector<16x32xf32>
    %137 = vector.broadcast %116 : vector<1x32xf32> to vector<16x32xf32>
    %138 = arith.addf %136, %137 : vector<16x32xf32>
    %c0_54 = arith.constant 0 : index
    %c0_55 = arith.constant 0 : index
    %c0_56 = arith.constant 0 : index
    %139 = vector.load %arg9[%c0_54, %c0_55, %c0_56] : memref<2x32x64xf32, #tpu.memory_space<vmem>>, vector<1x32x64xf32>
    %140 = vector.shape_cast %139 : vector<1x32x64xf32> to vector<32x64xf32>
    %cst_57 = arith.constant dense<0.000000e+00> : vector<16x64xf32>
    %141 = tpu.matmul %138, %140, %cst_57 {dimension_numbers = #tpu.dot_dimension_numbers<[1], [0], [0], [1], [0, 0, 1, 1], [], []>} : vector<16x32xf32>, vector<32x64xf32>, vector<16x64xf32> -> vector<16x64xf32>
    %c0_58 = arith.constant 0 : index
    %c0_59 = arith.constant 0 : index
    %c0_60 = arith.constant 0 : index
    %142 = vector.load %arg10[%c0_58, %c0_59, %c0_60] : memref<2x1x64xf32, #tpu.memory_space<vmem>>, vector<1x1x64xf32>
    %143 = vector.shape_cast %142 : vector<1x1x64xf32> to vector<1x64xf32>
    %144 = vector.broadcast %143 : vector<1x64xf32> to vector<16x64xf32>
    %145 = arith.addf %141, %144 : vector<16x64xf32>
    %cst_61 = arith.constant 0.000000e+00 : f32
    %146 = vector.broadcast %cst_61 : f32 to vector<16x64xf32>
    %147 = arith.maximumf %145, %146 : vector<16x64xf32>
    %c0_62 = arith.constant 0 : index
    %c0_63 = arith.constant 0 : index
    %c0_64 = arith.constant 0 : index
    %148 = vector.load %arg11[%c0_62, %c0_63, %c0_64] : memref<2x64x32xf32, #tpu.memory_space<vmem>>, vector<1x64x32xf32>
    %149 = vector.shape_cast %148 : vector<1x64x32xf32> to vector<64x32xf32>
    %cst_65 = arith.constant dense<0.000000e+00> : vector<16x32xf32>
    %150 = tpu.matmul %147, %149, %cst_65 {dimension_numbers = #tpu.dot_dimension_numbers<[1], [0], [0], [1], [0, 0, 1, 1], [], []>} : vector<16x64xf32>, vector<64x32xf32>, vector<16x32xf32> -> vector<16x32xf32>
    %c0_66 = arith.constant 0 : index
    %c0_67 = arith.constant 0 : index
    %c0_68 = arith.constant 0 : index
    %151 = vector.load %arg12[%c0_66, %c0_67, %c0_68] : memref<2x1x32xf32, #tpu.memory_space<vmem>>, vector<1x1x32xf32>
    %152 = vector.shape_cast %151 : vector<1x1x32xf32> to vector<1x32xf32>
    %153 = vector.broadcast %152 : vector<1x32xf32> to vector<16x32xf32>
    %154 = arith.addf %150, %153 : vector<16x32xf32>
    %155 = arith.addf %138, %154 : vector<16x32xf32>
    %c0_69 = arith.constant 0 : index
    %c0_70 = arith.constant 0 : index
    %c0_71 = arith.constant 0 : index
    %156 = vector.load %arg13[%c0_69, %c0_70, %c0_71] : memref<2x1x32xf32, #tpu.memory_space<vmem>>, vector<1x1x32xf32>
    %157 = vector.shape_cast %156 : vector<1x1x32xf32> to vector<1x32xf32>
    %c0_72 = arith.constant 0 : index
    %c0_73 = arith.constant 0 : index
    %c0_74 = arith.constant 0 : index
    %158 = vector.load %arg14[%c0_72, %c0_73, %c0_74] : memref<2x1x32xf32, #tpu.memory_space<vmem>>, vector<1x1x32xf32>
    %159 = vector.shape_cast %158 : vector<1x1x32xf32> to vector<1x32xf32>
    %cst_75 = arith.constant dense<0.000000e+00> : vector<16xf32>
    %160 = vector.multi_reduction <add>, %155, %cst_75 [1] : vector<16x32xf32> to vector<16xf32>
    %161 = vector.shape_cast %160 : vector<16xf32> to vector<16x1xf32>
    %cst_76 = arith.constant 3.200000e+01 : f32
    %162 = vector.broadcast %cst_76 : f32 to vector<16x1xf32>
    %163 = arith.divf %161, %162 : vector<16x1xf32>
    %164 = vector.broadcast %163 : vector<16x1xf32> to vector<16x32xf32>
    %165 = arith.subf %155, %164 : vector<16x32xf32>
    %166 = arith.mulf %165, %165 : vector<16x32xf32>
    %cst_77 = arith.constant dense<0.000000e+00> : vector<16xf32>
    %167 = vector.multi_reduction <add>, %166, %cst_77 [1] : vector<16x32xf32> to vector<16xf32>
    %168 = vector.shape_cast %167 : vector<16xf32> to vector<16x1xf32>
    %cst_78 = arith.constant 3.200000e+01 : f32
    %169 = vector.broadcast %cst_78 : f32 to vector<16x1xf32>
    %170 = arith.divf %168, %169 : vector<16x1xf32>
    %171 = vector.broadcast %163 : vector<16x1xf32> to vector<16x32xf32>
    %172 = arith.subf %155, %171 : vector<16x32xf32>
    %cst_79 = arith.constant 9.99999974E-6 : f32
    %173 = vector.broadcast %cst_79 : f32 to vector<16x1xf32>
    %174 = arith.addf %170, %173 : vector<16x1xf32>
    %175 = math.rsqrt %174 : vector<16x1xf32>
    %176 = vector.broadcast %175 : vector<16x1xf32> to vector<16x32xf32>
    %177 = arith.mulf %172, %176 : vector<16x32xf32>
    %178 = vector.broadcast %157 : vector<1x32xf32> to vector<16x32xf32>
    %179 = arith.mulf %177, %178 : vector<16x32xf32>
    %180 = vector.broadcast %159 : vector<1x32xf32> to vector<16x32xf32>
    %181 = arith.addf %179, %180 : vector<16x32xf32>
    %c1 = arith.constant 1 : index
    %c0_80 = arith.constant 0 : index
    %c0_81 = arith.constant 0 : index
    %182 = vector.load %arg3[%c1, %c0_80, %c0_81] : memref<2x32x96xf32, #tpu.memory_space<vmem>>, vector<1x32x96xf32>
    %183 = vector.shape_cast %182 : vector<1x32x96xf32> to vector<32x96xf32>
    %cst_82 = arith.constant dense<0.000000e+00> : vector<16x96xf32>
    %184 = tpu.matmul %181, %183, %cst_82 {dimension_numbers = #tpu.dot_dimension_numbers<[1], [0], [0], [1], [0, 0, 1, 1], [], []>} : vector<16x32xf32>, vector<32x96xf32>, vector<16x96xf32> -> vector<16x96xf32>
    %c1_83 = arith.constant 1 : index
    %c0_84 = arith.constant 0 : index
    %c0_85 = arith.constant 0 : index
    %185 = vector.load %arg4[%c1_83, %c0_84, %c0_85] : memref<2x1x96xf32, #tpu.memory_space<vmem>>, vector<1x1x96xf32>
    %186 = vector.shape_cast %185 : vector<1x1x96xf32> to vector<1x96xf32>
    %187 = vector.broadcast %186 : vector<1x96xf32> to vector<16x96xf32>
    %188 = arith.addf %184, %187 : vector<16x96xf32>
    %c1_86 = arith.constant 1 : index
    %c0_87 = arith.constant 0 : index
    %c0_88 = arith.constant 0 : index
    %189 = vector.load %arg5[%c1_86, %c0_87, %c0_88] : memref<2x32x32xf32, #tpu.memory_space<vmem>>, vector<1x32x32xf32>
    %190 = vector.shape_cast %189 : vector<1x32x32xf32> to vector<32x32xf32>
    %cst_89 = arith.constant 0.000000e+00 : f32
    %191 = vector.broadcast %cst_89 : f32 to vector<16x32xf32>
    %192 = vector.extract_strided_slice %188 {offsets = [0, 0], sizes = [16, 8], strides = [1, 1]} : vector<16x96xf32> to vector<16x8xf32>
    %193 = vector.shape_cast %192 : vector<16x8xf32> to vector<2x8x8xf32>
    %cst_90 = arith.constant 0.353553385 : f32
    %194 = vector.broadcast %cst_90 : f32 to vector<2x8x8xf32>
    %195 = arith.mulf %193, %194 : vector<2x8x8xf32>
    %196 = vector.extract_strided_slice %188 {offsets = [0, 32], sizes = [16, 8], strides = [1, 1]} : vector<16x96xf32> to vector<16x8xf32>
    %197 = vector.shape_cast %196 : vector<16x8xf32> to vector<2x8x8xf32>
    %198 = vector.extract_strided_slice %188 {offsets = [0, 64], sizes = [16, 8], strides = [1, 1]} : vector<16x96xf32> to vector<16x8xf32>
    %199 = vector.shape_cast %198 : vector<16x8xf32> to vector<2x8x8xf32>
    "tpu.trace_start"() <{level = 10 : i32, message = "bqd,bkd->bqk"}> : () -> ()
    %cst_91 = arith.constant dense<0.000000e+00> : vector<2x8x8xf32>
    %200 = tpu.matmul %195, %197, %cst_91 {dimension_numbers = #tpu.dot_dimension_numbers<[2], [2], [1], [1], [0, 0, 0, 1, 1, 1], [0], [0]>} : vector<2x8x8xf32>, vector<2x8x8xf32>, vector<2x8x8xf32> -> vector<2x8x8xf32>
    "tpu.trace_stop"() : () -> ()
    %cst_92 = arith.constant dense<0xFF800000> : vector<2x8xf32>
    %201 = vector.multi_reduction <maximumf>, %200, %cst_92 [2] : vector<2x8x8xf32> to vector<2x8xf32>
    %202 = vector.shape_cast %201 : vector<2x8xf32> to vector<2x8x1xf32>
    %203 = vector.broadcast %202 : vector<2x8x1xf32> to vector<2x8x8xf32>
    %204 = arith.subf %200, %203 : vector<2x8x8xf32>
    %205 = math.exp %204 : vector<2x8x8xf32>
    %cst_93 = arith.constant dense<0.000000e+00> : vector<2x8xf32>
    %206 = vector.multi_reduction <add>, %205, %cst_93 [2] : vector<2x8x8xf32> to vector<2x8xf32>
    %207 = vector.shape_cast %206 : vector<2x8xf32> to vector<2x8x1xf32>
    %208 = vector.broadcast %207 : vector<2x8x1xf32> to vector<2x8x8xf32>
    %209 = arith.divf %205, %208 : vector<2x8x8xf32>
    "tpu.trace_start"() <{level = 10 : i32, message = "bqk,bkd->bqd"}> : () -> ()
    %cst_94 = arith.constant dense<0.000000e+00> : vector<2x8x8xf32>
    %210 = tpu.matmul %209, %199, %cst_94 {dimension_numbers = #tpu.dot_dimension_numbers<[2], [1], [1], [2], [0, 0, 0, 1, 1, 2], [0], [0]>} : vector<2x8x8xf32>, vector<2x8x8xf32>, vector<2x8x8xf32> -> vector<2x8x8xf32>
    "tpu.trace_stop"() : () -> ()
    %211 = vector.shape_cast %210 : vector<2x8x8xf32> to vector<16x8xf32>
    %212 = vector.extract_strided_slice %190 {offsets = [0, 0], sizes = [8, 32], strides = [1, 1]} : vector<32x32xf32> to vector<8x32xf32>
    %cst_95 = arith.constant dense<0.000000e+00> : vector<16x32xf32>
    %213 = tpu.matmul %211, %212, %cst_95 {dimension_numbers = #tpu.dot_dimension_numbers<[1], [0], [0], [1], [0, 0, 1, 1], [], []>} : vector<16x8xf32>, vector<8x32xf32>, vector<16x32xf32> -> vector<16x32xf32>
    %214 = arith.addf %191, %213 : vector<16x32xf32>
    %215 = vector.extract_strided_slice %188 {offsets = [0, 8], sizes = [16, 8], strides = [1, 1]} : vector<16x96xf32> to vector<16x8xf32>
    %216 = vector.shape_cast %215 : vector<16x8xf32> to vector<2x8x8xf32>
    %cst_96 = arith.constant 0.353553385 : f32
    %217 = vector.broadcast %cst_96 : f32 to vector<2x8x8xf32>
    %218 = arith.mulf %216, %217 : vector<2x8x8xf32>
    %219 = vector.extract_strided_slice %188 {offsets = [0, 40], sizes = [16, 8], strides = [1, 1]} : vector<16x96xf32> to vector<16x8xf32>
    %220 = vector.shape_cast %219 : vector<16x8xf32> to vector<2x8x8xf32>
    %221 = vector.extract_strided_slice %188 {offsets = [0, 72], sizes = [16, 8], strides = [1, 1]} : vector<16x96xf32> to vector<16x8xf32>
    %222 = vector.shape_cast %221 : vector<16x8xf32> to vector<2x8x8xf32>
    "tpu.trace_start"() <{level = 10 : i32, message = "bqd,bkd->bqk"}> : () -> ()
    %cst_97 = arith.constant dense<0.000000e+00> : vector<2x8x8xf32>
    %223 = tpu.matmul %218, %220, %cst_97 {dimension_numbers = #tpu.dot_dimension_numbers<[2], [2], [1], [1], [0, 0, 0, 1, 1, 1], [0], [0]>} : vector<2x8x8xf32>, vector<2x8x8xf32>, vector<2x8x8xf32> -> vector<2x8x8xf32>
    "tpu.trace_stop"() : () -> ()
    %cst_98 = arith.constant dense<0xFF800000> : vector<2x8xf32>
    %224 = vector.multi_reduction <maximumf>, %223, %cst_98 [2] : vector<2x8x8xf32> to vector<2x8xf32>
    %225 = vector.shape_cast %224 : vector<2x8xf32> to vector<2x8x1xf32>
    %226 = vector.broadcast %225 : vector<2x8x1xf32> to vector<2x8x8xf32>
    %227 = arith.subf %223, %226 : vector<2x8x8xf32>
    %228 = math.exp %227 : vector<2x8x8xf32>
    %cst_99 = arith.constant dense<0.000000e+00> : vector<2x8xf32>
    %229 = vector.multi_reduction <add>, %228, %cst_99 [2] : vector<2x8x8xf32> to vector<2x8xf32>
    %230 = vector.shape_cast %229 : vector<2x8xf32> to vector<2x8x1xf32>
    %231 = vector.broadcast %230 : vector<2x8x1xf32> to vector<2x8x8xf32>
    %232 = arith.divf %228, %231 : vector<2x8x8xf32>
    "tpu.trace_start"() <{level = 10 : i32, message = "bqk,bkd->bqd"}> : () -> ()
    %cst_100 = arith.constant dense<0.000000e+00> : vector<2x8x8xf32>
    %233 = tpu.matmul %232, %222, %cst_100 {dimension_numbers = #tpu.dot_dimension_numbers<[2], [1], [1], [2], [0, 0, 0, 1, 1, 2], [0], [0]>} : vector<2x8x8xf32>, vector<2x8x8xf32>, vector<2x8x8xf32> -> vector<2x8x8xf32>
    "tpu.trace_stop"() : () -> ()
    %234 = vector.shape_cast %233 : vector<2x8x8xf32> to vector<16x8xf32>
    %235 = vector.extract_strided_slice %190 {offsets = [8, 0], sizes = [8, 32], strides = [1, 1]} : vector<32x32xf32> to vector<8x32xf32>
    %cst_101 = arith.constant dense<0.000000e+00> : vector<16x32xf32>
    %236 = tpu.matmul %234, %235, %cst_101 {dimension_numbers = #tpu.dot_dimension_numbers<[1], [0], [0], [1], [0, 0, 1, 1], [], []>} : vector<16x8xf32>, vector<8x32xf32>, vector<16x32xf32> -> vector<16x32xf32>
    %237 = arith.addf %214, %236 : vector<16x32xf32>
    %238 = vector.extract_strided_slice %188 {offsets = [0, 16], sizes = [16, 8], strides = [1, 1]} : vector<16x96xf32> to vector<16x8xf32>
    %239 = vector.shape_cast %238 : vector<16x8xf32> to vector<2x8x8xf32>
    %cst_102 = arith.constant 0.353553385 : f32
    %240 = vector.broadcast %cst_102 : f32 to vector<2x8x8xf32>
    %241 = arith.mulf %239, %240 : vector<2x8x8xf32>
    %242 = vector.extract_strided_slice %188 {offsets = [0, 48], sizes = [16, 8], strides = [1, 1]} : vector<16x96xf32> to vector<16x8xf32>
    %243 = vector.shape_cast %242 : vector<16x8xf32> to vector<2x8x8xf32>
    %244 = vector.extract_strided_slice %188 {offsets = [0, 80], sizes = [16, 8], strides = [1, 1]} : vector<16x96xf32> to vector<16x8xf32>
    %245 = vector.shape_cast %244 : vector<16x8xf32> to vector<2x8x8xf32>
    "tpu.trace_start"() <{level = 10 : i32, message = "bqd,bkd->bqk"}> : () -> ()
    %cst_103 = arith.constant dense<0.000000e+00> : vector<2x8x8xf32>
    %246 = tpu.matmul %241, %243, %cst_103 {dimension_numbers = #tpu.dot_dimension_numbers<[2], [2], [1], [1], [0, 0, 0, 1, 1, 1], [0], [0]>} : vector<2x8x8xf32>, vector<2x8x8xf32>, vector<2x8x8xf32> -> vector<2x8x8xf32>
    "tpu.trace_stop"() : () -> ()
    %cst_104 = arith.constant dense<0xFF800000> : vector<2x8xf32>
    %247 = vector.multi_reduction <maximumf>, %246, %cst_104 [2] : vector<2x8x8xf32> to vector<2x8xf32>
    %248 = vector.shape_cast %247 : vector<2x8xf32> to vector<2x8x1xf32>
    %249 = vector.broadcast %248 : vector<2x8x1xf32> to vector<2x8x8xf32>
    %250 = arith.subf %246, %249 : vector<2x8x8xf32>
    %251 = math.exp %250 : vector<2x8x8xf32>
    %cst_105 = arith.constant dense<0.000000e+00> : vector<2x8xf32>
    %252 = vector.multi_reduction <add>, %251, %cst_105 [2] : vector<2x8x8xf32> to vector<2x8xf32>
    %253 = vector.shape_cast %252 : vector<2x8xf32> to vector<2x8x1xf32>
    %254 = vector.broadcast %253 : vector<2x8x1xf32> to vector<2x8x8xf32>
    %255 = arith.divf %251, %254 : vector<2x8x8xf32>
    "tpu.trace_start"() <{level = 10 : i32, message = "bqk,bkd->bqd"}> : () -> ()
    %cst_106 = arith.constant dense<0.000000e+00> : vector<2x8x8xf32>
    %256 = tpu.matmul %255, %245, %cst_106 {dimension_numbers = #tpu.dot_dimension_numbers<[2], [1], [1], [2], [0, 0, 0, 1, 1, 2], [0], [0]>} : vector<2x8x8xf32>, vector<2x8x8xf32>, vector<2x8x8xf32> -> vector<2x8x8xf32>
    "tpu.trace_stop"() : () -> ()
    %257 = vector.shape_cast %256 : vector<2x8x8xf32> to vector<16x8xf32>
    %258 = vector.extract_strided_slice %190 {offsets = [16, 0], sizes = [8, 32], strides = [1, 1]} : vector<32x32xf32> to vector<8x32xf32>
    %cst_107 = arith.constant dense<0.000000e+00> : vector<16x32xf32>
    %259 = tpu.matmul %257, %258, %cst_107 {dimension_numbers = #tpu.dot_dimension_numbers<[1], [0], [0], [1], [0, 0, 1, 1], [], []>} : vector<16x8xf32>, vector<8x32xf32>, vector<16x32xf32> -> vector<16x32xf32>
    %260 = arith.addf %237, %259 : vector<16x32xf32>
    %261 = vector.extract_strided_slice %188 {offsets = [0, 24], sizes = [16, 8], strides = [1, 1]} : vector<16x96xf32> to vector<16x8xf32>
    %262 = vector.shape_cast %261 : vector<16x8xf32> to vector<2x8x8xf32>
    %cst_108 = arith.constant 0.353553385 : f32
    %263 = vector.broadcast %cst_108 : f32 to vector<2x8x8xf32>
    %264 = arith.mulf %262, %263 : vector<2x8x8xf32>
    %265 = vector.extract_strided_slice %188 {offsets = [0, 56], sizes = [16, 8], strides = [1, 1]} : vector<16x96xf32> to vector<16x8xf32>
    %266 = vector.shape_cast %265 : vector<16x8xf32> to vector<2x8x8xf32>
    %267 = vector.extract_strided_slice %188 {offsets = [0, 88], sizes = [16, 8], strides = [1, 1]} : vector<16x96xf32> to vector<16x8xf32>
    %268 = vector.shape_cast %267 : vector<16x8xf32> to vector<2x8x8xf32>
    "tpu.trace_start"() <{level = 10 : i32, message = "bqd,bkd->bqk"}> : () -> ()
    %cst_109 = arith.constant dense<0.000000e+00> : vector<2x8x8xf32>
    %269 = tpu.matmul %264, %266, %cst_109 {dimension_numbers = #tpu.dot_dimension_numbers<[2], [2], [1], [1], [0, 0, 0, 1, 1, 1], [0], [0]>} : vector<2x8x8xf32>, vector<2x8x8xf32>, vector<2x8x8xf32> -> vector<2x8x8xf32>
    "tpu.trace_stop"() : () -> ()
    %cst_110 = arith.constant dense<0xFF800000> : vector<2x8xf32>
    %270 = vector.multi_reduction <maximumf>, %269, %cst_110 [2] : vector<2x8x8xf32> to vector<2x8xf32>
    %271 = vector.shape_cast %270 : vector<2x8xf32> to vector<2x8x1xf32>
    %272 = vector.broadcast %271 : vector<2x8x1xf32> to vector<2x8x8xf32>
    %273 = arith.subf %269, %272 : vector<2x8x8xf32>
    %274 = math.exp %273 : vector<2x8x8xf32>
    %cst_111 = arith.constant dense<0.000000e+00> : vector<2x8xf32>
    %275 = vector.multi_reduction <add>, %274, %cst_111 [2] : vector<2x8x8xf32> to vector<2x8xf32>
    %276 = vector.shape_cast %275 : vector<2x8xf32> to vector<2x8x1xf32>
    %277 = vector.broadcast %276 : vector<2x8x1xf32> to vector<2x8x8xf32>
    %278 = arith.divf %274, %277 : vector<2x8x8xf32>
    "tpu.trace_start"() <{level = 10 : i32, message = "bqk,bkd->bqd"}> : () -> ()
    %cst_112 = arith.constant dense<0.000000e+00> : vector<2x8x8xf32>
    %279 = tpu.matmul %278, %268, %cst_112 {dimension_numbers = #tpu.dot_dimension_numbers<[2], [1], [1], [2], [0, 0, 0, 1, 1, 2], [0], [0]>} : vector<2x8x8xf32>, vector<2x8x8xf32>, vector<2x8x8xf32> -> vector<2x8x8xf32>
    "tpu.trace_stop"() : () -> ()
    %280 = vector.shape_cast %279 : vector<2x8x8xf32> to vector<16x8xf32>
    %281 = vector.extract_strided_slice %190 {offsets = [24, 0], sizes = [8, 32], strides = [1, 1]} : vector<32x32xf32> to vector<8x32xf32>
    %cst_113 = arith.constant dense<0.000000e+00> : vector<16x32xf32>
    %282 = tpu.matmul %280, %281, %cst_113 {dimension_numbers = #tpu.dot_dimension_numbers<[1], [0], [0], [1], [0, 0, 1, 1], [], []>} : vector<16x8xf32>, vector<8x32xf32>, vector<16x32xf32> -> vector<16x32xf32>
    %283 = arith.addf %260, %282 : vector<16x32xf32>
    %c1_114 = arith.constant 1 : index
    %c0_115 = arith.constant 0 : index
    %c0_116 = arith.constant 0 : index
    %284 = vector.load %arg6[%c1_114, %c0_115, %c0_116] : memref<2x1x32xf32, #tpu.memory_space<vmem>>, vector<1x1x32xf32>
    %285 = vector.shape_cast %284 : vector<1x1x32xf32> to vector<1x32xf32>
    %286 = vector.broadcast %285 : vector<1x32xf32> to vector<16x32xf32>
    %287 = arith.addf %283, %286 : vector<16x32xf32>
    %288 = arith.addf %181, %287 : vector<16x32xf32>
    %c1_117 = arith.constant 1 : index
    %c0_118 = arith.constant 0 : index
    %c0_119 = arith.constant 0 : index
    %289 = vector.load %arg7[%c1_117, %c0_118, %c0_119] : memref<2x1x32xf32, #tpu.memory_space<vmem>>, vector<1x1x32xf32>
    %290 = vector.shape_cast %289 : vector<1x1x32xf32> to vector<1x32xf32>
    %c1_120 = arith.constant 1 : index
    %c0_121 = arith.constant 0 : index
    %c0_122 = arith.constant 0 : index
    %291 = vector.load %arg8[%c1_120, %c0_121, %c0_122] : memref<2x1x32xf32, #tpu.memory_space<vmem>>, vector<1x1x32xf32>
    %292 = vector.shape_cast %291 : vector<1x1x32xf32> to vector<1x32xf32>
    %cst_123 = arith.constant dense<0.000000e+00> : vector<16xf32>
    %293 = vector.multi_reduction <add>, %288, %cst_123 [1] : vector<16x32xf32> to vector<16xf32>
    %294 = vector.shape_cast %293 : vector<16xf32> to vector<16x1xf32>
    %cst_124 = arith.constant 3.200000e+01 : f32
    %295 = vector.broadcast %cst_124 : f32 to vector<16x1xf32>
    %296 = arith.divf %294, %295 : vector<16x1xf32>
    %297 = vector.broadcast %296 : vector<16x1xf32> to vector<16x32xf32>
    %298 = arith.subf %288, %297 : vector<16x32xf32>
    %299 = arith.mulf %298, %298 : vector<16x32xf32>
    %cst_125 = arith.constant dense<0.000000e+00> : vector<16xf32>
    %300 = vector.multi_reduction <add>, %299, %cst_125 [1] : vector<16x32xf32> to vector<16xf32>
    %301 = vector.shape_cast %300 : vector<16xf32> to vector<16x1xf32>
    %cst_126 = arith.constant 3.200000e+01 : f32
    %302 = vector.broadcast %cst_126 : f32 to vector<16x1xf32>
    %303 = arith.divf %301, %302 : vector<16x1xf32>
    %304 = vector.broadcast %296 : vector<16x1xf32> to vector<16x32xf32>
    %305 = arith.subf %288, %304 : vector<16x32xf32>
    %cst_127 = arith.constant 9.99999974E-6 : f32
    %306 = vector.broadcast %cst_127 : f32 to vector<16x1xf32>
    %307 = arith.addf %303, %306 : vector<16x1xf32>
    %308 = math.rsqrt %307 : vector<16x1xf32>
    %309 = vector.broadcast %308 : vector<16x1xf32> to vector<16x32xf32>
    %310 = arith.mulf %305, %309 : vector<16x32xf32>
    %311 = vector.broadcast %290 : vector<1x32xf32> to vector<16x32xf32>
    %312 = arith.mulf %310, %311 : vector<16x32xf32>
    %313 = vector.broadcast %292 : vector<1x32xf32> to vector<16x32xf32>
    %314 = arith.addf %312, %313 : vector<16x32xf32>
    %c1_128 = arith.constant 1 : index
    %c0_129 = arith.constant 0 : index
    %c0_130 = arith.constant 0 : index
    %315 = vector.load %arg9[%c1_128, %c0_129, %c0_130] : memref<2x32x64xf32, #tpu.memory_space<vmem>>, vector<1x32x64xf32>
    %316 = vector.shape_cast %315 : vector<1x32x64xf32> to vector<32x64xf32>
    %cst_131 = arith.constant dense<0.000000e+00> : vector<16x64xf32>
    %317 = tpu.matmul %314, %316, %cst_131 {dimension_numbers = #tpu.dot_dimension_numbers<[1], [0], [0], [1], [0, 0, 1, 1], [], []>} : vector<16x32xf32>, vector<32x64xf32>, vector<16x64xf32> -> vector<16x64xf32>
    %c1_132 = arith.constant 1 : index
    %c0_133 = arith.constant 0 : index
    %c0_134 = arith.constant 0 : index
    %318 = vector.load %arg10[%c1_132, %c0_133, %c0_134] : memref<2x1x64xf32, #tpu.memory_space<vmem>>, vector<1x1x64xf32>
    %319 = vector.shape_cast %318 : vector<1x1x64xf32> to vector<1x64xf32>
    %320 = vector.broadcast %319 : vector<1x64xf32> to vector<16x64xf32>
    %321 = arith.addf %317, %320 : vector<16x64xf32>
    %cst_135 = arith.constant 0.000000e+00 : f32
    %322 = vector.broadcast %cst_135 : f32 to vector<16x64xf32>
    %323 = arith.maximumf %321, %322 : vector<16x64xf32>
    %c1_136 = arith.constant 1 : index
    %c0_137 = arith.constant 0 : index
    %c0_138 = arith.constant 0 : index
    %324 = vector.load %arg11[%c1_136, %c0_137, %c0_138] : memref<2x64x32xf32, #tpu.memory_space<vmem>>, vector<1x64x32xf32>
    %325 = vector.shape_cast %324 : vector<1x64x32xf32> to vector<64x32xf32>
    %cst_139 = arith.constant dense<0.000000e+00> : vector<16x32xf32>
    %326 = tpu.matmul %323, %325, %cst_139 {dimension_numbers = #tpu.dot_dimension_numbers<[1], [0], [0], [1], [0, 0, 1, 1], [], []>} : vector<16x64xf32>, vector<64x32xf32>, vector<16x32xf32> -> vector<16x32xf32>
    %c1_140 = arith.constant 1 : index
    %c0_141 = arith.constant 0 : index
    %c0_142 = arith.constant 0 : index
    %327 = vector.load %arg12[%c1_140, %c0_141, %c0_142] : memref<2x1x32xf32, #tpu.memory_space<vmem>>, vector<1x1x32xf32>
    %328 = vector.shape_cast %327 : vector<1x1x32xf32> to vector<1x32xf32>
    %329 = vector.broadcast %328 : vector<1x32xf32> to vector<16x32xf32>
    %330 = arith.addf %326, %329 : vector<16x32xf32>
    %331 = arith.addf %314, %330 : vector<16x32xf32>
    %c1_143 = arith.constant 1 : index
    %c0_144 = arith.constant 0 : index
    %c0_145 = arith.constant 0 : index
    %332 = vector.load %arg13[%c1_143, %c0_144, %c0_145] : memref<2x1x32xf32, #tpu.memory_space<vmem>>, vector<1x1x32xf32>
    %333 = vector.shape_cast %332 : vector<1x1x32xf32> to vector<1x32xf32>
    %c1_146 = arith.constant 1 : index
    %c0_147 = arith.constant 0 : index
    %c0_148 = arith.constant 0 : index
    %334 = vector.load %arg14[%c1_146, %c0_147, %c0_148] : memref<2x1x32xf32, #tpu.memory_space<vmem>>, vector<1x1x32xf32>
    %335 = vector.shape_cast %334 : vector<1x1x32xf32> to vector<1x32xf32>
    %cst_149 = arith.constant dense<0.000000e+00> : vector<16xf32>
    %336 = vector.multi_reduction <add>, %331, %cst_149 [1] : vector<16x32xf32> to vector<16xf32>
    %337 = vector.shape_cast %336 : vector<16xf32> to vector<16x1xf32>
    %cst_150 = arith.constant 3.200000e+01 : f32
    %338 = vector.broadcast %cst_150 : f32 to vector<16x1xf32>
    %339 = arith.divf %337, %338 : vector<16x1xf32>
    %340 = vector.broadcast %339 : vector<16x1xf32> to vector<16x32xf32>
    %341 = arith.subf %331, %340 : vector<16x32xf32>
    %342 = arith.mulf %341, %341 : vector<16x32xf32>
    %cst_151 = arith.constant dense<0.000000e+00> : vector<16xf32>
    %343 = vector.multi_reduction <add>, %342, %cst_151 [1] : vector<16x32xf32> to vector<16xf32>
    %344 = vector.shape_cast %343 : vector<16xf32> to vector<16x1xf32>
    %cst_152 = arith.constant 3.200000e+01 : f32
    %345 = vector.broadcast %cst_152 : f32 to vector<16x1xf32>
    %346 = arith.divf %344, %345 : vector<16x1xf32>
    %347 = vector.broadcast %339 : vector<16x1xf32> to vector<16x32xf32>
    %348 = arith.subf %331, %347 : vector<16x32xf32>
    %cst_153 = arith.constant 9.99999974E-6 : f32
    %349 = vector.broadcast %cst_153 : f32 to vector<16x1xf32>
    %350 = arith.addf %346, %349 : vector<16x1xf32>
    %351 = math.rsqrt %350 : vector<16x1xf32>
    %352 = vector.broadcast %351 : vector<16x1xf32> to vector<16x32xf32>
    %353 = arith.mulf %348, %352 : vector<16x32xf32>
    %354 = vector.broadcast %333 : vector<1x32xf32> to vector<16x32xf32>
    %355 = arith.mulf %353, %354 : vector<16x32xf32>
    %356 = vector.broadcast %335 : vector<1x32xf32> to vector<16x32xf32>
    %357 = arith.addf %355, %356 : vector<16x32xf32>
    %c0_154 = arith.constant 0 : index
    %c0_155 = arith.constant 0 : index
    %358 = vector.load %arg15[%c0_154, %c0_155] : memref<32x16xf32, #tpu.memory_space<vmem>>, vector<32x16xf32>
    %cst_156 = arith.constant dense<0.000000e+00> : vector<16x16xf32>
    %359 = tpu.matmul %357, %358, %cst_156 {dimension_numbers = #tpu.dot_dimension_numbers<[1], [0], [0], [1], [0, 0, 1, 1], [], []>} : vector<16x32xf32>, vector<32x16xf32>, vector<16x16xf32> -> vector<16x16xf32>
    %c0_157 = arith.constant 0 : index
    %c0_158 = arith.constant 0 : index
    %360 = vector.load %arg16[%c0_157, %c0_158] : memref<1x16xf32, #tpu.memory_space<vmem>>, vector<1x16xf32>
    %361 = vector.broadcast %360 : vector<1x16xf32> to vector<16x16xf32>
    %362 = arith.addf %359, %361 : vector<16x16xf32>
    %c0_159 = arith.constant 0 : index
    %c0_160 = arith.constant 0 : index
    %363 = vector.load %arg17[%c0_159, %c0_160] : memref<16x16xf32, #tpu.memory_space<vmem>>, vector<16x16xf32>
    tpu.vector_store %arg17[%c0_159, %c0_160], %362 {strides = array<i32>} : memref<16x16xf32, #tpu.memory_space<vmem>>, vector<16x16xf32>,
    return
  }
}

</mosaic_0001>

<llo_original>
// kernel: gpt_forward.1
$region0: #{gpt_forward.1}
  #allocation0 [shape = 'u32[]', space=smem, size = 0x4, offset = 0x4, fixed_abs, tag = 'smem constant byte address 0x4 - core index']
  #allocation1 [shape = 'u32[144,128]{1,0:T(1,128)}', space=vmem, size = 0x12000, scoped, tag = 'internal scratch']
  %s0 = inlined_call_operand.vmem [shape: f32[16,16], index: 0, kind: input, shape index: {}]
  %s1 = inlined_call_operand.vmem [shape: f32[16,32], index: 1, kind: input, shape index: {}]
  %s2 = inlined_call_operand.hbm [shape: f32[1,32], index: 2, kind: input, shape index: {}]
  %s3 = inlined_call_operand.vmem [shape: f32[2,32,96], index: 3, kind: input, shape index: {}]
  %s4 = inlined_call_operand.vmem [shape: f32[2,1,96], index: 4, kind: input, shape index: {}]
  %s5 = inlined_call_operand.vmem [shape: f32[2,32,32], index: 5, kind: input, shape index: {}]
  %s6 = inlined_call_operand.vmem [shape: f32[2,1,32], index: 6, kind: input, shape index: {}]
  %s7 = inlined_call_operand.vmem [shape: f32[2,1,32], index: 7, kind: input, shape index: {}]
  %s8 = inlined_call_operand.vmem [shape: f32[2,1,32], index: 8, kind: input, shape index: {}]
  %s9 = inlined_call_operand.vmem [shape: f32[2,32,64], index: 9, kind: input, shape index: {}]
  %s10 = inlined_call_operand.hbm [shape: f32[2,1,64], index: 10, kind: input, shape index: {}]
  %s11 = inlined_call_operand.vmem [shape: f32[2,64,32], index: 11, kind: input, shape index: {}]
  %s12 = inlined_call_operand.hbm [shape: f32[2,1,32], index: 12, kind: input, shape index: {}]
  %s13 = inlined_call_operand.hbm [shape: f32[2,1,32], index: 13, kind: input, shape index: {}]
  %s14 = inlined_call_operand.hbm [shape: f32[2,1,32], index: 14, kind: input, shape index: {}]
  %s15 = inlined_call_operand.vmem [shape: f32[32,16], index: 15, kind: input, shape index: {}]
  %s16 = inlined_call_operand.hbm [shape: f32[1,16], index: 16, kind: input, shape index: {}]
  %s17 = inlined_call_operand.hbm [shape: f32[16,16], index: 17, kind: output, shape index: {}]
  %s18 = sld [smem:[#allocation0]]
  $region102: #{gpt_forward.1} parent=0
    _
  %s20 = ssub.s32 1, %s18
  %s21 = scalar_select 0, %s20, %s18
  $region1: #{gpt_forward.1} parent=0
    #allocation2 [shape = 'u8[512]{0}', space=vmem, size = 0x400, scoped, tag = 'input window, operand 2, single buffered']
    #allocation3 [shape = 's32[1]{0}', space=sflag, size = 0x4, scoped, tag = 'scoped memory for gpt_forward.1']
    #allocation4 [shape = 's32[1]{0}', space=sflag, size = 0x4, scoped, tag = 'scoped memory for gpt_forward.1']
    #allocation5 [shape = 'u8[1024]{0}', space=vmem, size = 0x400, scoped, tag = 'input window, operand 10, single buffered']
    #allocation6 [shape = 's32[1]{0}', space=sflag, size = 0x4, scoped, tag = 'scoped memory for gpt_forward.1']
    #allocation7 [shape = 'u8[1024]{0}', space=vmem, size = 0x400, scoped, tag = 'input window, operand 12, single buffered']
    #allocation8 [shape = 'u8[1024]{0}', space=vmem, size = 0x400, scoped, tag = 'input window, operand 13, single buffered']
    #allocation9 [shape = 's32[1]{0}', space=sflag, size = 0x4, scoped, tag = 'scoped memory for gpt_forward.1']
    #allocation10 [shape = 'u8[1024]{0}', space=vmem, size = 0x400, scoped, tag = 'input window, operand 14, single buffered']
    #allocation11 [shape = 'u8[512]{0}', space=vmem, size = 0x400, scoped, tag = 'input window, operand 16, single buffered']
    #allocation12 [shape = 's32[1]{0}', space=sflag, size = 0x4, scoped, tag = 'scoped memory for gpt_forward.1']
    #allocation13 [shape = 'u8[8192]{0}', space=vmem, size = 0x2000, scoped, tag = 'output window, operand 0, single buffered']
    %22 = vsyncpa [#allocation3], 0
    %23 = vsyncpa [#allocation6], 0
    %24 = vsyncpa [#allocation9], 0
    %25 = vsyncpa [#allocation12], 0
    %26 = vsyncpa [#allocation4], 0
    // Predicated region
    $region2: #{gpt_forward.1} parent=1 // pred_check
      _
    $region3: #{gpt_forward.1} parent=1 // pred_check_branch
      %28 = sbr.rel (0) target = $region5
    $region4: #{gpt_forward.1} parent=1 // pred_region
      _
    $region5: #{gpt_forward.1} parent=1 // pred_fallthru
      _
    // Predicated region
    $region6: #{gpt_forward.1} parent=1 // pred_check
      _
    $region7: #{gpt_forward.1} parent=1 // pred_check_branch
      %30 = sbr.rel (0) target = $region9
    $region8: #{gpt_forward.1} parent=1 // pred_region
      _
    $region9: #{gpt_forward.1} parent=1 // pred_fallthru
      _
    // Predicated region
    $region10: #{gpt_forward.1} parent=1 // pred_check
      _
    $region11: #{gpt_forward.1} parent=1 // pred_check_branch
      %32 = sbr.rel (0) target = $region13
    $region12: #{gpt_forward.1} parent=1 // pred_region
      %s34 = ssub.s32 16, 16
      %35 = vsyncadd [#allocation3], %s34
      %s37 = sshll.u32 [#allocation2], 4
      %s38 = int_to_ptr.vmem [resolvable:$true] %s37
      %40 = dma.hbm_to_vmem [thread:$0]  %s2, 16, %s38, [#allocation3]
    $region13: #{gpt_forward.1} parent=1 // pred_fallthru
      _
    // Predicated region
    $region14: #{gpt_forward.1} parent=1 // pred_check
      _
    $region15: #{gpt_forward.1} parent=1 // pred_check_branch
      %42 = sbr.rel (0) target = $region17
    $region16: #{gpt_forward.1} parent=1 // pred_region
      _
    $region17: #{gpt_forward.1} parent=1 // pred_fallthru
      _
    // Predicated region
    $region18: #{gpt_forward.1} parent=1 // pred_check
      _
    $region19: #{gpt_forward.1} parent=1 // pred_check_branch
      %44 = sbr.rel (0) target = $region21
    $region20: #{gpt_forward.1} parent=1 // pred_region
      _
    $region21: #{gpt_forward.1} parent=1 // pred_fallthru
      _
    // Predicated region
    $region22: #{gpt_forward.1} parent=1 // pred_check
      _
    $region23: #{gpt_forward.1} parent=1 // pred_check_branch
      %46 = sbr.rel (0) target = $region25
    $region24: #{gpt_forward.1} parent=1 // pred_region
      _
    $region25: #{gpt_forward.1} parent=1 // pred_fallthru
      _
    // Predicated region
    $region26: #{gpt_forward.1} parent=1 // pred_check
      _
    $region27: #{gpt_forward.1} parent=1 // pred_check_branch
      %48 = sbr.rel (0) target = $region29
    $region28: #{gpt_forward.1} parent=1 // pred_region
      _
    $region29: #{gpt_forward.1} parent=1 // pred_fallthru
      _
    // Predicated region
    $region30: #{gpt_forward.1} parent=1 // pred_check
      _
    $region31: #{gpt_forward.1} parent=1 // pred_check_branch
      %50 = sbr.rel (0) target = $region33
    $region32: #{gpt_forward.1} parent=1 // pred_region
      _
    $region33: #{gpt_forward.1} parent=1 // pred_fallthru
      _
    // Predicated region
    $region34: #{gpt_forward.1} parent=1 // pred_check
      _
    $region35: #{gpt_forward.1} parent=1 // pred_check_branch
      %52 = sbr.rel (0) target = $region37
    $region36: #{gpt_forward.1} parent=1 // pred_region
      _
    $region37: #{gpt_forward.1} parent=1 // pred_fallthru
      _
    // Predicated region
    $region38: #{gpt_forward.1} parent=1 // pred_check
      _
    $region39: #{gpt_forward.1} parent=1 // pred_check_branch
      %54 = sbr.rel (0) target = $region41
    $region40: #{gpt_forward.1} parent=1 // pred_region
      _
    $region41: #{gpt_forward.1} parent=1 // pred_fallthru
      _
    // Predicated region
    $region42: #{gpt_forward.1} parent=1 // pred_check
      _
    $region43: #{gpt_forward.1} parent=1 // pred_check_branch
      %56 = sbr.rel (0) target = $region45
    $region44: #{gpt_forward.1} parent=1 // pred_region
      %s58 = ssub.s32 32, 32
      %59 = vsyncadd [#allocation6], %s58
      %s60 = sshll.u32 [#allocation5], 4
      %s61 = int_to_ptr.vmem [resolvable:$true] %s60
      %66 = dma.hbm_to_vmem [thread:$0]  %s10, 32, %s61, [#allocation6], 16, 16, 1
    $region45: #{gpt_forward.1} parent=1 // pred_fallthru
      _
    // Predicated region
    $region46: #{gpt_forward.1} parent=1 // pred_check
      _
    $region47: #{gpt_forward.1} parent=1 // pred_check_branch
      %68 = sbr.rel (0) target = $region49
    $region48: #{gpt_forward.1} parent=1 // pred_region
      _
    $region49: #{gpt_forward.1} parent=1 // pred_fallthru
      _
    // Predicated region
    $region50: #{gpt_forward.1} parent=1 // pred_check
      _
    $region51: #{gpt_forward.1} parent=1 // pred_check_branch
      %70 = sbr.rel (0) target = $region53
    $region52: #{gpt_forward.1} parent=1 // pred_region
      %s72 = ssub.s32 32, 32
      %73 = vsyncadd [#allocation6], %s72
      %s74 = sshll.u32 [#allocation7], 4
      %s75 = int_to_ptr.vmem [resolvable:$true] %s74
      %80 = dma.hbm_to_vmem [thread:$0]  %s12, 32, %s75, [#allocation6], 16, 16, 1
    $region53: #{gpt_forward.1} parent=1 // pred_fallthru
      _
    // Predicated region
    $region54: #{gpt_forward.1} parent=1 // pred_check
      _
    $region55: #{gpt_forward.1} parent=1 // pred_check_branch
      %82 = sbr.rel (0) target = $region57
    $region56: #{gpt_forward.1} parent=1 // pred_region
      %s84 = ssub.s32 32, 32
      %85 = vsyncadd [#allocation9], %s84
      %s86 = sshll.u32 [#allocation8], 4
      %s87 = int_to_ptr.vmem [resolvable:$true] %s86
      %92 = dma.hbm_to_vmem [thread:$0]  %s13, 32, %s87, [#allocation9], 16, 16, 1
    $region57: #{gpt_forward.1} parent=1 // pred_fallthru
      _
    // Predicated region
    $region58: #{gpt_forward.1} parent=1 // pred_check
      _
    $region59: #{gpt_forward.1} parent=1 // pred_check_branch
      %94 = sbr.rel (0) target = $region61
    $region60: #{gpt_forward.1} parent=1 // pred_region
      %s96 = ssub.s32 32, 32
      %97 = vsyncadd [#allocation9], %s96
      %s98 = sshll.u32 [#allocation10], 4
      %s99 = int_to_ptr.vmem [resolvable:$true] %s98
      %104 = dma.hbm_to_vmem [thread:$0]  %s14, 32, %s99, [#allocation9], 16, 16, 1
    $region61: #{gpt_forward.1} parent=1 // pred_fallthru
      _
    // Predicated region
    $region62: #{gpt_forward.1} parent=1 // pred_check
      _
    $region63: #{gpt_forward.1} parent=1 // pred_check_branch
      %106 = sbr.rel (0) target = $region65
    $region64: #{gpt_forward.1} parent=1 // pred_region
      _
    $region65: #{gpt_forward.1} parent=1 // pred_fallthru
      _
    // Predicated region
    $region66: #{gpt_forward.1} parent=1 // pred_check
      _
    $region67: #{gpt_forward.1} parent=1 // pred_check_branch
      %108 = sbr.rel (0) target = $region69
    $region68: #{gpt_forward.1} parent=1 // pred_region
      %s110 = ssub.s32 16, 16
      %111 = vsyncadd [#allocation12], %s110
      %s113 = sshll.u32 [#allocation11], 4
      %s114 = int_to_ptr.vmem [resolvable:$true] %s113
      %116 = dma.hbm_to_vmem [thread:$0]  %s16, 16, %s114, [#allocation12]
    $region69: #{gpt_forward.1} parent=1 // pred_fallthru
      _
    // Predicated region
    $region70: #{gpt_forward.1} parent=1 // pred_check
      _
    $region71: #{gpt_forward.1} parent=1 // pred_check_branch
      %118 = sbr.rel (0) target = $region73
    $region72: #{gpt_forward.1} parent=1 // pred_region
      %119 = dma.done [#allocation3], 16
    $region73: #{gpt_forward.1} parent=1 // pred_fallthru
      _
    // Predicated region
    $region74: #{gpt_forward.1} parent=1 // pred_check
      _
    $region75: #{gpt_forward.1} parent=1 // pred_check_branch
      %121 = sbr.rel (0) target = $region77
    $region76: #{gpt_forward.1} parent=1 // pred_region
      %122 = dma.done [#allocation6], 32
    $region77: #{gpt_forward.1} parent=1 // pred_fallthru
      _
    // Predicated region
    $region78: #{gpt_forward.1} parent=1 // pred_check
      _
    $region79: #{gpt_forward.1} parent=1 // pred_check_branch
      %124 = sbr.rel (0) target = $region81
    $region80: #{gpt_forward.1} parent=1 // pred_region
      %125 = dma.done [#allocation6], 32
    $region81: #{gpt_forward.1} parent=1 // pred_fallthru
      _
    // Predicated region
    $region82: #{gpt_forward.1} parent=1 // pred_check
      _
    $region83: #{gpt_forward.1} parent=1 // pred_check_branch
      %127 = sbr.rel (0) target = $region85
    $region84: #{gpt_forward.1} parent=1 // pred_region
      %128 = dma.done [#allocation9], 32
    $region85: #{gpt_forward.1} parent=1 // pred_fallthru
      _
    // Predicated region
    $region86: #{gpt_forward.1} parent=1 // pred_check
      _
    $region87: #{gpt_forward.1} parent=1 // pred_check_branch
      %130 = sbr.rel (0) target = $region89
    $region88: #{gpt_forward.1} parent=1 // pred_region
      %131 = dma.done [#allocation9], 32
    $region89: #{gpt_forward.1} parent=1 // pred_fallthru
      _
    // Predicated region
    $region90: #{gpt_forward.1} parent=1 // pred_check
      _
    $region91: #{gpt_forward.1} parent=1 // pred_check_branch
      %133 = sbr.rel (0) target = $region93
    $region92: #{gpt_forward.1} parent=1 // pred_region
      %134 = dma.done [#allocation12], 16
    $region93: #{gpt_forward.1} parent=1 // pred_fallthru
      _
    %v135 = vld [vmem:[%s0] sm:$0xff]
    %v136 = vld [vmem:[%s0 + $0x8] sm:$0xff]
    %v137 = vld [vmem:[%s1] sm:$0xff]
    %v138 = vld [vmem:[%s1 + $0x8] sm:$0xff]
    %v139 = vld [vmem:[#allocation2] sm:$0x1]
    %v141 = vlaneseq
    %v142 = vshrl.u32 %v141, 7
    %v143 = vsub.s32 0, %v142
    %v144 = vrot.slane %v139, %v143
    %vm146 = vcmask 130048
    %v148 = vsel %vm146, %v135, 0
    %v151 = vsel %vm146, %v136, 0
    %153 = vmatprep.subr.mxu0 0.0
    %154 = vmatpush1.msra.mxu0 %v137
    %155 = vmatprep.subr.mxu0 0.0
    %156 = vmatpush1.msra.mxu0 %v138
    %157 = vmatprep.subr.mxu0 0.0
    %158 = vmatpush1.msra.mxu0 0.0
    %159 = vmatprep.subr.mxu0 0.0
    %160 = vmatpush1.msra.mxu0 0.0
    %161 = vmatprep.subr.mxu0 0.0
    %162 = vmatpush1.msra.mxu0 0.0
    %163 = vmatprep.subr.mxu0 0.0
    %164 = vmatpush1.msra.mxu0 0.0
    %165 = vmatprep.subr.mxu0 0.0
    %166 = vmatpush1.msra.mxu0 0.0
    %167 = vmatprep.subr.mxu0 0.0
    %168 = vmatpush1.msra.mxu0 0.0
    %169 = vmatprep.subr.mxu0 0.0
    %170 = vmatpush1.msra.mxu0 0.0
    %171 = vmatprep.subr.mxu0 0.0
    %172 = vmatpush1.msra.mxu0 0.0
    %173 = vmatprep.subr.mxu0 0.0
    %174 = vmatpush1.msra.mxu0 0.0
    %175 = vmatprep.subr.mxu0 0.0
    %176 = vmatpush1.msra.mxu0 0.0
    %177 = vmatprep.subr.mxu0 0.0
    %178 = vmatpush1.msra.mxu0 0.0
    %179 = vmatprep.subr.mxu0 0.0
    %180 = vmatpush1.msra.mxu0 0.0
    %181 = vmatprep.subr.mxu0 0.0
    %182 = vmatpush1.msra.mxu0 0.0
    %183 = vmatprep.subr.mxu0 0.0
    %184 = vmatpush1.msra.mxu0 0.0
    %185 = vmatprep.subr.mxu0 0.0
    %186 = vmatpush1.msra.mxu0 0.0
    %187 = vmatprep.subr.mxu0 0.0
    %188 = vmatpush1.msra.mxu0 0.0
    %189 = vmatprep.subr.mxu0 0.0
    %190 = vmatpush1.msra.mxu0 0.0
    %191 = vmatprep.subr.mxu0 0.0
    %192 = vmatpush1.msra.mxu0 0.0
    %193 = vmatprep.subr.mxu0 0.0
    %194 = vmatpush1.msra.mxu0 0.0
    %195 = vmatprep.subr.mxu0 0.0
    %196 = vmatpush1.msra.mxu0 0.0
    %197 = vmatprep.subr.mxu0 0.0
    %198 = vmatpush1.msra.mxu0 0.0
    %199 = vmatprep.subr.mxu0 0.0
    %200 = vmatpush1.msra.mxu0 0.0
    %201 = vmatprep.subr.mxu0 0.0
    %202 = vmatpush1.msra.mxu0 0.0
    %203 = vmatprep.subr.mxu0 0.0
    %204 = vmatpush1.msra.mxu0 0.0
    %205 = vmatprep.subr.mxu0 0.0
    %206 = vmatpush1.msra.mxu0 0.0
    %207 = vmatprep.subr.mxu0 0.0
    %208 = vmatpush1.msra.mxu0 0.0
    %209 = vmatprep.subr.mxu0 0.0
    %210 = vmatpush1.msra.mxu0 0.0
    %211 = vmatprep.subr.mxu0 0.0
    %212 = vmatpush1.msra.mxu0 0.0
    %213 = vmatprep.subr.mxu0 0.0
    %214 = vmatpush1.msra.mxu0 0.0
    %215 = vmatprep.subr.mxu0 0.0
    %216 = vmatpush1.msra.mxu0 0.0
    %217 = vmatprep.mubr.f32.mxu0 0.0
    %218 = vmatmul.mubr.f32.gmra.mrb[0].mxu0 %v148
    %v219 = vpop.f32.mrb[0].mxu0
    %v220 = vadd.f32 %v144, %v219
    %v221 = vpop.f32.mrb[0].mxu0
    %222 = vmatprep.mubr.f32.mxu0 0.0
    %223 = vmatmul.mubr.f32.gmra.mrb[0].mxu0 %v151
    %v224 = vpop.f32.mrb[0].mxu0
    %v225 = vadd.f32 %v144, %v224
    %v226 = vpop.f32.mrb[0].mxu0
    %227 = vdwg.mxu0
    %v228 = vld [vmem:[%s3] sm:$0xff]
    %v229 = vld [vmem:[%s3 + $0x8] sm:$0xff]
    %v230 = vld [vmem:[%s3 + $0x10] sm:$0xff]
    %v231 = vld [vmem:[%s3 + $0x18] sm:$0xff]
    %v232 = vld [vmem:[%s4] sm:$0x1]
    %v234 = vlaneseq
    %v235 = vshrl.u32 %v234, 7
    %v236 = vsub.s32 0, %v235
    %v237 = vrot.slane %v232, %v236
    %vm239 = vcmask 261120
    %v241 = vsel %vm239, %v220, 0
    %v244 = vsel %vm239, %v225, 0
    %246 = vmatprep.subr.mxu0 0.0
    %247 = vmatpush1.msra.mxu0 %v228
    %248 = vmatprep.subr.mxu0 0.0
    %249 = vmatpush1.msra.mxu0 %v229
    %250 = vmatprep.subr.mxu0 0.0
    %251 = vmatpush1.msra.mxu0 %v230
    %252 = vmatprep.subr.mxu0 0.0
    %253 = vmatpush1.msra.mxu0 %v231
    %254 = vmatprep.subr.mxu0 0.0
    %255 = vmatpush1.msra.mxu0 0.0
    %256 = vmatprep.subr.mxu0 0.0
    %257 = vmatpush1.msra.mxu0 0.0
    %258 = vmatprep.subr.mxu0 0.0
    %259 = vmatpush1.msra.mxu0 0.0
    %260 = vmatprep.subr.mxu0 0.0
    %261 = vmatpush1.msra.mxu0 0.0
    %262 = vmatprep.subr.mxu0 0.0
    %263 = vmatpush1.msra.mxu0 0.0
    %264 = vmatprep.subr.mxu0 0.0
    %265 = vmatpush1.msra.mxu0 0.0
    %266 = vmatprep.subr.mxu0 0.0
    %267 = vmatpush1.msra.mxu0 0.0
    %268 = vmatprep.subr.mxu0 0.0
    %269 = vmatpush1.msra.mxu0 0.0
    %270 = vmatprep.subr.mxu0 0.0
    %271 = vmatpush1.msra.mxu0 0.0
    %272 = vmatprep.subr.mxu0 0.0
    %273 = vmatpush1.msra.mxu0 0.0
    %274 = vmatprep.subr.mxu0 0.0
    %275 = vmatpush1.msra.mxu0 0.0
    %276 = vmatprep.subr.mxu0 0.0
    %277 = vmatpush1.msra.mxu0 0.0
    %278 = vmatprep.subr.mxu0 0.0
    %279 = vmatpush1.msra.mxu0 0.0
    %280 = vmatprep.subr.mxu0 0.0
    %281 = vmatpush1.msra.mxu0 0.0
    %282 = vmatprep.subr.mxu0 0.0
    %283 = vmatpush1.msra.mxu0 0.0
    %284 = vmatprep.subr.mxu0 0.0
    %285 = vmatpush1.msra.mxu0 0.0
    %286 = vmatprep.subr.mxu0 0.0
    %287 = vmatpush1.msra.mxu0 0.0
    %288 = vmatprep.subr.mxu0 0.0
    %289 = vmatpush1.msra.mxu0 0.0
    %290 = vmatprep.subr.mxu0 0.0
    %291 = vmatpush1.msra.mxu0 0.0
    %292 = vmatprep.subr.mxu0 0.0
    %293 = vmatpush1.msra.mxu0 0.0
    %294 = vmatprep.subr.mxu0 0.0
    %295 = vmatpush1.msra.mxu0 0.0
    %296 = vmatprep.subr.mxu0 0.0
    %297 = vmatpush1.msra.mxu0 0.0
    %298 = vmatprep.subr.mxu0 0.0
    %299 = vmatpush1.msra.mxu0 0.0
    %300 = vmatprep.subr.mxu0 0.0
    %301 = vmatpush1.msra.mxu0 0.0
    %302 = vmatprep.subr.mxu0 0.0
    %303 = vmatpush1.msra.mxu0 0.0
    %304 = vmatprep.subr.mxu0 0.0
    %305 = vmatpush1.msra.mxu0 0.0
    %306 = vmatprep.subr.mxu0 0.0
    %307 = vmatpush1.msra.mxu0 0.0
    %308 = vmatprep.subr.mxu0 0.0
    %309 = vmatpush1.msra.mxu0 0.0
    %310 = vmatprep.mubr.f32.mxu0 0.0
    %311 = vmatmul.mubr.f32.gmra.mrb[0].mxu0 %v241
    %v312 = vpop.f32.mrb[0].mxu0
    %v313 = vadd.f32 %v237, %v312
    %v314 = vpop.f32.mrb[0].mxu0
    %315 = vmatprep.mubr.f32.mxu0 0.0
    %316 = vmatmul.mubr.f32.gmra.mrb[0].mxu0 %v244
    %v317 = vpop.f32.mrb[0].mxu0
    %v318 = vadd.f32 %v237, %v317
    %v319 = vpop.f32.mrb[0].mxu0
    %320 = vdwg.mxu0
    %v321 = vld [vmem:[%s5] sm:$0xff]
    %v322 = vld [vmem:[%s5 + $0x8] sm:$0xff]
    %v323 = vld [vmem:[%s5 + $0x10] sm:$0xff]
    %v324 = vld [vmem:[%s5 + $0x18] sm:$0xff]
    %v325 = vmul.f32 %v313, 0.35355338
    %v326 = vmul.f32 %v318, 0.35355338
    %328 = vrot.lane.b32.xlu0 %v313, 96
    %v329 = vpop.permute.xlu0 %328
    %vm330 = vcmask 64512
    %v332 = vsel %vm330, %v325, 0
    %v334 = vsel %vm330, %v329, 0
    %336 = vmatprep.subr.mxu0 0.0
    %337 = vmatpush1.xpose.msra.mxu0 %v334
    %338 = vmatprep.subr.mxu0 0.0
    %339 = vmatpush1.xpose.msra.mxu0 0.0
    %340 = vmatprep.subr.mxu0 0.0
    %341 = vmatpush1.xpose.msra.mxu0 0.0
    %342 = vmatprep.subr.mxu0 0.0
    %343 = vmatpush1.xpose.msra.mxu0 0.0
    %344 = vmatprep.subr.mxu0 0.0
    %345 = vmatpush1.xpose.msra.mxu0 0.0
    %346 = vmatprep.subr.mxu0 0.0
    %347 = vmatpush1.xpose.msra.mxu0 0.0
    %348 = vmatprep.subr.mxu0 0.0
    %349 = vmatpush1.xpose.msra.mxu0 0.0
    %350 = vmatprep.subr.mxu0 0.0
    %351 = vmatpush1.xpose.msra.mxu0 0.0
    %352 = vmatprep.subr.mxu0 0.0
    %353 = vmatpush1.xpose.msra.mxu0 0.0
    %354 = vmatprep.subr.mxu0 0.0
    %355 = vmatpush1.xpose.msra.mxu0 0.0
    %356 = vmatprep.subr.mxu0 0.0
    %357 = vmatpush1.xpose.msra.mxu0 0.0
    %358 = vmatprep.subr.mxu0 0.0
    %359 = vmatpush1.xpose.msra.mxu0 0.0
    %360 = vmatprep.subr.mxu0 0.0
    %361 = vmatpush1.xpose.msra.mxu0 0.0
    %362 = vmatprep.subr.mxu0 0.0
    %363 = vmatpush1.xpose.msra.mxu0 0.0
    %364 = vmatprep.subr.mxu0 0.0
    %365 = vmatpush1.xpose.msra.mxu0 0.0
    %366 = vmatprep.subr.mxu0 0.0
    %367 = vmatpush1.xpose.msra.mxu0 0.0
    %368 = vmatprep.subr.mxu0 0.0
    %369 = vmatpush1.xpose.msra.mxu0 0.0
    %370 = vmatprep.subr.mxu0 0.0
    %371 = vmatpush1.xpose.msra.mxu0 0.0
    %372 = vmatprep.subr.mxu0 0.0
    %373 = vmatpush1.xpose.msra.mxu0 0.0
    %374 = vmatprep.subr.mxu0 0.0
    %375 = vmatpush1.xpose.msra.mxu0 0.0
    %376 = vmatprep.subr.mxu0 0.0
    %377 = vmatpush1.xpose.msra.mxu0 0.0
    %378 = vmatprep.subr.mxu0 0.0
    %379 = vmatpush1.xpose.msra.mxu0 0.0
    %380 = vmatprep.subr.mxu0 0.0
    %381 = vmatpush1.xpose.msra.mxu0 0.0
    %382 = vmatprep.subr.mxu0 0.0
    %383 = vmatpush1.xpose.msra.mxu0 0.0
    %384 = vmatprep.subr.mxu0 0.0
    %385 = vmatpush1.xpose.msra.mxu0 0.0
    %386 = vmatprep.subr.mxu0 0.0
    %387 = vmatpush1.xpose.msra.mxu0 0.0
    %388 = vmatprep.subr.mxu0 0.0
    %389 = vmatpush1.xpose.msra.mxu0 0.0
    %390 = vmatprep.subr.mxu0 0.0
    %391 = vmatpush1.xpose.msra.mxu0 0.0
    %392 = vmatprep.subr.mxu0 0.0
    %393 = vmatpush1.xpose.msra.mxu0 0.0
    %394 = vmatprep.subr.mxu0 0.0
    %395 = vmatpush1.xpose.msra.mxu0 0.0
    %396 = vmatprep.subr.mxu0 0.0
    %397 = vmatpush1.xpose.msra.mxu0 0.0
    %398 = vmatprep.subr.mxu0 0.0
    %399 = vmatpush1.xpose.msra.mxu0 0.0
    %400 = vmatprep.mubr.f32.mxu0 0.0
    %401 = vmatmul.mubr.f32.gmra.mrb[0].mxu0 %v332
    %v402 = vpop.f32.mrb[0].mxu0
    %v403 = vadd.f32 0.0, %v402
    %v404 = vpop.f32.mrb[0].mxu0
    %405 = vdwg.mxu0
    %407 = vrot.lane.b32.xlu0 %v318, 96
    %v408 = vpop.permute.xlu0 %407
    %v410 = vsel %vm330, %v326, 0
    %v412 = vsel %vm330, %v408, 0
    %414 = vmatprep.subr.mxu0 0.0
    %415 = vmatpush1.xpose.msra.mxu0 %v412
    %416 = vmatprep.subr.mxu0 0.0
    %417 = vmatpush1.xpose.msra.mxu0 0.0
    %418 = vmatprep.subr.mxu0 0.0
    %419 = vmatpush1.xpose.msra.mxu0 0.0
    %420 = vmatprep.subr.mxu0 0.0
    %421 = vmatpush1.xpose.msra.mxu0 0.0
    %422 = vmatprep.subr.mxu0 0.0
    %423 = vmatpush1.xpose.msra.mxu0 0.0
    %424 = vmatprep.subr.mxu0 0.0
    %425 = vmatpush1.xpose.msra.mxu0 0.0
    %426 = vmatprep.subr.mxu0 0.0
    %427 = vmatpush1.xpose.msra.mxu0 0.0
    %428 = vmatprep.subr.mxu0 0.0
    %429 = vmatpush1.xpose.msra.mxu0 0.0
    %430 = vmatprep.subr.mxu0 0.0
    %431 = vmatpush1.xpose.msra.mxu0 0.0
    %432 = vmatprep.subr.mxu0 0.0
    %433 = vmatpush1.xpose.msra.mxu0 0.0
    %434 = vmatprep.subr.mxu0 0.0
    %435 = vmatpush1.xpose.msra.mxu0 0.0
    %436 = vmatprep.subr.mxu0 0.0
    %437 = vmatpush1.xpose.msra.mxu0 0.0
    %438 = vmatprep.subr.mxu0 0.0
    %439 = vmatpush1.xpose.msra.mxu0 0.0
    %440 = vmatprep.subr.mxu0 0.0
    %441 = vmatpush1.xpose.msra.mxu0 0.0
    %442 = vmatprep.subr.mxu0 0.0
    %443 = vmatpush1.xpose.msra.mxu0 0.0
    %444 = vmatprep.subr.mxu0 0.0
    %445 = vmatpush1.xpose.msra.mxu0 0.0
    %446 = vmatprep.subr.mxu0 0.0
    %447 = vmatpush1.xpose.msra.mxu0 0.0
    %448 = vmatprep.subr.mxu0 0.0
    %449 = vmatpush1.xpose.msra.mxu0 0.0
    %450 = vmatprep.subr.mxu0 0.0
    %451 = vmatpush1.xpose.msra.mxu0 0.0
    %452 = vmatprep.subr.mxu0 0.0
    %453 = vmatpush1.xpose.msra.mxu0 0.0
    %454 = vmatprep.subr.mxu0 0.0
    %455 = vmatpush1.xpose.msra.mxu0 0.0
    %456 = vmatprep.subr.mxu0 0.0
    %457 = vmatpush1.xpose.msra.mxu0 0.0
    %458 = vmatprep.subr.mxu0 0.0
    %459 = vmatpush1.xpose.msra.mxu0 0.0
    %460 = vmatprep.subr.mxu0 0.0
    %461 = vmatpush1.xpose.msra.mxu0 0.0
    %462 = vmatprep.subr.mxu0 0.0
    %463 = vmatpush1.xpose.msra.mxu0 0.0
    %464 = vmatprep.subr.mxu0 0.0
    %465 = vmatpush1.xpose.msra.mxu0 0.0
    %466 = vmatprep.subr.mxu0 0.0
    %467 = vmatpush1.xpose.msra.mxu0 0.0
    %468 = vmatprep.subr.mxu0 0.0
    %469 = vmatpush1.xpose.msra.mxu0 0.0
    %470 = vmatprep.subr.mxu0 0.0
    %471 = vmatpush1.xpose.msra.mxu0 0.0
    %472 = vmatprep.subr.mxu0 0.0
    %473 = vmatpush1.xpose.msra.mxu0 0.0
    %474 = vmatprep.subr.mxu0 0.0
    %475 = vmatpush1.xpose.msra.mxu0 0.0
    %476 = vmatprep.subr.mxu0 0.0
    %477 = vmatpush1.xpose.msra.mxu0 0.0
    %478 = vmatprep.mubr.f32.mxu0 0.0
    %479 = vmatmul.mubr.f32.gmra.mrb[0].mxu0 %v410
    %v480 = vpop.f32.mrb[0].mxu0
    %v481 = vadd.f32 0.0, %v480
    %v482 = vpop.f32.mrb[0].mxu0
    %483 = vdwg.mxu0
    %v484 = vsel %vm330, %v403, -inf
    %485 = vmax.xlane.f32.xlu0 %v484
    %v486 = vpop.xlane.xlu0 %485
    %v487 = vsel %vm330, %v481, -inf
    %488 = vmax.xlane.f32.xlu0 %v487
    %v489 = vpop.xlane.xlu0 %488
    %v490 = vsub.f32 %v403, %v486
    %v491 = vsub.f32 %v481, %v489
    %v492 = vmul.f32 %v490, 1.442695
    %v493 = vpow.pop %v492
    %v494 = vmul.f32 %v491, 1.442695
    %v495 = vpow.pop %v494
    %v496 = vsel %vm330, %v493, 0.0
    %497 = vadd.xlane.f32.xlu0 %v496
    %v498 = vpop.xlane.xlu0 %497
    %v499 = vsel %vm330, %v495, 0.0
    %500 = vadd.xlane.f32.xlu0 %v499
    %v501 = vpop.xlane.xlu0 %500
    %v502 = vrcp.pop %v498
    %v503 = vmul.f32 %v493, %v502
    %v504 = vrcp.pop %v501
    %v505 = vmul.f32 %v495, %v504
    %506 = vrot.lane.b32.xlu0 %v313, 64
    %v507 = vpop.permute.xlu0 %506
    %v510 = vsel %vm330, %v503, 0
    %512 = vmatprep.subr.mxu0 0.0
    %513 = vmatpush1.msra.mxu0 %v507
    %514 = vmatprep.subr.mxu0 0.0
    %515 = vmatpush1.msra.mxu0 0.0
    %516 = vmatprep.subr.mxu0 0.0
    %517 = vmatpush1.msra.mxu0 0.0
    %518 = vmatprep.subr.mxu0 0.0
    %519 = vmatpush1.msra.mxu0 0.0
    %520 = vmatprep.subr.mxu0 0.0
    %521 = vmatpush1.msra.mxu0 0.0
    %522 = vmatprep.subr.mxu0 0.0
    %523 = vmatpush1.msra.mxu0 0.0
    %524 = vmatprep.subr.mxu0 0.0
    %525 = vmatpush1.msra.mxu0 0.0
    %526 = vmatprep.subr.mxu0 0.0
    %527 = vmatpush1.msra.mxu0 0.0
    %528 = vmatprep.subr.mxu0 0.0
    %529 = vmatpush1.msra.mxu0 0.0
    %530 = vmatprep.subr.mxu0 0.0
    %531 = vmatpush1.msra.mxu0 0.0
    %532 = vmatprep.subr.mxu0 0.0
    %533 = vmatpush1.msra.mxu0 0.0
    %534 = vmatprep.subr.mxu0 0.0
    %535 = vmatpush1.msra.mxu0 0.0
    %536 = vmatprep.subr.mxu0 0.0
    %537 = vmatpush1.msra.mxu0 0.0
    %538 = vmatprep.subr.mxu0 0.0
    %539 = vmatpush1.msra.mxu0 0.0
    %540 = vmatprep.subr.mxu0 0.0
    %541 = vmatpush1.msra.mxu0 0.0
    %542 = vmatprep.subr.mxu0 0.0
    %543 = vmatpush1.msra.mxu0 0.0
    %544 = vmatprep.subr.mxu0 0.0
    %545 = vmatpush1.msra.mxu0 0.0
    %546 = vmatprep.subr.mxu0 0.0
    %547 = vmatpush1.msra.mxu0 0.0
    %548 = vmatprep.subr.mxu0 0.0
    %549 = vmatpush1.msra.mxu0 0.0
    %550 = vmatprep.subr.mxu0 0.0
    %551 = vmatpush1.msra.mxu0 0.0
    %552 = vmatprep.subr.mxu0 0.0
    %553 = vmatpush1.msra.mxu0 0.0
    %554 = vmatprep.subr.mxu0 0.0
    %555 = vmatpush1.msra.mxu0 0.0
    %556 = vmatprep.subr.mxu0 0.0
    %557 = vmatpush1.msra.mxu0 0.0
    %558 = vmatprep.subr.mxu0 0.0
    %559 = vmatpush1.msra.mxu0 0.0
    %560 = vmatprep.subr.mxu0 0.0
    %561 = vmatpush1.msra.mxu0 0.0
    %562 = vmatprep.subr.mxu0 0.0
    %563 = vmatpush1.msra.mxu0 0.0
    %564 = vmatprep.subr.mxu0 0.0
    %565 = vmatpush1.msra.mxu0 0.0
    %566 = vmatprep.subr.mxu0 0.0
    %567 = vmatpush1.msra.mxu0 0.0
    %568 = vmatprep.subr.mxu0 0.0
    %569 = vmatpush1.msra.mxu0 0.0
    %570 = vmatprep.subr.mxu0 0.0
    %571 = vmatpush1.msra.mxu0 0.0
    %572 = vmatprep.subr.mxu0 0.0
    %573 = vmatpush1.msra.mxu0 0.0
    %574 = vmatprep.subr.mxu0 0.0
    %575 = vmatpush1.msra.mxu0 0.0
    %576 = vmatprep.mubr.f32.mxu0 0.0
    %577 = vmatmul.mubr.f32.gmra.mrb[0].mxu0 %v510
    %v578 = vpop.f32.mrb[0].mxu0
    %v579 = vadd.f32 0.0, %v578
    %v580 = vpop.f32.mrb[0].mxu0
    %581 = vdwg.mxu0
    %582 = vrot.lane.b32.xlu0 %v318, 64
    %v583 = vpop.permute.xlu0 %582
    %v586 = vsel %vm330, %v505, 0
    %588 = vmatprep.subr.mxu0 0.0
    %589 = vmatpush1.msra.mxu0 %v583
    %590 = vmatprep.subr.mxu0 0.0
    %591 = vmatpush1.msra.mxu0 0.0
    %592 = vmatprep.subr.mxu0 0.0
    %593 = vmatpush1.msra.mxu0 0.0
    %594 = vmatprep.subr.mxu0 0.0
    %595 = vmatpush1.msra.mxu0 0.0
    %596 = vmatprep.subr.mxu0 0.0
    %597 = vmatpush1.msra.mxu0 0.0
    %598 = vmatprep.subr.mxu0 0.0
    %599 = vmatpush1.msra.mxu0 0.0
    %600 = vmatprep.subr.mxu0 0.0
    %601 = vmatpush1.msra.mxu0 0.0
    %602 = vmatprep.subr.mxu0 0.0
    %603 = vmatpush1.msra.mxu0 0.0
    %604 = vmatprep.subr.mxu0 0.0
    %605 = vmatpush1.msra.mxu0 0.0
    %606 = vmatprep.subr.mxu0 0.0
    %607 = vmatpush1.msra.mxu0 0.0
    %608 = vmatprep.subr.mxu0 0.0
    %609 = vmatpush1.msra.mxu0 0.0
    %610 = vmatprep.subr.mxu0 0.0
    %611 = vmatpush1.msra.mxu0 0.0
    %612 = vmatprep.subr.mxu0 0.0
    %613 = vmatpush1.msra.mxu0 0.0
    %614 = vmatprep.subr.mxu0 0.0
    %615 = vmatpush1.msra.mxu0 0.0
    %616 = vmatprep.subr.mxu0 0.0
    %617 = vmatpush1.msra.mxu0 0.0
    %618 = vmatprep.subr.mxu0 0.0
    %619 = vmatpush1.msra.mxu0 0.0
    %620 = vmatprep.subr.mxu0 0.0
    %621 = vmatpush1.msra.mxu0 0.0
    %622 = vmatprep.subr.mxu0 0.0
    %623 = vmatpush1.msra.mxu0 0.0
    %624 = vmatprep.subr.mxu0 0.0
    %625 = vmatpush1.msra.mxu0 0.0
    %626 = vmatprep.subr.mxu0 0.0
    %627 = vmatpush1.msra.mxu0 0.0
    %628 = vmatprep.subr.mxu0 0.0
    %629 = vmatpush1.msra.mxu0 0.0
    %630 = vmatprep.subr.mxu0 0.0
    %631 = vmatpush1.msra.mxu0 0.0
    %632 = vmatprep.subr.mxu0 0.0
    %633 = vmatpush1.msra.mxu0 0.0
    %634 = vmatprep.subr.mxu0 0.0
    %635 = vmatpush1.msra.mxu0 0.0
    %636 = vmatprep.subr.mxu0 0.0
    %637 = vmatpush1.msra.mxu0 0.0
    %638 = vmatprep.subr.mxu0 0.0
    %639 = vmatpush1.msra.mxu0 0.0
    %640 = vmatprep.subr.mxu0 0.0
    %641 = vmatpush1.msra.mxu0 0.0
    %642 = vmatprep.subr.mxu0 0.0
    %643 = vmatpush1.msra.mxu0 0.0
    %644 = vmatprep.subr.mxu0 0.0
    %645 = vmatpush1.msra.mxu0 0.0
    %646 = vmatprep.subr.mxu0 0.0
    %647 = vmatpush1.msra.mxu0 0.0
    %648 = vmatprep.subr.mxu0 0.0
    %649 = vmatpush1.msra.mxu0 0.0
    %650 = vmatprep.subr.mxu0 0.0
    %651 = vmatpush1.msra.mxu0 0.0
    %652 = vmatprep.mubr.f32.mxu0 0.0
    %653 = vmatmul.mubr.f32.gmra.mrb[0].mxu0 %v586
    %v654 = vpop.f32.mrb[0].mxu0
    %v655 = vadd.f32 0.0, %v654
    %v656 = vpop.f32.mrb[0].mxu0
    %657 = vdwg.mxu0
    %658 = vrot.lane.b32.xlu0 %v325, 120
    %v659 = vpop.permute.xlu0 %658
    %660 = vrot.lane.b32.xlu0 %v313, 88
    %v661 = vpop.permute.xlu0 %660
    %v662 = vsel %vm330, %v659, 0
    %v664 = vsel %vm330, %v661, 0
    %666 = vmatprep.subr.mxu0 0.0
    %667 = vmatpush1.xpose.msra.mxu0 %v664
    %668 = vmatprep.subr.mxu0 0.0
    %669 = vmatpush1.xpose.msra.mxu0 0.0
    %670 = vmatprep.subr.mxu0 0.0
    %671 = vmatpush1.xpose.msra.mxu0 0.0
    %672 = vmatprep.subr.mxu0 0.0
    %673 = vmatpush1.xpose.msra.mxu0 0.0
    %674 = vmatprep.subr.mxu0 0.0
    %675 = vmatpush1.xpose.msra.mxu0 0.0
    %676 = vmatprep.subr.mxu0 0.0
    %677 = vmatpush1.xpose.msra.mxu0 0.0
    %678 = vmatprep.subr.mxu0 0.0
    %679 = vmatpush1.xpose.msra.mxu0 0.0
    %680 = vmatprep.subr.mxu0 0.0
    %681 = vmatpush1.xpose.msra.mxu0 0.0
    %682 = vmatprep.subr.mxu0 0.0
    %683 = vmatpush1.xpose.msra.mxu0 0.0
    %684 = vmatprep.subr.mxu0 0.0
    %685 = vmatpush1.xpose.msra.mxu0 0.0
    %686 = vmatprep.subr.mxu0 0.0
    %687 = vmatpush1.xpose.msra.mxu0 0.0
    %688 = vmatprep.subr.mxu0 0.0
    %689 = vmatpush1.xpose.msra.mxu0 0.0
    %690 = vmatprep.subr.mxu0 0.0
    %691 = vmatpush1.xpose.msra.mxu0 0.0
    %692 = vmatprep.subr.mxu0 0.0
    %693 = vmatpush1.xpose.msra.mxu0 0.0
    %694 = vmatprep.subr.mxu0 0.0
    %695 = vmatpush1.xpose.msra.mxu0 0.0
    %696 = vmatprep.subr.mxu0 0.0
    %697 = vmatpush1.xpose.msra.mxu0 0.0
    %698 = vmatprep.subr.mxu0 0.0
    %699 = vmatpush1.xpose.msra.mxu0 0.0
    %700 = vmatprep.subr.mxu0 0.0
    %701 = vmatpush1.xpose.msra.mxu0 0.0
    %702 = vmatprep.subr.mxu0 0.0
    %703 = vmatpush1.xpose.msra.mxu0 0.0
    %704 = vmatprep.subr.mxu0 0.0
    %705 = vmatpush1.xpose.msra.mxu0 0.0
    %706 = vmatprep.subr.mxu0 0.0
    %707 = vmatpush1.xpose.msra.mxu0 0.0
    %708 = vmatprep.subr.mxu0 0.0
    %709 = vmatpush1.xpose.msra.mxu0 0.0
    %710 = vmatprep.subr.mxu0 0.0
    %711 = vmatpush1.xpose.msra.mxu0 0.0
    %712 = vmatprep.subr.mxu0 0.0
    %713 = vmatpush1.xpose.msra.mxu0 0.0
    %714 = vmatprep.subr.mxu0 0.0
    %715 = vmatpush1.xpose.msra.mxu0 0.0
    %716 = vmatprep.subr.mxu0 0.0
    %717 = vmatpush1.xpose.msra.mxu0 0.0
    %718 = vmatprep.subr.mxu0 0.0
    %719 = vmatpush1.xpose.msra.mxu0 0.0
    %720 = vmatprep.subr.mxu0 0.0
    %721 = vmatpush1.xpose.msra.mxu0 0.0
    %722 = vmatprep.subr.mxu0 0.0
    %723 = vmatpush1.xpose.msra.mxu0 0.0
    %724 = vmatprep.subr.mxu0 0.0
    %725 = vmatpush1.xpose.msra.mxu0 0.0
    %726 = vmatprep.subr.mxu0 0.0
    %727 = vmatpush1.xpose.msra.mxu0 0.0
    %728 = vmatprep.subr.mxu0 0.0
    %729 = vmatpush1.xpose.msra.mxu0 0.0
    %730 = vmatprep.mubr.f32.mxu0 0.0
    %731 = vmatmul.mubr.f32.gmra.mrb[0].mxu0 %v662
    %v732 = vpop.f32.mrb[0].mxu0
    %v733 = vadd.f32 0.0, %v732
    %v734 = vpop.f32.mrb[0].mxu0
    %735 = vdwg.mxu0
    %736 = vrot.lane.b32.xlu0 %v326, 120
    %v737 = vpop.permute.xlu0 %736
    %738 = vrot.lane.b32.xlu0 %v318, 88
    %v739 = vpop.permute.xlu0 %738
    %v740 = vsel %vm330, %v737, 0
    %v742 = vsel %vm330, %v739, 0
    %744 = vmatprep.subr.mxu0 0.0
    %745 = vmatpush1.xpose.msra.mxu0 %v742
    %746 = vmatprep.subr.mxu0 0.0
    %747 = vmatpush1.xpose.msra.mxu0 0.0
    %748 = vmatprep.subr.mxu0 0.0
    %749 = vmatpush1.xpose.msra.mxu0 0.0
    %750 = vmatprep.subr.mxu0 0.0
    %751 = vmatpush1.xpose.msra.mxu0 0.0
    %752 = vmatprep.subr.mxu0 0.0
    %753 = vmatpush1.xpose.msra.mxu0 0.0
    %754 = vmatprep.subr.mxu0 0.0
    %755 = vmatpush1.xpose.msra.mxu0 0.0
    %756 = vmatprep.subr.mxu0 0.0
    %757 = vmatpush1.xpose.msra.mxu0 0.0
    %758 = vmatprep.subr.mxu0 0.0
    %759 = vmatpush1.xpose.msra.mxu0 0.0
    %760 = vmatprep.subr.mxu0 0.0
    %761 = vmatpush1.xpose.msra.mxu0 0.0
    %762 = vmatprep.subr.mxu0 0.0
    %763 = vmatpush1.xpose.msra.mxu0 0.0
    %764 = vmatprep.subr.mxu0 0.0
    %765 = vmatpush1.xpose.msra.mxu0 0.0
    %766 = vmatprep.subr.mxu0 0.0
    %767 = vmatpush1.xpose.msra.mxu0 0.0
    %768 = vmatprep.subr.mxu0 0.0
    %769 = vmatpush1.xpose.msra.mxu0 0.0
    %770 = vmatprep.subr.mxu0 0.0
    %771 = vmatpush1.xpose.msra.mxu0 0.0
    %772 = vmatprep.subr.mxu0 0.0
    %773 = vmatpush1.xpose.msra.mxu0 0.0
    %774 = vmatprep.subr.mxu0 0.0
    %775 = vmatpush1.xpose.msra.mxu0 0.0
    %776 = vmatprep.subr.mxu0 0.0
    %777 = vmatpush1.xpose.msra.mxu0 0.0
    %778 = vmatprep.subr.mxu0 0.0
    %779 = vmatpush1.xpose.msra.mxu0 0.0
    %780 = vmatprep.subr.mxu0 0.0
    %781 = vmatpush1.xpose.msra.mxu0 0.0
    %782 = vmatprep.subr.mxu0 0.0
    %783 = vmatpush1.xpose.msra.mxu0 0.0
    %784 = vmatprep.subr.mxu0 0.0
    %785 = vmatpush1.xpose.msra.mxu0 0.0
    %786 = vmatprep.subr.mxu0 0.0
    %787 = vmatpush1.xpose.msra.mxu0 0.0
    %788 = vmatprep.subr.mxu0 0.0
    %789 = vmatpush1.xpose.msra.mxu0 0.0
    %790 = vmatprep.subr.mxu0 0.0
    %791 = vmatpush1.xpose.msra.mxu0 0.0
    %792 = vmatprep.subr.mxu0 0.0
    %793 = vmatpush1.xpose.msra.mxu0 0.0
    %794 = vmatprep.subr.mxu0 0.0
    %795 = vmatpush1.xpose.msra.mxu0 0.0
    %796 = vmatprep.subr.mxu0 0.0
    %797 = vmatpush1.xpose.msra.mxu0 0.0
    %798 = vmatprep.subr.mxu0 0.0
    %799 = vmatpush1.xpose.msra.mxu0 0.0
    %800 = vmatprep.subr.mxu0 0.0
    %801 = vmatpush1.xpose.msra.mxu0 0.0
    %802 = vmatprep.subr.mxu0 0.0
    %803 = vmatpush1.xpose.msra.mxu0 0.0
    %804 = vmatprep.subr.mxu0 0.0
    %805 = vmatpush1.xpose.msra.mxu0 0.0
    %806 = vmatprep.subr.mxu0 0.0
    %807 = vmatpush1.xpose.msra.mxu0 0.0
    %808 = vmatprep.mubr.f32.mxu0 0.0
    %809 = vmatmul.mubr.f32.gmra.mrb[0].mxu0 %v740
    %v810 = vpop.f32.mrb[0].mxu0
    %v811 = vadd.f32 0.0, %v810
    %v812 = vpop.f32.mrb[0].mxu0
    %813 = vdwg.mxu0
    %v814 = vsel %vm330, %v733, -inf
    %815 = vmax.xlane.f32.xlu0 %v814
    %v816 = vpop.xlane.xlu0 %815
    %v817 = vsel %vm330, %v811, -inf
    %818 = vmax.xlane.f32.xlu0 %v817
    %v819 = vpop.xlane.xlu0 %818
    %v820 = vsub.f32 %v733, %v816
    %v821 = vsub.f32 %v811, %v819
    %v822 = vmul.f32 %v820, 1.442695
    %v823 = vpow.pop %v822
    %v824 = vmul.f32 %v821, 1.442695
    %v825 = vpow.pop %v824
    %v826 = vsel %vm330, %v823, 0.0
    %827 = vadd.xlane.f32.xlu0 %v826
    %v828 = vpop.xlane.xlu0 %827
    %v829 = vsel %vm330, %v825, 0.0
    %830 = vadd.xlane.f32.xlu0 %v829
    %v831 = vpop.xlane.xlu0 %830
    %v832 = vrcp.pop %v828
    %v833 = vmul.f32 %v823, %v832
    %v834 = vrcp.pop %v831
    %v835 = vmul.f32 %v825, %v834
    %836 = vrot.lane.b32.xlu0 %v313, 56
    %v837 = vpop.permute.xlu0 %836
    %v840 = vsel %vm330, %v833, 0
    %842 = vmatprep.subr.mxu0 0.0
    %843 = vmatpush1.msra.mxu0 %v837
    %844 = vmatprep.subr.mxu0 0.0
    %845 = vmatpush1.msra.mxu0 0.0
    %846 = vmatprep.subr.mxu0 0.0
    %847 = vmatpush1.msra.mxu0 0.0
    %848 = vmatprep.subr.mxu0 0.0
    %849 = vmatpush1.msra.mxu0 0.0
    %850 = vmatprep.subr.mxu0 0.0
    %851 = vmatpush1.msra.mxu0 0.0
    %852 = vmatprep.subr.mxu0 0.0
    %853 = vmatpush1.msra.mxu0 0.0
    %854 = vmatprep.subr.mxu0 0.0
    %855 = vmatpush1.msra.mxu0 0.0
    %856 = vmatprep.subr.mxu0 0.0
    %857 = vmatpush1.msra.mxu0 0.0
    %858 = vmatprep.subr.mxu0 0.0
    %859 = vmatpush1.msra.mxu0 0.0
    %860 = vmatprep.subr.mxu0 0.0
    %861 = vmatpush1.msra.mxu0 0.0
    %862 = vmatprep.subr.mxu0 0.0
    %863 = vmatpush1.msra.mxu0 0.0
    %864 = vmatprep.subr.mxu0 0.0
    %865 = vmatpush1.msra.mxu0 0.0
    %866 = vmatprep.subr.mxu0 0.0
    %867 = vmatpush1.msra.mxu0 0.0
    %868 = vmatprep.subr.mxu0 0.0
    %869 = vmatpush1.msra.mxu0 0.0
    %870 = vmatprep.subr.mxu0 0.0
    %871 = vmatpush1.msra.mxu0 0.0
    %872 = vmatprep.subr.mxu0 0.0
    %873 = vmatpush1.msra.mxu0 0.0
    %874 = vmatprep.subr.mxu0 0.0
    %875 = vmatpush1.msra.mxu0 0.0
    %876 = vmatprep.subr.mxu0 0.0
    %877 = vmatpush1.msra.mxu0 0.0
    %878 = vmatprep.subr.mxu0 0.0
    %879 = vmatpush1.msra.mxu0 0.0
    %880 = vmatprep.subr.mxu0 0.0
    %881 = vmatpush1.msra.mxu0 0.0
    %882 = vmatprep.subr.mxu0 0.0
    %883 = vmatpush1.msra.mxu0 0.0
    %884 = vmatprep.subr.mxu0 0.0
    %885 = vmatpush1.msra.mxu0 0.0
    %886 = vmatprep.subr.mxu0 0.0
    %887 = vmatpush1.msra.mxu0 0.0
    %888 = vmatprep.subr.mxu0 0.0
    %889 = vmatpush1.msra.mxu0 0.0
    %890 = vmatprep.subr.mxu0 0.0
    %891 = vmatpush1.msra.mxu0 0.0
    %892 = vmatprep.subr.mxu0 0.0
    %893 = vmatpush1.msra.mxu0 0.0
    %894 = vmatprep.subr.mxu0 0.0
    %895 = vmatpush1.msra.mxu0 0.0
    %896 = vmatprep.subr.mxu0 0.0
    %897 = vmatpush1.msra.mxu0 0.0
    %898 = vmatprep.subr.mxu0 0.0
    %899 = vmatpush1.msra.mxu0 0.0
    %900 = vmatprep.subr.mxu0 0.0
    %901 = vmatpush1.msra.mxu0 0.0
    %902 = vmatprep.subr.mxu0 0.0
    %903 = vmatpush1.msra.mxu0 0.0
    %904 = vmatprep.subr.mxu0 0.0
    %905 = vmatpush1.msra.mxu0 0.0
    %906 = vmatprep.mubr.f32.mxu0 0.0
    %907 = vmatmul.mubr.f32.gmra.mrb[0].mxu0 %v840
    %v908 = vpop.f32.mrb[0].mxu0
    %v909 = vadd.f32 0.0, %v908
    %v910 = vpop.f32.mrb[0].mxu0
    %911 = vdwg.mxu0
    %912 = vrot.lane.b32.xlu0 %v318, 56
    %v913 = vpop.permute.xlu0 %912
    %v916 = vsel %vm330, %v835, 0
    %918 = vmatprep.subr.mxu0 0.0
    %919 = vmatpush1.msra.mxu0 %v913
    %920 = vmatprep.subr.mxu0 0.0
    %921 = vmatpush1.msra.mxu0 0.0
    %922 = vmatprep.subr.mxu0 0.0
    %923 = vmatpush1.msra.mxu0 0.0
    %924 = vmatprep.subr.mxu0 0.0
    %925 = vmatpush1.msra.mxu0 0.0
    %926 = vmatprep.subr.mxu0 0.0
    %927 = vmatpush1.msra.mxu0 0.0
    %928 = vmatprep.subr.mxu0 0.0
    %929 = vmatpush1.msra.mxu0 0.0
    %930 = vmatprep.subr.mxu0 0.0
    %931 = vmatpush1.msra.mxu0 0.0
    %932 = vmatprep.subr.mxu0 0.0
    %933 = vmatpush1.msra.mxu0 0.0
    %934 = vmatprep.subr.mxu0 0.0
    %935 = vmatpush1.msra.mxu0 0.0
    %936 = vmatprep.subr.mxu0 0.0
    %937 = vmatpush1.msra.mxu0 0.0
    %938 = vmatprep.subr.mxu0 0.0
    %939 = vmatpush1.msra.mxu0 0.0
    %940 = vmatprep.subr.mxu0 0.0
    %941 = vmatpush1.msra.mxu0 0.0
    %942 = vmatprep.subr.mxu0 0.0
    %943 = vmatpush1.msra.mxu0 0.0
    %944 = vmatprep.subr.mxu0 0.0
    %945 = vmatpush1.msra.mxu0 0.0
    %946 = vmatprep.subr.mxu0 0.0
    %947 = vmatpush1.msra.mxu0 0.0
    %948 = vmatprep.subr.mxu0 0.0
    %949 = vmatpush1.msra.mxu0 0.0
    %950 = vmatprep.subr.mxu0 0.0
    %951 = vmatpush1.msra.mxu0 0.0
    %952 = vmatprep.subr.mxu0 0.0
    %953 = vmatpush1.msra.mxu0 0.0
    %954 = vmatprep.subr.mxu0 0.0
    %955 = vmatpush1.msra.mxu0 0.0
    %956 = vmatprep.subr.mxu0 0.0
    %957 = vmatpush1.msra.mxu0 0.0
    %958 = vmatprep.subr.mxu0 0.0
    %959 = vmatpush1.msra.mxu0 0.0
    %960 = vmatprep.subr.mxu0 0.0
    %961 = vmatpush1.msra.mxu0 0.0
    %962 = vmatprep.subr.mxu0 0.0
    %963 = vmatpush1.msra.mxu0 0.0
    %964 = vmatprep.subr.mxu0 0.0
    %965 = vmatpush1.msra.mxu0 0.0
    %966 = vmatprep.subr.mxu0 0.0
    %967 = vmatpush1.msra.mxu0 0.0
    %968 = vmatprep.subr.mxu0 0.0
    %969 = vmatpush1.msra.mxu0 0.0
    %970 = vmatprep.subr.mxu0 0.0
    %971 = vmatpush1.msra.mxu0 0.0
    %972 = vmatprep.subr.mxu0 0.0
    %973 = vmatpush1.msra.mxu0 0.0
    %974 = vmatprep.subr.mxu0 0.0
    %975 = vmatpush1.msra.mxu0 0.0
    %976 = vmatprep.subr.mxu0 0.0
    %977 = vmatpush1.msra.mxu0 0.0
    %978 = vmatprep.subr.mxu0 0.0
    %979 = vmatpush1.msra.mxu0 0.0
    %980 = vmatprep.subr.mxu0 0.0
    %981 = vmatpush1.msra.mxu0 0.0
    %982 = vmatprep.mubr.f32.mxu0 0.0
    %983 = vmatmul.mubr.f32.gmra.mrb[0].mxu0 %v916
    %v984 = vpop.f32.mrb[0].mxu0
    %v985 = vadd.f32 0.0, %v984
    %v986 = vpop.f32.mrb[0].mxu0
    %987 = vdwg.mxu0
    %v989 = vsel %vm330, %v909, 0
    %v992 = vsel %vm330, %v985, 0
    %994 = vmatprep.subr.mxu0 0.0
    %995 = vmatpush1.msra.mxu0 %v322
    %996 = vmatprep.subr.mxu0 0.0
    %997 = vmatpush1.msra.mxu0 0.0
    %998 = vmatprep.subr.mxu0 0.0
    %999 = vmatpush1.msra.mxu0 0.0
    %1000 = vmatprep.subr.mxu0 0.0
    %1001 = vmatpush1.msra.mxu0 0.0
    %1002 = vmatprep.subr.mxu0 0.0
    %1003 = vmatpush1.msra.mxu0 0.0
    %1004 = vmatprep.subr.mxu0 0.0
    %1005 = vmatpush1.msra.mxu0 0.0
    %1006 = vmatprep.subr.mxu0 0.0
    %1007 = vmatpush1.msra.mxu0 0.0
    %1008 = vmatprep.subr.mxu0 0.0
    %1009 = vmatpush1.msra.mxu0 0.0
    %1010 = vmatprep.subr.mxu0 0.0
    %1011 = vmatpush1.msra.mxu0 0.0
    %1012 = vmatprep.subr.mxu0 0.0
    %1013 = vmatpush1.msra.mxu0 0.0
    %1014 = vmatprep.subr.mxu0 0.0
    %1015 = vmatpush1.msra.mxu0 0.0
    %1016 = vmatprep.subr.mxu0 0.0
    %1017 = vmatpush1.msra.mxu0 0.0
    %1018 = vmatprep.subr.mxu0 0.0
    %1019 = vmatpush1.msra.mxu0 0.0
    %1020 = vmatprep.subr.mxu0 0.0
    %1021 = vmatpush1.msra.mxu0 0.0
    %1022 = vmatprep.subr.mxu0 0.0
    %1023 = vmatpush1.msra.mxu0 0.0
    %1024 = vmatprep.subr.mxu0 0.0
    %1025 = vmatpush1.msra.mxu0 0.0
    %1026 = vmatprep.subr.mxu0 0.0
    %1027 = vmatpush1.msra.mxu0 0.0
    %1028 = vmatprep.subr.mxu0 0.0
    %1029 = vmatpush1.msra.mxu0 0.0
    %1030 = vmatprep.subr.mxu0 0.0
    %1031 = vmatpush1.msra.mxu0 0.0
    %1032 = vmatprep.subr.mxu0 0.0
    %1033 = vmatpush1.msra.mxu0 0.0
    %1034 = vmatprep.subr.mxu0 0.0
    %1035 = vmatpush1.msra.mxu0 0.0
    %1036 = vmatprep.subr.mxu0 0.0
    %1037 = vmatpush1.msra.mxu0 0.0
    %1038 = vmatprep.subr.mxu0 0.0
    %1039 = vmatpush1.msra.mxu0 0.0
    %1040 = vmatprep.subr.mxu0 0.0
    %1041 = vmatpush1.msra.mxu0 0.0
    %1042 = vmatprep.subr.mxu0 0.0
    %1043 = vmatpush1.msra.mxu0 0.0
    %1044 = vmatprep.subr.mxu0 0.0
    %1045 = vmatpush1.msra.mxu0 0.0
    %1046 = vmatprep.subr.mxu0 0.0
    %1047 = vmatpush1.msra.mxu0 0.0
    %1048 = vmatprep.subr.mxu0 0.0
    %1049 = vmatpush1.msra.mxu0 0.0
    %1050 = vmatprep.subr.mxu0 0.0
    %1051 = vmatpush1.msra.mxu0 0.0
    %1052 = vmatprep.subr.mxu0 0.0
    %1053 = vmatpush1.msra.mxu0 0.0
    %1054 = vmatprep.subr.mxu0 0.0
    %1055 = vmatpush1.msra.mxu0 0.0
    %1056 = vmatprep.subr.mxu0 0.0
    %1057 = vmatpush1.msra.mxu0 0.0
    %1058 = vmatprep.mubr.f32.mxu0 0.0
    %1059 = vmatmul.mubr.f32.gmra.mrb[0].mxu0 %v989
    %v1060 = vpop.f32.mrb[0].mxu0
    %v1061 = vadd.f32 0.0, %v1060
    %v1062 = vpop.f32.mrb[0].mxu0
    %1063 = vmatprep.mubr.f32.mxu0 0.0
    %1064 = vmatmul.mubr.f32.gmra.mrb[0].mxu0 %v992
    %v1065 = vpop.f32.mrb[0].mxu0
    %v1066 = vadd.f32 0.0, %v1065
    %v1067 = vpop.f32.mrb[0].mxu0
    %1068 = vdwg.mxu0
    %v1070 = vsel %vm330, %v579, 0
    %v1073 = vsel %vm330, %v655, 0
    %1075 = vmatprep.subr.mxu0 0.0
    %1076 = vmatpush1.msra.mxu0 %v321
    %1077 = vmatprep.subr.mxu0 0.0
    %1078 = vmatpush1.msra.mxu0 0.0
    %1079 = vmatprep.subr.mxu0 0.0
    %1080 = vmatpush1.msra.mxu0 0.0
    %1081 = vmatprep.subr.mxu0 0.0
    %1082 = vmatpush1.msra.mxu0 0.0
    %1083 = vmatprep.subr.mxu0 0.0
    %1084 = vmatpush1.msra.mxu0 0.0
    %1085 = vmatprep.subr.mxu0 0.0
    %1086 = vmatpush1.msra.mxu0 0.0
    %1087 = vmatprep.subr.mxu0 0.0
    %1088 = vmatpush1.msra.mxu0 0.0
    %1089 = vmatprep.subr.mxu0 0.0
    %1090 = vmatpush1.msra.mxu0 0.0
    %1091 = vmatprep.subr.mxu0 0.0
    %1092 = vmatpush1.msra.mxu0 0.0
    %1093 = vmatprep.subr.mxu0 0.0
    %1094 = vmatpush1.msra.mxu0 0.0
    %1095 = vmatprep.subr.mxu0 0.0
    %1096 = vmatpush1.msra.mxu0 0.0
    %1097 = vmatprep.subr.mxu0 0.0
    %1098 = vmatpush1.msra.mxu0 0.0
    %1099 = vmatprep.subr.mxu0 0.0
    %1100 = vmatpush1.msra.mxu0 0.0
    %1101 = vmatprep.subr.mxu0 0.0
    %1102 = vmatpush1.msra.mxu0 0.0
    %1103 = vmatprep.subr.mxu0 0.0
    %1104 = vmatpush1.msra.mxu0 0.0
    %1105 = vmatprep.subr.mxu0 0.0
    %1106 = vmatpush1.msra.mxu0 0.0
    %1107 = vmatprep.subr.mxu0 0.0
    %1108 = vmatpush1.msra.mxu0 0.0
    %1109 = vmatprep.subr.mxu0 0.0
    %1110 = vmatpush1.msra.mxu0 0.0
    %1111 = vmatprep.subr.mxu0 0.0
    %1112 = vmatpush1.msra.mxu0 0.0
    %1113 = vmatprep.subr.mxu0 0.0
    %1114 = vmatpush1.msra.mxu0 0.0
    %1115 = vmatprep.subr.mxu0 0.0
    %1116 = vmatpush1.msra.mxu0 0.0
    %1117 = vmatprep.subr.mxu0 0.0
    %1118 = vmatpush1.msra.mxu0 0.0
    %1119 = vmatprep.subr.mxu0 0.0
    %1120 = vmatpush1.msra.mxu0 0.0
    %1121 = vmatprep.subr.mxu0 0.0
    %1122 = vmatpush1.msra.mxu0 0.0
    %1123 = vmatprep.subr.mxu0 0.0
    %1124 = vmatpush1.msra.mxu0 0.0
    %1125 = vmatprep.subr.mxu0 0.0
    %1126 = vmatpush1.msra.mxu0 0.0
    %1127 = vmatprep.subr.mxu0 0.0
    %1128 = vmatpush1.msra.mxu0 0.0
    %1129 = vmatprep.subr.mxu0 0.0
    %1130 = vmatpush1.msra.mxu0 0.0
    %1131 = vmatprep.subr.mxu0 0.0
    %1132 = vmatpush1.msra.mxu0 0.0
    %1133 = vmatprep.subr.mxu0 0.0
    %1134 = vmatpush1.msra.mxu0 0.0
    %1135 = vmatprep.subr.mxu0 0.0
    %1136 = vmatpush1.msra.mxu0 0.0
    %1137 = vmatprep.subr.mxu0 0.0
    %1138 = vmatpush1.msra.mxu0 0.0
    %1139 = vmatprep.mubr.f32.mxu0 0.0
    %1140 = vmatmul.mubr.f32.gmra.mrb[0].mxu0 %v1070
    %v1141 = vpop.f32.mrb[0].mxu0
    %v1142 = vadd.f32 %v1061, %v1141
    %v1143 = vpop.f32.mrb[0].mxu0
    %1144 = vmatprep.mubr.f32.mxu0 0.0
    %1145 = vmatmul.mubr.f32.gmra.mrb[0].mxu0 %v1073
    %v1146 = vpop.f32.mrb[0].mxu0
    %v1147 = vadd.f32 %v1066, %v1146
    %v1148 = vpop.f32.mrb[0].mxu0
    %1149 = vdwg.mxu0
    %1150 = vrot.lane.b32.xlu0 %v325, 112
    %v1151 = vpop.permute.xlu0 %1150
    %1152 = vrot.lane.b32.xlu0 %v313, 80
    %v1153 = vpop.permute.xlu0 %1152
    %v1154 = vsel %vm330, %v1151, 0
    %v1156 = vsel %vm330, %v1153, 0
    %1158 = vmatprep.subr.mxu0 0.0
    %1159 = vmatpush1.xpose.msra.mxu0 %v1156
    %1160 = vmatprep.subr.mxu0 0.0
    %1161 = vmatpush1.xpose.msra.mxu0 0.0
    %1162 = vmatprep.subr.mxu0 0.0
    %1163 = vmatpush1.xpose.msra.mxu0 0.0
    %1164 = vmatprep.subr.mxu0 0.0
    %1165 = vmatpush1.xpose.msra.mxu0 0.0
    %1166 = vmatprep.subr.mxu0 0.0
    %1167 = vmatpush1.xpose.msra.mxu0 0.0
    %1168 = vmatprep.subr.mxu0 0.0
    %1169 = vmatpush1.xpose.msra.mxu0 0.0
    %1170 = vmatprep.subr.mxu0 0.0
    %1171 = vmatpush1.xpose.msra.mxu0 0.0
    %1172 = vmatprep.subr.mxu0 0.0
    %1173 = vmatpush1.xpose.msra.mxu0 0.0
    %1174 = vmatprep.subr.mxu0 0.0
    %1175 = vmatpush1.xpose.msra.mxu0 0.0
    %1176 = vmatprep.subr.mxu0 0.0
    %1177 = vmatpush1.xpose.msra.mxu0 0.0
    %1178 = vmatprep.subr.mxu0 0.0
    %1179 = vmatpush1.xpose.msra.mxu0 0.0
    %1180 = vmatprep.subr.mxu0 0.0
    %1181 = vmatpush1.xpose.msra.mxu0 0.0
    %1182 = vmatprep.subr.mxu0 0.0
    %1183 = vmatpush1.xpose.msra.mxu0 0.0
    %1184 = vmatprep.subr.mxu0 0.0
    %1185 = vmatpush1.xpose.msra.mxu0 0.0
    %1186 = vmatprep.subr.mxu0 0.0
    %1187 = vmatpush1.xpose.msra.mxu0 0.0
    %1188 = vmatprep.subr.mxu0 0.0
    %1189 = vmatpush1.xpose.msra.mxu0 0.0
    %1190 = vmatprep.subr.mxu0 0.0
    %1191 = vmatpush1.xpose.msra.mxu0 0.0
    %1192 = vmatprep.subr.mxu0 0.0
    %1193 = vmatpush1.xpose.msra.mxu0 0.0
    %1194 = vmatprep.subr.mxu0 0.0
    %1195 = vmatpush1.xpose.msra.mxu0 0.0
    %1196 = vmatprep.subr.mxu0 0.0
    %1197 = vmatpush1.xpose.msra.mxu0 0.0
    %1198 = vmatprep.subr.mxu0 0.0
    %1199 = vmatpush1.xpose.msra.mxu0 0.0
    %1200 = vmatprep.subr.mxu0 0.0
    %1201 = vmatpush1.xpose.msra.mxu0 0.0
    %1202 = vmatprep.subr.mxu0 0.0
    %1203 = vmatpush1.xpose.msra.mxu0 0.0
    %1204 = vmatprep.subr.mxu0 0.0
    %1205 = vmatpush1.xpose.msra.mxu0 0.0
    %1206 = vmatprep.subr.mxu0 0.0
    %1207 = vmatpush1.xpose.msra.mxu0 0.0
    %1208 = vmatprep.subr.mxu0 0.0
    %1209 = vmatpush1.xpose.msra.mxu0 0.0
    %1210 = vmatprep.subr.mxu0 0.0
    %1211 = vmatpush1.xpose.msra.mxu0 0.0
    %1212 = vmatprep.subr.mxu0 0.0
    %1213 = vmatpush1.xpose.msra.mxu0 0.0
    %1214 = vmatprep.subr.mxu0 0.0
    %1215 = vmatpush1.xpose.msra.mxu0 0.0
    %1216 = vmatprep.subr.mxu0 0.0
    %1217 = vmatpush1.xpose.msra.mxu0 0.0
    %1218 = vmatprep.subr.mxu0 0.0
    %1219 = vmatpush1.xpose.msra.mxu0 0.0
    %1220 = vmatprep.subr.mxu0 0.0
    %1221 = vmatpush1.xpose.msra.mxu0 0.0
    %1222 = vmatprep.mubr.f32.mxu0 0.0
    %1223 = vmatmul.mubr.f32.gmra.mrb[0].mxu0 %v1154
    %v1224 = vpop.f32.mrb[0].mxu0
    %v1225 = vadd.f32 0.0, %v1224
    %v1226 = vpop.f32.mrb[0].mxu0
    %1227 = vdwg.mxu0
    %1228 = vrot.lane.b32.xlu0 %v326, 112
    %v1229 = vpop.permute.xlu0 %1228
    %1230 = vrot.lane.b32.xlu0 %v318, 80
    %v1231 = vpop.permute.xlu0 %1230
    %v1232 = vsel %vm330, %v1229, 0
    %v1234 = vsel %vm330, %v1231, 0
    %1236 = vmatprep.subr.mxu0 0.0
    %1237 = vmatpush1.xpose.msra.mxu0 %v1234
    %1238 = vmatprep.subr.mxu0 0.0
    %1239 = vmatpush1.xpose.msra.mxu0 0.0
    %1240 = vmatprep.subr.mxu0 0.0
    %1241 = vmatpush1.xpose.msra.mxu0 0.0
    %1242 = vmatprep.subr.mxu0 0.0
    %1243 = vmatpush1.xpose.msra.mxu0 0.0
    %1244 = vmatprep.subr.mxu0 0.0
    %1245 = vmatpush1.xpose.msra.mxu0 0.0
    %1246 = vmatprep.subr.mxu0 0.0
    %1247 = vmatpush1.xpose.msra.mxu0 0.0
    %1248 = vmatprep.subr.mxu0 0.0
    %1249 = vmatpush1.xpose.msra.mxu0 0.0
    %1250 = vmatprep.subr.mxu0 0.0
    %1251 = vmatpush1.xpose.msra.mxu0 0.0
    %1252 = vmatprep.subr.mxu0 0.0
    %1253 = vmatpush1.xpose.msra.mxu0 0.0
    %1254 = vmatprep.subr.mxu0 0.0
    %1255 = vmatpush1.xpose.msra.mxu0 0.0
    %1256 = vmatprep.subr.mxu0 0.0
    %1257 = vmatpush1.xpose.msra.mxu0 0.0
    %1258 = vmatprep.subr.mxu0 0.0
    %1259 = vmatpush1.xpose.msra.mxu0 0.0
    %1260 = vmatprep.subr.mxu0 0.0
    %1261 = vmatpush1.xpose.msra.mxu0 0.0
    %1262 = vmatprep.subr.mxu0 0.0
    %1263 = vmatpush1.xpose.msra.mxu0 0.0
    %1264 = vmatprep.subr.mxu0 0.0
    %1265 = vmatpush1.xpose.msra.mxu0 0.0
    %1266 = vmatprep.subr.mxu0 0.0
    %1267 = vmatpush1.xpose.msra.mxu0 0.0
    %1268 = vmatprep.subr.mxu0 0.0
    %1269 = vmatpush1.xpose.msra.mxu0 0.0
    %1270 = vmatprep.subr.mxu0 0.0
    %1271 = vmatpush1.xpose.msra.mxu0 0.0
    %1272 = vmatprep.subr.mxu0 0.0
    %1273 = vmatpush1.xpose.msra.mxu0 0.0
    %1274 = vmatprep.subr.mxu0 0.0
    %1275 = vmatpush1.xpose.msra.mxu0 0.0
    %1276 = vmatprep.subr.mxu0 0.0
    %1277 = vmatpush1.xpose.msra.mxu0 0.0
    %1278 = vmatprep.subr.mxu0 0.0
    %1279 = vmatpush1.xpose.msra.mxu0 0.0
    %1280 = vmatprep.subr.mxu0 0.0
    %1281 = vmatpush1.xpose.msra.mxu0 0.0
    %1282 = vmatprep.subr.mxu0 0.0
    %1283 = vmatpush1.xpose.msra.mxu0 0.0
    %1284 = vmatprep.subr.mxu0 0.0
    %1285 = vmatpush1.xpose.msra.mxu0 0.0
    %1286 = vmatprep.subr.mxu0 0.0
    %1287 = vmatpush1.xpose.msra.mxu0 0.0
    %1288 = vmatprep.subr.mxu0 0.0
    %1289 = vmatpush1.xpose.msra.mxu0 0.0
    %1290 = vmatprep.subr.mxu0 0.0
    %1291 = vmatpush1.xpose.msra.mxu0 0.0
    %1292 = vmatprep.subr.mxu0 0.0
    %1293 = vmatpush1.xpose.msra.mxu0 0.0
    %1294 = vmatprep.subr.mxu0 0.0
    %1295 = vmatpush1.xpose.msra.mxu0 0.0
    %1296 = vmatprep.subr.mxu0 0.0
    %1297 = vmatpush1.xpose.msra.mxu0 0.0
    %1298 = vmatprep.subr.mxu0 0.0
    %1299 = vmatpush1.xpose.msra.mxu0 0.0
    %1300 = vmatprep.mubr.f32.mxu0 0.0
    %1301 = vmatmul.mubr.f32.gmra.mrb[0].mxu0 %v1232
    %v1302 = vpop.f32.mrb[0].mxu0
    %v1303 = vadd.f32 0.0, %v1302
    %v1304 = vpop.f32.mrb[0].mxu0
    %1305 = vdwg.mxu0
    %v1306 = vsel %vm330, %v1225, -inf
    %1307 = vmax.xlane.f32.xlu0 %v1306
    %v1308 = vpop.xlane.xlu0 %1307
    %v1309 = vsel %vm330, %v1303, -inf
    %1310 = vmax.xlane.f32.xlu0 %v1309
    %v1311 = vpop.xlane.xlu0 %1310
    %v1312 = vsub.f32 %v1225, %v1308
    %v1313 = vsub.f32 %v1303, %v1311
    %v1314 = vmul.f32 %v1312, 1.442695
    %v1315 = vpow.pop %v1314
    %v1316 = vmul.f32 %v1313, 1.442695
    %v1317 = vpow.pop %v1316
    %v1318 = vsel %vm330, %v1315, 0.0
    %1319 = vadd.xlane.f32.xlu0 %v1318
    %v1320 = vpop.xlane.xlu0 %1319
    %v1321 = vsel %vm330, %v1317, 0.0
    %1322 = vadd.xlane.f32.xlu0 %v1321
    %v1323 = vpop.xlane.xlu0 %1322
    %v1324 = vrcp.pop %v1320
    %v1325 = vmul.f32 %v1315, %v1324
    %v1326 = vrcp.pop %v1323
    %v1327 = vmul.f32 %v1317, %v1326
    %1328 = vrot.lane.b32.xlu0 %v313, 48
    %v1329 = vpop.permute.xlu0 %1328
    %v1332 = vsel %vm330, %v1325, 0
    %1334 = vmatprep.subr.mxu0 0.0
    %1335 = vmatpush1.msra.mxu0 %v1329
    %1336 = vmatprep.subr.mxu0 0.0
    %1337 = vmatpush1.msra.mxu0 0.0
    %1338 = vmatprep.subr.mxu0 0.0
    %1339 = vmatpush1.msra.mxu0 0.0
    %1340 = vmatprep.subr.mxu0 0.0
    %1341 = vmatpush1.msra.mxu0 0.0
    %1342 = vmatprep.subr.mxu0 0.0
    %1343 = vmatpush1.msra.mxu0 0.0
    %1344 = vmatprep.subr.mxu0 0.0
    %1345 = vmatpush1.msra.mxu0 0.0
    %1346 = vmatprep.subr.mxu0 0.0
    %1347 = vmatpush1.msra.mxu0 0.0
    %1348 = vmatprep.subr.mxu0 0.0
    %1349 = vmatpush1.msra.mxu0 0.0
    %1350 = vmatprep.subr.mxu0 0.0
    %1351 = vmatpush1.msra.mxu0 0.0
    %1352 = vmatprep.subr.mxu0 0.0
    %1353 = vmatpush1.msra.mxu0 0.0
    %1354 = vmatprep.subr.mxu0 0.0
    %1355 = vmatpush1.msra.mxu0 0.0
    %1356 = vmatprep.subr.mxu0 0.0
    %1357 = vmatpush1.msra.mxu0 0.0
    %1358 = vmatprep.subr.mxu0 0.0
    %1359 = vmatpush1.msra.mxu0 0.0
    %1360 = vmatprep.subr.mxu0 0.0
    %1361 = vmatpush1.msra.mxu0 0.0
    %1362 = vmatprep.subr.mxu0 0.0
    %1363 = vmatpush1.msra.mxu0 0.0
    %1364 = vmatprep.subr.mxu0 0.0
    %1365 = vmatpush1.msra.mxu0 0.0
    %1366 = vmatprep.subr.mxu0 0.0
    %1367 = vmatpush1.msra.mxu0 0.0
    %1368 = vmatprep.subr.mxu0 0.0
    %1369 = vmatpush1.msra.mxu0 0.0
    %1370 = vmatprep.subr.mxu0 0.0
    %1371 = vmatpush1.msra.mxu0 0.0
    %1372 = vmatprep.subr.mxu0 0.0
    %1373 = vmatpush1.msra.mxu0 0.0
    %1374 = vmatprep.subr.mxu0 0.0
    %1375 = vmatpush1.msra.mxu0 0.0
    %1376 = vmatprep.subr.mxu0 0.0
    %1377 = vmatpush1.msra.mxu0 0.0
    %1378 = vmatprep.subr.mxu0 0.0
    %1379 = vmatpush1.msra.mxu0 0.0
    %1380 = vmatprep.subr.mxu0 0.0
    %1381 = vmatpush1.msra.mxu0 0.0
    %1382 = vmatprep.subr.mxu0 0.0
    %1383 = vmatpush1.msra.mxu0 0.0
    %1384 = vmatprep.subr.mxu0 0.0
    %1385 = vmatpush1.msra.mxu0 0.0
    %1386 = vmatprep.subr.mxu0 0.0
    %1387 = vmatpush1.msra.mxu0 0.0
    %1388 = vmatprep.subr.mxu0 0.0
    %1389 = vmatpush1.msra.mxu0 0.0
    %1390 = vmatprep.subr.mxu0 0.0
    %1391 = vmatpush1.msra.mxu0 0.0
    %1392 = vmatprep.subr.mxu0 0.0
    %1393 = vmatpush1.msra.mxu0 0.0
    %1394 = vmatprep.subr.mxu0 0.0
    %1395 = vmatpush1.msra.mxu0 0.0
    %1396 = vmatprep.subr.mxu0 0.0
    %1397 = vmatpush1.msra.mxu0 0.0
    %1398 = vmatprep.mubr.f32.mxu0 0.0
    %1399 = vmatmul.mubr.f32.gmra.mrb[0].mxu0 %v1332
    %v1400 = vpop.f32.mrb[0].mxu0
    %v1401 = vadd.f32 0.0, %v1400
    %v1402 = vpop.f32.mrb[0].mxu0
    %1403 = vdwg.mxu0
    %1404 = vrot.lane.b32.xlu0 %v318, 48
    %v1405 = vpop.permute.xlu0 %1404
    %v1408 = vsel %vm330, %v1327, 0
    %1410 = vmatprep.subr.mxu0 0.0
    %1411 = vmatpush1.msra.mxu0 %v1405
    %1412 = vmatprep.subr.mxu0 0.0
    %1413 = vmatpush1.msra.mxu0 0.0
    %1414 = vmatprep.subr.mxu0 0.0
    %1415 = vmatpush1.msra.mxu0 0.0
    %1416 = vmatprep.subr.mxu0 0.0
    %1417 = vmatpush1.msra.mxu0 0.0
    %1418 = vmatprep.subr.mxu0 0.0
    %1419 = vmatpush1.msra.mxu0 0.0
    %1420 = vmatprep.subr.mxu0 0.0
    %1421 = vmatpush1.msra.mxu0 0.0
    %1422 = vmatprep.subr.mxu0 0.0
    %1423 = vmatpush1.msra.mxu0 0.0
    %1424 = vmatprep.subr.mxu0 0.0
    %1425 = vmatpush1.msra.mxu0 0.0
    %1426 = vmatprep.subr.mxu0 0.0
    %1427 = vmatpush1.msra.mxu0 0.0
    %1428 = vmatprep.subr.mxu0 0.0
    %1429 = vmatpush1.msra.mxu0 0.0
    %1430 = vmatprep.subr.mxu0 0.0
    %1431 = vmatpush1.msra.mxu0 0.0
    %1432 = vmatprep.subr.mxu0 0.0
    %1433 = vmatpush1.msra.mxu0 0.0
    %1434 = vmatprep.subr.mxu0 0.0
    %1435 = vmatpush1.msra.mxu0 0.0
    %1436 = vmatprep.subr.mxu0 0.0
    %1437 = vmatpush1.msra.mxu0 0.0
    %1438 = vmatprep.subr.mxu0 0.0
    %1439 = vmatpush1.msra.mxu0 0.0
    %1440 = vmatprep.subr.mxu0 0.0
    %1441 = vmatpush1.msra.mxu0 0.0
    %1442 = vmatprep.subr.mxu0 0.0
    %1443 = vmatpush1.msra.mxu0 0.0
    %1444 = vmatprep.subr.mxu0 0.0
    %1445 = vmatpush1.msra.mxu0 0.0
    %1446 = vmatprep.subr.mxu0 0.0
    %1447 = vmatpush1.msra.mxu0 0.0
    %1448 = vmatprep.subr.mxu0 0.0
    %1449 = vmatpush1.msra.mxu0 0.0
    %1450 = vmatprep.subr.mxu0 0.0
    %1451 = vmatpush1.msra.mxu0 0.0
    %1452 = vmatprep.subr.mxu0 0.0
    %1453 = vmatpush1.msra.mxu0 0.0
    %1454 = vmatprep.subr.mxu0 0.0
    %1455 = vmatpush1.msra.mxu0 0.0
    %1456 = vmatprep.subr.mxu0 0.0
    %1457 = vmatpush1.msra.mxu0 0.0
    %1458 = vmatprep.subr.mxu0 0.0
    %1459 = vmatpush1.msra.mxu0 0.0
    %1460 = vmatprep.subr.mxu0 0.0
    %1461 = vmatpush1.msra.mxu0 0.0
    %1462 = vmatprep.subr.mxu0 0.0
    %1463 = vmatpush1.msra.mxu0 0.0
    %1464 = vmatprep.subr.mxu0 0.0
    %1465 = vmatpush1.msra.mxu0 0.0
    %1466 = vmatprep.subr.mxu0 0.0
    %1467 = vmatpush1.msra.mxu0 0.0
    %1468 = vmatprep.subr.mxu0 0.0
    %1469 = vmatpush1.msra.mxu0 0.0
    %1470 = vmatprep.subr.mxu0 0.0
    %1471 = vmatpush1.msra.mxu0 0.0
    %1472 = vmatprep.subr.mxu0 0.0
    %1473 = vmatpush1.msra.mxu0 0.0
    %1474 = vmatprep.mubr.f32.mxu0 0.0
    %1475 = vmatmul.mubr.f32.gmra.mrb[0].mxu0 %v1408
    %v1476 = vpop.f32.mrb[0].mxu0
    %v1477 = vadd.f32 0.0, %v1476
    %v1478 = vpop.f32.mrb[0].mxu0
    %1479 = vdwg.mxu0
    %v1481 = vsel %vm330, %v1401, 0
    %v1484 = vsel %vm330, %v1477, 0
    %1486 = vmatprep.subr.mxu0 0.0
    %1487 = vmatpush1.msra.mxu0 %v323
    %1488 = vmatprep.subr.mxu0 0.0
    %1489 = vmatpush1.msra.mxu0 0.0
    %1490 = vmatprep.subr.mxu0 0.0
    %1491 = vmatpush1.msra.mxu0 0.0
    %1492 = vmatprep.subr.mxu0 0.0
    %1493 = vmatpush1.msra.mxu0 0.0
    %1494 = vmatprep.subr.mxu0 0.0
    %1495 = vmatpush1.msra.mxu0 0.0
    %1496 = vmatprep.subr.mxu0 0.0
    %1497 = vmatpush1.msra.mxu0 0.0
    %1498 = vmatprep.subr.mxu0 0.0
    %1499 = vmatpush1.msra.mxu0 0.0
    %1500 = vmatprep.subr.mxu0 0.0
    %1501 = vmatpush1.msra.mxu0 0.0
    %1502 = vmatprep.subr.mxu0 0.0
    %1503 = vmatpush1.msra.mxu0 0.0
    %1504 = vmatprep.subr.mxu0 0.0
    %1505 = vmatpush1.msra.mxu0 0.0
    %1506 = vmatprep.subr.mxu0 0.0
    %1507 = vmatpush1.msra.mxu0 0.0
    %1508 = vmatprep.subr.mxu0 0.0
    %1509 = vmatpush1.msra.mxu0 0.0
    %1510 = vmatprep.subr.mxu0 0.0
    %1511 = vmatpush1.msra.mxu0 0.0
    %1512 = vmatprep.subr.mxu0 0.0
    %1513 = vmatpush1.msra.mxu0 0.0
    %1514 = vmatprep.subr.mxu0 0.0
    %1515 = vmatpush1.msra.mxu0 0.0
    %1516 = vmatprep.subr.mxu0 0.0
    %1517 = vmatpush1.msra.mxu0 0.0
    %1518 = vmatprep.subr.mxu0 0.0
    %1519 = vmatpush1.msra.mxu0 0.0
    %1520 = vmatprep.subr.mxu0 0.0
    %1521 = vmatpush1.msra.mxu0 0.0
    %1522 = vmatprep.subr.mxu0 0.0
    %1523 = vmatpush1.msra.mxu0 0.0
    %1524 = vmatprep.subr.mxu0 0.0
    %1525 = vmatpush1.msra.mxu0 0.0
    %1526 = vmatprep.subr.mxu0 0.0
    %1527 = vmatpush1.msra.mxu0 0.0
    %1528 = vmatprep.subr.mxu0 0.0
    %1529 = vmatpush1.msra.mxu0 0.0
    %1530 = vmatprep.subr.mxu0 0.0
    %1531 = vmatpush1.msra.mxu0 0.0
    %1532 = vmatprep.subr.mxu0 0.0
    %1533 = vmatpush1.msra.mxu0 0.0
    %1534 = vmatprep.subr.mxu0 0.0
    %1535 = vmatpush1.msra.mxu0 0.0
    %1536 = vmatprep.subr.mxu0 0.0
    %1537 = vmatpush1.msra.mxu0 0.0
    %1538 = vmatprep.subr.mxu0 0.0
    %1539 = vmatpush1.msra.mxu0 0.0
    %1540 = vmatprep.subr.mxu0 0.0
    %1541 = vmatpush1.msra.mxu0 0.0
    %1542 = vmatprep.subr.mxu0 0.0
    %1543 = vmatpush1.msra.mxu0 0.0
    %1544 = vmatprep.subr.mxu0 0.0
    %1545 = vmatpush1.msra.mxu0 0.0
    %1546 = vmatprep.subr.mxu0 0.0
    %1547 = vmatpush1.msra.mxu0 0.0
    %1548 = vmatprep.subr.mxu0 0.0
    %1549 = vmatpush1.msra.mxu0 0.0
    %1550 = vmatprep.mubr.f32.mxu0 0.0
    %1551 = vmatmul.mubr.f32.gmra.mrb[0].mxu0 %v1481
    %v1552 = vpop.f32.mrb[0].mxu0
    %v1553 = vadd.f32 0.0, %v1552
    %v1554 = vpop.f32.mrb[0].mxu0
    %1555 = vmatprep.mubr.f32.mxu0 0.0
    %1556 = vmatmul.mubr.f32.gmra.mrb[0].mxu0 %v1484
    %v1557 = vpop.f32.mrb[0].mxu0
    %v1558 = vadd.f32 0.0, %v1557
    %v1559 = vpop.f32.mrb[0].mxu0
    %1560 = vdwg.mxu0
    %v1561 = vadd.f32 %v1142, %v1553
    %v1562 = vadd.f32 %v1147, %v1558
    %1563 = vrot.lane.b32.xlu0 %v325, 104
    %v1564 = vpop.permute.xlu0 %1563
    %1565 = vrot.lane.b32.xlu0 %v313, 72
    %v1566 = vpop.permute.xlu0 %1565
    %v1567 = vsel %vm330, %v1564, 0
    %v1569 = vsel %vm330, %v1566, 0
    %1571 = vmatprep.subr.mxu0 0.0
    %1572 = vmatpush1.xpose.msra.mxu0 %v1569
    %1573 = vmatprep.subr.mxu0 0.0
    %1574 = vmatpush1.xpose.msra.mxu0 0.0
    %1575 = vmatprep.subr.mxu0 0.0
    %1576 = vmatpush1.xpose.msra.mxu0 0.0
    %1577 = vmatprep.subr.mxu0 0.0
    %1578 = vmatpush1.xpose.msra.mxu0 0.0
    %1579 = vmatprep.subr.mxu0 0.0
    %1580 = vmatpush1.xpose.msra.mxu0 0.0
    %1581 = vmatprep.subr.mxu0 0.0
    %1582 = vmatpush1.xpose.msra.mxu0 0.0
    %1583 = vmatprep.subr.mxu0 0.0
    %1584 = vmatpush1.xpose.msra.mxu0 0.0
    %1585 = vmatprep.subr.mxu0 0.0
    %1586 = vmatpush1.xpose.msra.mxu0 0.0
    %1587 = vmatprep.subr.mxu0 0.0
    %1588 = vmatpush1.xpose.msra.mxu0 0.0
    %1589 = vmatprep.subr.mxu0 0.0
    %1590 = vmatpush1.xpose.msra.mxu0 0.0
    %1591 = vmatprep.subr.mxu0 0.0
    %1592 = vmatpush1.xpose.msra.mxu0 0.0
    %1593 = vmatprep.subr.mxu0 0.0
    %1594 = vmatpush1.xpose.msra.mxu0 0.0
    %1595 = vmatprep.subr.mxu0 0.0
    %1596 = vmatpush1.xpose.msra.mxu0 0.0
    %1597 = vmatprep.subr.mxu0 0.0
    %1598 = vmatpush1.xpose.msra.mxu0 0.0
    %1599 = vmatprep.subr.mxu0 0.0
    %1600 = vmatpush1.xpose.msra.mxu0 0.0
    %1601 = vmatprep.subr.mxu0 0.0
    %1602 = vmatpush1.xpose.msra.mxu0 0.0
    %1603 = vmatprep.subr.mxu0 0.0
    %1604 = vmatpush1.xpose.msra.mxu0 0.0
    %1605 = vmatprep.subr.mxu0 0.0
    %1606 = vmatpush1.xpose.msra.mxu0 0.0
    %1607 = vmatprep.subr.mxu0 0.0
    %1608 = vmatpush1.xpose.msra.mxu0 0.0
    %1609 = vmatprep.subr.mxu0 0.0
    %1610 = vmatpush1.xpose.msra.mxu0 0.0
    %1611 = vmatprep.subr.mxu0 0.0
    %1612 = vmatpush1.xpose.msra.mxu0 0.0
    %1613 = vmatprep.subr.mxu0 0.0
    %1614 = vmatpush1.xpose.msra.mxu0 0.0
    %1615 = vmatprep.subr.mxu0 0.0
    %1616 = vmatpush1.xpose.msra.mxu0 0.0
    %1617 = vmatprep.subr.mxu0 0.0
    %1618 = vmatpush1.xpose.msra.mxu0 0.0
    %1619 = vmatprep.subr.mxu0 0.0
    %1620 = vmatpush1.xpose.msra.mxu0 0.0
    %1621 = vmatprep.subr.mxu0 0.0
    %1622 = vmatpush1.xpose.msra.mxu0 0.0
    %1623 = vmatprep.subr.mxu0 0.0
    %1624 = vmatpush1.xpose.msra.mxu0 0.0
    %1625 = vmatprep.subr.mxu0 0.0
    %1626 = vmatpush1.xpose.msra.mxu0 0.0
    %1627 = vmatprep.subr.mxu0 0.0
    %1628 = vmatpush1.xpose.msra.mxu0 0.0
    %1629 = vmatprep.subr.mxu0 0.0
    %1630 = vmatpush1.xpose.msra.mxu0 0.0
    %1631 = vmatprep.subr.mxu0 0.0
    %1632 = vmatpush1.xpose.msra.mxu0 0.0
    %1633 = vmatprep.subr.mxu0 0.0
    %1634 = vmatpush1.xpose.msra.mxu0 0.0
    %1635 = vmatprep.mubr.f32.mxu0 0.0
    %1636 = vmatmul.mubr.f32.gmra.mrb[0].mxu0 %v1567
    %v1637 = vpop.f32.mrb[0].mxu0
    %v1638 = vadd.f32 0.0, %v1637
    %v1639 = vpop.f32.mrb[0].mxu0
    %1640 = vdwg.mxu0
    %1641 = vrot.lane.b32.xlu0 %v326, 104
    %v1642 = vpop.permute.xlu0 %1641
    %1643 = vrot.lane.b32.xlu0 %v318, 72
    %v1644 = vpop.permute.xlu0 %1643
    %v1645 = vsel %vm330, %v1642, 0
    %v1647 = vsel %vm330, %v1644, 0
    %1649 = vmatprep.subr.mxu0 0.0
    %1650 = vmatpush1.xpose.msra.mxu0 %v1647
    %1651 = vmatprep.subr.mxu0 0.0
    %1652 = vmatpush1.xpose.msra.mxu0 0.0
    %1653 = vmatprep.subr.mxu0 0.0
    %1654 = vmatpush1.xpose.msra.mxu0 0.0
    %1655 = vmatprep.subr.mxu0 0.0
    %1656 = vmatpush1.xpose.msra.mxu0 0.0
    %1657 = vmatprep.subr.mxu0 0.0
    %1658 = vmatpush1.xpose.msra.mxu0 0.0
    %1659 = vmatprep.subr.mxu0 0.0
    %1660 = vmatpush1.xpose.msra.mxu0 0.0
    %1661 = vmatprep.subr.mxu0 0.0
    %1662 = vmatpush1.xpose.msra.mxu0 0.0
    %1663 = vmatprep.subr.mxu0 0.0
    %1664 = vmatpush1.xpose.msra.mxu0 0.0
    %1665 = vmatprep.subr.mxu0 0.0
    %1666 = vmatpush1.xpose.msra.mxu0 0.0
    %1667 = vmatprep.subr.mxu0 0.0
    %1668 = vmatpush1.xpose.msra.mxu0 0.0
    %1669 = vmatprep.subr.mxu0 0.0
    %1670 = vmatpush1.xpose.msra.mxu0 0.0
    %1671 = vmatprep.subr.mxu0 0.0
    %1672 = vmatpush1.xpose.msra.mxu0 0.0
    %1673 = vmatprep.subr.mxu0 0.0
    %1674 = vmatpush1.xpose.msra.mxu0 0.0
    %1675 = vmatprep.subr.mxu0 0.0
    %1676 = vmatpush1.xpose.msra.mxu0 0.0
    %1677 = vmatprep.subr.mxu0 0.0
    %1678 = vmatpush1.xpose.msra.mxu0 0.0
    %1679 = vmatprep.subr.mxu0 0.0
    %1680 = vmatpush1.xpose.msra.mxu0 0.0
    %1681 = vmatprep.subr.mxu0 0.0
    %1682 = vmatpush1.xpose.msra.mxu0 0.0
    %1683 = vmatprep.subr.mxu0 0.0
    %1684 = vmatpush1.xpose.msra.mxu0 0.0
    %1685 = vmatprep.subr.mxu0 0.0
    %1686 = vmatpush1.xpose.msra.mxu0 0.0
    %1687 = vmatprep.subr.mxu0 0.0
    %1688 = vmatpush1.xpose.msra.mxu0 0.0
    %1689 = vmatprep.subr.mxu0 0.0
    %1690 = vmatpush1.xpose.msra.mxu0 0.0
    %1691 = vmatprep.subr.mxu0 0.0
    %1692 = vmatpush1.xpose.msra.mxu0 0.0
    %1693 = vmatprep.subr.mxu0 0.0
    %1694 = vmatpush1.xpose.msra.mxu0 0.0
    %1695 = vmatprep.subr.mxu0 0.0
    %1696 = vmatpush1.xpose.msra.mxu0 0.0
    %1697 = vmatprep.subr.mxu0 0.0
    %1698 = vmatpush1.xpose.msra.mxu0 0.0
    %1699 = vmatprep.subr.mxu0 0.0
    %1700 = vmatpush1.xpose.msra.mxu0 0.0
    %1701 = vmatprep.subr.mxu0 0.0
    %1702 = vmatpush1.xpose.msra.mxu0 0.0
    %1703 = vmatprep.subr.mxu0 0.0
    %1704 = vmatpush1.xpose.msra.mxu0 0.0
    %1705 = vmatprep.subr.mxu0 0.0
    %1706 = vmatpush1.xpose.msra.mxu0 0.0
    %1707 = vmatprep.subr.mxu0 0.0
    %1708 = vmatpush1.xpose.msra.mxu0 0.0
    %1709 = vmatprep.subr.mxu0 0.0
    %1710 = vmatpush1.xpose.msra.mxu0 0.0
    %1711 = vmatprep.subr.mxu0 0.0
    %1712 = vmatpush1.xpose.msra.mxu0 0.0
    %1713 = vmatprep.mubr.f32.mxu0 0.0
    %1714 = vmatmul.mubr.f32.gmra.mrb[0].mxu0 %v1645
    %v1715 = vpop.f32.mrb[0].mxu0
    %v1716 = vadd.f32 0.0, %v1715
    %v1717 = vpop.f32.mrb[0].mxu0
    %1718 = vdwg.mxu0
    %v1719 = vsel %vm330, %v1638, -inf
    %1720 = vmax.xlane.f32.xlu0 %v1719
    %v1721 = vpop.xlane.xlu0 %1720
    %v1722 = vsel %vm330, %v1716, -inf
    %1723 = vmax.xlane.f32.xlu0 %v1722
    %v1724 = vpop.xlane.xlu0 %1723
    %v1725 = vsub.f32 %v1638, %v1721
    %v1726 = vsub.f32 %v1716, %v1724
    %v1727 = vmul.f32 %v1725, 1.442695
    %v1728 = vpow.pop %v1727
    %v1729 = vmul.f32 %v1726, 1.442695
    %v1730 = vpow.pop %v1729
    %v1731 = vsel %vm330, %v1728, 0.0
    %1732 = vadd.xlane.f32.xlu0 %v1731
    %v1733 = vpop.xlane.xlu0 %1732
    %v1734 = vsel %vm330, %v1730, 0.0
    %1735 = vadd.xlane.f32.xlu0 %v1734
    %v1736 = vpop.xlane.xlu0 %1735
    %v1737 = vrcp.pop %v1733
    %v1738 = vmul.f32 %v1728, %v1737
    %v1739 = vrcp.pop %v1736
    %v1740 = vmul.f32 %v1730, %v1739
    %1741 = vrot.lane.b32.xlu0 %v313, 40
    %v1742 = vpop.permute.xlu0 %1741
    %v1745 = vsel %vm330, %v1738, 0
    %1747 = vmatprep.subr.mxu0 0.0
    %1748 = vmatpush1.msra.mxu0 %v1742
    %1749 = vmatprep.subr.mxu0 0.0
    %1750 = vmatpush1.msra.mxu0 0.0
    %1751 = vmatprep.subr.mxu0 0.0
    %1752 = vmatpush1.msra.mxu0 0.0
    %1753 = vmatprep.subr.mxu0 0.0
    %1754 = vmatpush1.msra.mxu0 0.0
    %1755 = vmatprep.subr.mxu0 0.0
    %1756 = vmatpush1.msra.mxu0 0.0
    %1757 = vmatprep.subr.mxu0 0.0
    %1758 = vmatpush1.msra.mxu0 0.0
    %1759 = vmatprep.subr.mxu0 0.0
    %1760 = vmatpush1.msra.mxu0 0.0
    %1761 = vmatprep.subr.mxu0 0.0
    %1762 = vmatpush1.msra.mxu0 0.0
    %1763 = vmatprep.subr.mxu0 0.0
    %1764 = vmatpush1.msra.mxu0 0.0
    %1765 = vmatprep.subr.mxu0 0.0
    %1766 = vmatpush1.msra.mxu0 0.0
    %1767 = vmatprep.subr.mxu0 0.0
    %1768 = vmatpush1.msra.mxu0 0.0
    %1769 = vmatprep.subr.mxu0 0.0
    %1770 = vmatpush1.msra.mxu0 0.0
    %1771 = vmatprep.subr.mxu0 0.0
    %1772 = vmatpush1.msra.mxu0 0.0
    %1773 = vmatprep.subr.mxu0 0.0
    %1774 = vmatpush1.msra.mxu0 0.0
    %1775 = vmatprep.subr.mxu0 0.0
    %1776 = vmatpush1.msra.mxu0 0.0
    %1777 = vmatprep.subr.mxu0 0.0
    %1778 = vmatpush1.msra.mxu0 0.0
    %1779 = vmatprep.subr.mxu0 0.0
    %1780 = vmatpush1.msra.mxu0 0.0
    %1781 = vmatprep.subr.mxu0 0.0
    %1782 = vmatpush1.msra.mxu0 0.0
    %1783 = vmatprep.subr.mxu0 0.0
    %1784 = vmatpush1.msra.mxu0 0.0
    %1785 = vmatprep.subr.mxu0 0.0
    %1786 = vmatpush1.msra.mxu0 0.0
    %1787 = vmatprep.subr.mxu0 0.0
    %1788 = vmatpush1.msra.mxu0 0.0
    %1789 = vmatprep.subr.mxu0 0.0
    %1790 = vmatpush1.msra.mxu0 0.0
    %1791 = vmatprep.subr.mxu0 0.0
    %1792 = vmatpush1.msra.mxu0 0.0
    %1793 = vmatprep.subr.mxu0 0.0
    %1794 = vmatpush1.msra.mxu0 0.0
    %1795 = vmatprep.subr.mxu0 0.0
    %1796 = vmatpush1.msra.mxu0 0.0
    %1797 = vmatprep.subr.mxu0 0.0
    %1798 = vmatpush1.msra.mxu0 0.0
    %1799 = vmatprep.subr.mxu0 0.0
    %1800 = vmatpush1.msra.mxu0 0.0
    %1801 = vmatprep.subr.mxu0 0.0
    %1802 = vmatpush1.msra.mxu0 0.0
    %1803 = vmatprep.subr.mxu0 0.0
    %1804 = vmatpush1.msra.mxu0 0.0
    %1805 = vmatprep.subr.mxu0 0.0
    %1806 = vmatpush1.msra.mxu0 0.0
    %1807 = vmatprep.subr.mxu0 0.0
    %1808 = vmatpush1.msra.mxu0 0.0
    %1809 = vmatprep.subr.mxu0 0.0
    %1810 = vmatpush1.msra.mxu0 0.0
    %1811 = vmatprep.mubr.f32.mxu0 0.0
    %1812 = vmatmul.mubr.f32.gmra.mrb[0].mxu0 %v1745
    %v1813 = vpop.f32.mrb[0].mxu0
    %v1814 = vadd.f32 0.0, %v1813
    %v1815 = vpop.f32.mrb[0].mxu0
    %1816 = vdwg.mxu0
    %1817 = vrot.lane.b32.xlu0 %v318, 40
    %v1818 = vpop.permute.xlu0 %1817
    %v1821 = vsel %vm330, %v1740, 0
    %1823 = vmatprep.subr.mxu0 0.0
    %1824 = vmatpush1.msra.mxu0 %v1818
    %1825 = vmatprep.subr.mxu0 0.0
    %1826 = vmatpush1.msra.mxu0 0.0
    %1827 = vmatprep.subr.mxu0 0.0
    %1828 = vmatpush1.msra.mxu0 0.0
    %1829 = vmatprep.subr.mxu0 0.0
    %1830 = vmatpush1.msra.mxu0 0.0
    %1831 = vmatprep.subr.mxu0 0.0
    %1832 = vmatpush1.msra.mxu0 0.0
    %1833 = vmatprep.subr.mxu0 0.0
    %1834 = vmatpush1.msra.mxu0 0.0
    %1835 = vmatprep.subr.mxu0 0.0
    %1836 = vmatpush1.msra.mxu0 0.0
    %1837 = vmatprep.subr.mxu0 0.0
    %1838 = vmatpush1.msra.mxu0 0.0
    %1839 = vmatprep.subr.mxu0 0.0
    %1840 = vmatpush1.msra.mxu0 0.0
    %1841 = vmatprep.subr.mxu0 0.0
    %1842 = vmatpush1.msra.mxu0 0.0
    %1843 = vmatprep.subr.mxu0 0.0
    %1844 = vmatpush1.msra.mxu0 0.0
    %1845 = vmatprep.subr.mxu0 0.0
    %1846 = vmatpush1.msra.mxu0 0.0
    %1847 = vmatprep.subr.mxu0 0.0
    %1848 = vmatpush1.msra.mxu0 0.0
    %1849 = vmatprep.subr.mxu0 0.0
    %1850 = vmatpush1.msra.mxu0 0.0
    %1851 = vmatprep.subr.mxu0 0.0
    %1852 = vmatpush1.msra.mxu0 0.0
    %1853 = vmatprep.subr.mxu0 0.0
    %1854 = vmatpush1.msra.mxu0 0.0
    %1855 = vmatprep.subr.mxu0 0.0
    %1856 = vmatpush1.msra.mxu0 0.0
    %1857 = vmatprep.subr.mxu0 0.0
    %1858 = vmatpush1.msra.mxu0 0.0
    %1859 = vmatprep.subr.mxu0 0.0
    %1860 = vmatpush1.msra.mxu0 0.0
    %1861 = vmatprep.subr.mxu0 0.0
    %1862 = vmatpush1.msra.mxu0 0.0
    %1863 = vmatprep.subr.mxu0 0.0
    %1864 = vmatpush1.msra.mxu0 0.0
    %1865 = vmatprep.subr.mxu0 0.0
    %1866 = vmatpush1.msra.mxu0 0.0
    %1867 = vmatprep.subr.mxu0 0.0
    %1868 = vmatpush1.msra.mxu0 0.0
    %1869 = vmatprep.subr.mxu0 0.0
    %1870 = vmatpush1.msra.mxu0 0.0
    %1871 = vmatprep.subr.mxu0 0.0
    %1872 = vmatpush1.msra.mxu0 0.0
    %1873 = vmatprep.subr.mxu0 0.0
    %1874 = vmatpush1.msra.mxu0 0.0
    %1875 = vmatprep.subr.mxu0 0.0
    %1876 = vmatpush1.msra.mxu0 0.0
    %1877 = vmatprep.subr.mxu0 0.0
    %1878 = vmatpush1.msra.mxu0 0.0
    %1879 = vmatprep.subr.mxu0 0.0
    %1880 = vmatpush1.msra.mxu0 0.0
    %1881 = vmatprep.subr.mxu0 0.0
    %1882 = vmatpush1.msra.mxu0 0.0
    %1883 = vmatprep.subr.mxu0 0.0
    %1884 = vmatpush1.msra.mxu0 0.0
    %1885 = vmatprep.subr.mxu0 0.0
    %1886 = vmatpush1.msra.mxu0 0.0
    %1887 = vmatprep.mubr.f32.mxu0 0.0
    %1888 = vmatmul.mubr.f32.gmra.mrb[0].mxu0 %v1821
    %v1889 = vpop.f32.mrb[0].mxu0
    %v1890 = vadd.f32 0.0, %v1889
    %v1891 = vpop.f32.mrb[0].mxu0
    %1892 = vdwg.mxu0
    %v1894 = vsel %vm330, %v1814, 0
    %v1897 = vsel %vm330, %v1890, 0
    %1899 = vmatprep.subr.mxu0 0.0
    %1900 = vmatpush1.msra.mxu0 %v324
    %1901 = vmatprep.subr.mxu0 0.0
    %1902 = vmatpush1.msra.mxu0 0.0
    %1903 = vmatprep.subr.mxu0 0.0
    %1904 = vmatpush1.msra.mxu0 0.0
    %1905 = vmatprep.subr.mxu0 0.0
    %1906 = vmatpush1.msra.mxu0 0.0
    %1907 = vmatprep.subr.mxu0 0.0
    %1908 = vmatpush1.msra.mxu0 0.0
    %1909 = vmatprep.subr.mxu0 0.0
    %1910 = vmatpush1.msra.mxu0 0.0
    %1911 = vmatprep.subr.mxu0 0.0
    %1912 = vmatpush1.msra.mxu0 0.0
    %1913 = vmatprep.subr.mxu0 0.0
    %1914 = vmatpush1.msra.mxu0 0.0
    %1915 = vmatprep.subr.mxu0 0.0
    %1916 = vmatpush1.msra.mxu0 0.0
    %1917 = vmatprep.subr.mxu0 0.0
    %1918 = vmatpush1.msra.mxu0 0.0
    %1919 = vmatprep.subr.mxu0 0.0
    %1920 = vmatpush1.msra.mxu0 0.0
    %1921 = vmatprep.subr.mxu0 0.0
    %1922 = vmatpush1.msra.mxu0 0.0
    %1923 = vmatprep.subr.mxu0 0.0
    %1924 = vmatpush1.msra.mxu0 0.0
    %1925 = vmatprep.subr.mxu0 0.0
    %1926 = vmatpush1.msra.mxu0 0.0
    %1927 = vmatprep.subr.mxu0 0.0
    %1928 = vmatpush1.msra.mxu0 0.0
    %1929 = vmatprep.subr.mxu0 0.0
    %1930 = vmatpush1.msra.mxu0 0.0
    %1931 = vmatprep.subr.mxu0 0.0
    %1932 = vmatpush1.msra.mxu0 0.0
    %1933 = vmatprep.subr.mxu0 0.0
    %1934 = vmatpush1.msra.mxu0 0.0
    %1935 = vmatprep.subr.mxu0 0.0
    %1936 = vmatpush1.msra.mxu0 0.0
    %1937 = vmatprep.subr.mxu0 0.0
    %1938 = vmatpush1.msra.mxu0 0.0
    %1939 = vmatprep.subr.mxu0 0.0
    %1940 = vmatpush1.msra.mxu0 0.0
    %1941 = vmatprep.subr.mxu0 0.0
    %1942 = vmatpush1.msra.mxu0 0.0
    %1943 = vmatprep.subr.mxu0 0.0
    %1944 = vmatpush1.msra.mxu0 0.0
    %1945 = vmatprep.subr.mxu0 0.0
    %1946 = vmatpush1.msra.mxu0 0.0
    %1947 = vmatprep.subr.mxu0 0.0
    %1948 = vmatpush1.msra.mxu0 0.0
    %1949 = vmatprep.subr.mxu0 0.0
    %1950 = vmatpush1.msra.mxu0 0.0
    %1951 = vmatprep.subr.mxu0 0.0
    %1952 = vmatpush1.msra.mxu0 0.0
    %1953 = vmatprep.subr.mxu0 0.0
    %1954 = vmatpush1.msra.mxu0 0.0
    %1955 = vmatprep.subr.mxu0 0.0
    %1956 = vmatpush1.msra.mxu0 0.0
    %1957 = vmatprep.subr.mxu0 0.0
    %1958 = vmatpush1.msra.mxu0 0.0
    %1959 = vmatprep.subr.mxu0 0.0
    %1960 = vmatpush1.msra.mxu0 0.0
    %1961 = vmatprep.subr.mxu0 0.0
    %1962 = vmatpush1.msra.mxu0 0.0
    %1963 = vmatprep.mubr.f32.mxu0 0.0
    %1964 = vmatmul.mubr.f32.gmra.mrb[0].mxu0 %v1894
    %v1965 = vpop.f32.mrb[0].mxu0
    %v1966 = vadd.f32 0.0, %v1965
    %v1967 = vpop.f32.mrb[0].mxu0
    %1968 = vmatprep.mubr.f32.mxu0 0.0
    %1969 = vmatmul.mubr.f32.gmra.mrb[0].mxu0 %v1897
    %v1970 = vpop.f32.mrb[0].mxu0
    %v1971 = vadd.f32 0.0, %v1970
    %v1972 = vpop.f32.mrb[0].mxu0
    %1973 = vdwg.mxu0
    %v1974 = vadd.f32 %v1561, %v1966
    %v1975 = vadd.f32 %v1562, %v1971
    %v1976 = vld [vmem:[%s6] sm:$0x1]
    %v1978 = vlaneseq
    %v1979 = vshrl.u32 %v1978, 7
    %v1980 = vsub.s32 0, %v1979
    %v1981 = vrot.slane %v1976, %v1980
    %v1983 = vadd.f32 %v1974, %v1981
    %v1984 = vadd.f32 %v1975, %v1981
    %v1985 = vadd.f32 %v220, %v1983
    %v1986 = vadd.f32 %v225, %v1984
    %v1987 = vld [vmem:[%s7] sm:$0x1]
    %v1988 = vld [vmem:[%s8] sm:$0x1]
    %v1989 = vsel %vm239, %v1985, 0.0
    %1990 = vadd.xlane.f32.xlu0 %v1989
    %v1991 = vpop.xlane.xlu0 %1990
    %v1992 = vsel %vm239, %v1986, 0.0
    %1993 = vadd.xlane.f32.xlu0 %v1992
    %v1994 = vpop.xlane.xlu0 %1993
    %v1995 = vrcp.pop 32.0
    %v1996 = vmul.f32 %v1991, %v1995
    %v1997 = vmul.f32 %v1994, %v1995
    %v1998 = vsub.f32 %v1985, %v1996
    %v1999 = vsub.f32 %v1986, %v1997
    %v2000 = vmul.f32 %v1998, %v1998
    %v2001 = vmul.f32 %v1999, %v1999
    %v2002 = vsel %vm239, %v2000, 0.0
    %2003 = vadd.xlane.f32.xlu0 %v2002
    %v2004 = vpop.xlane.xlu0 %2003
    %v2005 = vsel %vm239, %v2001, 0.0
    %2006 = vadd.xlane.f32.xlu0 %v2005
    %v2007 = vpop.xlane.xlu0 %2006
    %v2008 = vmul.f32 %v2004, %v1995
    %v2009 = vmul.f32 %v2007, %v1995
    %v2010 = vadd.f32 %v2008, 1e-05
    %v2011 = vadd.f32 %v2009, 1e-05
    %v2012 = vrsqrt.pop %v2010
    %v2013 = vrsqrt.pop %v2011
    %v2014 = vmul.f32 %v1998, %v2012
    %v2015 = vmul.f32 %v1999, %v2013
    %v2017 = vlaneseq
    %v2018 = vshrl.u32 %v2017, 7
    %v2019 = vsub.s32 0, %v2018
    %v2020 = vrot.slane %v1987, %v2019
    %v2022 = vmul.f32 %v2014, %v2020
    %v2023 = vmul.f32 %v2015, %v2020
    %v2025 = vlaneseq
    %v2026 = vshrl.u32 %v2025, 7
    %v2027 = vsub.s32 0, %v2026
    %v2028 = vrot.slane %v1988, %v2027
    %v2030 = vadd.f32 %v2022, %v2028
    %v2031 = vadd.f32 %v2023, %v2028
    %v2032 = vld [vmem:[%s9] sm:$0xff]
    %v2033 = vld [vmem:[%s9 + $0x8] sm:$0xff]
    %v2034 = vld [vmem:[%s9 + $0x10] sm:$0xff]
    %v2035 = vld [vmem:[%s9 + $0x18] sm:$0xff]
    %v2036 = vld [vmem:[#allocation5] sm:$0x1]
    %v2038 = vlaneseq
    %v2039 = vshrl.u32 %v2038, 7
    %v2040 = vsub.s32 0, %v2039
    %v2041 = vrot.slane %v2036, %v2040
    %v2044 = vsel %vm239, %v2030, 0
    %v2047 = vsel %vm239, %v2031, 0
    %2049 = vmatprep.subr.mxu0 0.0
    %2050 = vmatpush1.msra.mxu0 %v2032
    %2051 = vmatprep.subr.mxu0 0.0
    %2052 = vmatpush1.msra.mxu0 %v2033
    %2053 = vmatprep.subr.mxu0 0.0
    %2054 = vmatpush1.msra.mxu0 %v2034
    %2055 = vmatprep.subr.mxu0 0.0
    %2056 = vmatpush1.msra.mxu0 %v2035
    %2057 = vmatprep.subr.mxu0 0.0
    %2058 = vmatpush1.msra.mxu0 0.0
    %2059 = vmatprep.subr.mxu0 0.0
    %2060 = vmatpush1.msra.mxu0 0.0
    %2061 = vmatprep.subr.mxu0 0.0
    %2062 = vmatpush1.msra.mxu0 0.0
    %2063 = vmatprep.subr.mxu0 0.0
    %2064 = vmatpush1.msra.mxu0 0.0
    %2065 = vmatprep.subr.mxu0 0.0
    %2066 = vmatpush1.msra.mxu0 0.0
    %2067 = vmatprep.subr.mxu0 0.0
    %2068 = vmatpush1.msra.mxu0 0.0
    %2069 = vmatprep.subr.mxu0 0.0
    %2070 = vmatpush1.msra.mxu0 0.0
    %2071 = vmatprep.subr.mxu0 0.0
    %2072 = vmatpush1.msra.mxu0 0.0
    %2073 = vmatprep.subr.mxu0 0.0
    %2074 = vmatpush1.msra.mxu0 0.0
    %2075 = vmatprep.subr.mxu0 0.0
    %2076 = vmatpush1.msra.mxu0 0.0
    %2077 = vmatprep.subr.mxu0 0.0
    %2078 = vmatpush1.msra.mxu0 0.0
    %2079 = vmatprep.subr.mxu0 0.0
    %2080 = vmatpush1.msra.mxu0 0.0
    %2081 = vmatprep.subr.mxu0 0.0
    %2082 = vmatpush1.msra.mxu0 0.0
    %2083 = vmatprep.subr.mxu0 0.0
    %2084 = vmatpush1.msra.mxu0 0.0
    %2085 = vmatprep.subr.mxu0 0.0
    %2086 = vmatpush1.msra.mxu0 0.0
    %2087 = vmatprep.subr.mxu0 0.0
    %2088 = vmatpush1.msra.mxu0 0.0
    %2089 = vmatprep.subr.mxu0 0.0
    %2090 = vmatpush1.msra.mxu0 0.0
    %2091 = vmatprep.subr.mxu0 0.0
    %2092 = vmatpush1.msra.mxu0 0.0
    %2093 = vmatprep.subr.mxu0 0.0
    %2094 = vmatpush1.msra.mxu0 0.0
    %2095 = vmatprep.subr.mxu0 0.0
    %2096 = vmatpush1.msra.mxu0 0.0
    %2097 = vmatprep.subr.mxu0 0.0
    %2098 = vmatpush1.msra.mxu0 0.0
    %2099 = vmatprep.subr.mxu0 0.0
    %2100 = vmatpush1.msra.mxu0 0.0
    %2101 = vmatprep.subr.mxu0 0.0
    %2102 = vmatpush1.msra.mxu0 0.0
    %2103 = vmatprep.subr.mxu0 0.0
    %2104 = vmatpush1.msra.mxu0 0.0
    %2105 = vmatprep.subr.mxu0 0.0
    %2106 = vmatpush1.msra.mxu0 0.0
    %2107 = vmatprep.subr.mxu0 0.0
    %2108 = vmatpush1.msra.mxu0 0.0
    %2109 = vmatprep.subr.mxu0 0.0
    %2110 = vmatpush1.msra.mxu0 0.0
    %2111 = vmatprep.subr.mxu0 0.0
    %2112 = vmatpush1.msra.mxu0 0.0
    %2113 = vmatprep.mubr.f32.mxu0 0.0
    %2114 = vmatmul.mubr.f32.gmra.mrb[0].mxu0 %v2044
    %v2115 = vpop.f32.mrb[0].mxu0
    %v2116 = vadd.f32 %v2041, %v2115
    %v2117 = vpop.f32.mrb[0].mxu0
    %2118 = vmatprep.mubr.f32.mxu0 0.0
    %2119 = vmatmul.mubr.f32.gmra.mrb[0].mxu0 %v2047
    %v2120 = vpop.f32.mrb[0].mxu0
    %v2121 = vadd.f32 %v2041, %v2120
    %v2122 = vpop.f32.mrb[0].mxu0
    %2123 = vdwg.mxu0
    %v2124 = vmax.f32 %v2116, 0.0
    %v2125 = vmax.f32 %v2121, 0.0
    %v2126 = vld [vmem:[%s11] sm:$0xff]
    %v2127 = vld [vmem:[%s11 + $0x8] sm:$0xff]
    %v2128 = vld [vmem:[%s11 + $0x10] sm:$0xff]
    %v2129 = vld [vmem:[%s11 + $0x18] sm:$0xff]
    %v2130 = vld [vmem:[%s11 + $0x20] sm:$0xff]
    %v2131 = vld [vmem:[%s11 + $0x28] sm:$0xff]
    %v2132 = vld [vmem:[%s11 + $0x30] sm:$0xff]
    %v2133 = vld [vmem:[%s11 + $0x38] sm:$0xff]
    %v2134 = vld [vmem:[#allocation7] sm:$0x1]
    %v2136 = vlaneseq
    %v2137 = vshrl.u32 %v2136, 7
    %v2138 = vsub.s32 0, %v2137
    %v2139 = vrot.slane %v2134, %v2138
    %vm2141 = vcmask 523264
    %v2143 = vsel %vm2141, %v2124, 0
    %v2146 = vsel %vm2141, %v2125, 0
    %2148 = vmatprep.subr.mxu0 0.0
    %2149 = vmatpush1.msra.mxu0 %v2126
    %2150 = vmatprep.subr.mxu0 0.0
    %2151 = vmatpush1.msra.mxu0 %v2127
    %2152 = vmatprep.subr.mxu0 0.0
    %2153 = vmatpush1.msra.mxu0 %v2128
    %2154 = vmatprep.subr.mxu0 0.0
    %2155 = vmatpush1.msra.mxu0 %v2129
    %2156 = vmatprep.subr.mxu0 0.0
    %2157 = vmatpush1.msra.mxu0 %v2130
    %2158 = vmatprep.subr.mxu0 0.0
    %2159 = vmatpush1.msra.mxu0 %v2131
    %2160 = vmatprep.subr.mxu0 0.0
    %2161 = vmatpush1.msra.mxu0 %v2132
    %2162 = vmatprep.subr.mxu0 0.0
    %2163 = vmatpush1.msra.mxu0 %v2133
    %2164 = vmatprep.subr.mxu0 0.0
    %2165 = vmatpush1.msra.mxu0 0.0
    %2166 = vmatprep.subr.mxu0 0.0
    %2167 = vmatpush1.msra.mxu0 0.0
    %2168 = vmatprep.subr.mxu0 0.0
    %2169 = vmatpush1.msra.mxu0 0.0
    %2170 = vmatprep.subr.mxu0 0.0
    %2171 = vmatpush1.msra.mxu0 0.0
    %2172 = vmatprep.subr.mxu0 0.0
    %2173 = vmatpush1.msra.mxu0 0.0
    %2174 = vmatprep.subr.mxu0 0.0
    %2175 = vmatpush1.msra.mxu0 0.0
    %2176 = vmatprep.subr.mxu0 0.0
    %2177 = vmatpush1.msra.mxu0 0.0
    %2178 = vmatprep.subr.mxu0 0.0
    %2179 = vmatpush1.msra.mxu0 0.0
    %2180 = vmatprep.subr.mxu0 0.0
    %2181 = vmatpush1.msra.mxu0 0.0
    %2182 = vmatprep.subr.mxu0 0.0
    %2183 = vmatpush1.msra.mxu0 0.0
    %2184 = vmatprep.subr.mxu0 0.0
    %2185 = vmatpush1.msra.mxu0 0.0
    %2186 = vmatprep.subr.mxu0 0.0
    %2187 = vmatpush1.msra.mxu0 0.0
    %2188 = vmatprep.subr.mxu0 0.0
    %2189 = vmatpush1.msra.mxu0 0.0
    %2190 = vmatprep.subr.mxu0 0.0
    %2191 = vmatpush1.msra.mxu0 0.0
    %2192 = vmatprep.subr.mxu0 0.0
    %2193 = vmatpush1.msra.mxu0 0.0
    %2194 = vmatprep.subr.mxu0 0.0
    %2195 = vmatpush1.msra.mxu0 0.0
    %2196 = vmatprep.subr.mxu0 0.0
    %2197 = vmatpush1.msra.mxu0 0.0
    %2198 = vmatprep.subr.mxu0 0.0
    %2199 = vmatpush1.msra.mxu0 0.0
    %2200 = vmatprep.subr.mxu0 0.0
    %2201 = vmatpush1.msra.mxu0 0.0
    %2202 = vmatprep.subr.mxu0 0.0
    %2203 = vmatpush1.msra.mxu0 0.0
    %2204 = vmatprep.subr.mxu0 0.0
    %2205 = vmatpush1.msra.mxu0 0.0
    %2206 = vmatprep.subr.mxu0 0.0
    %2207 = vmatpush1.msra.mxu0 0.0
    %2208 = vmatprep.subr.mxu0 0.0
    %2209 = vmatpush1.msra.mxu0 0.0
    %2210 = vmatprep.subr.mxu0 0.0
    %2211 = vmatpush1.msra.mxu0 0.0
    %2212 = vmatprep.mubr.f32.mxu0 0.0
    %2213 = vmatmul.mubr.f32.gmra.mrb[0].mxu0 %v2143
    %v2214 = vpop.f32.mrb[0].mxu0
    %v2215 = vadd.f32 %v2139, %v2214
    %v2216 = vpop.f32.mrb[0].mxu0
    %2217 = vmatprep.mubr.f32.mxu0 0.0
    %2218 = vmatmul.mubr.f32.gmra.mrb[0].mxu0 %v2146
    %v2219 = vpop.f32.mrb[0].mxu0
    %v2220 = vadd.f32 %v2139, %v2219
    %v2221 = vpop.f32.mrb[0].mxu0
    %2222 = vdwg.mxu0
    %v2223 = vadd.f32 %v2030, %v2215
    %v2224 = vadd.f32 %v2031, %v2220
    %v2225 = vld [vmem:[#allocation8] sm:$0x1]
    %v2226 = vld [vmem:[#allocation10] sm:$0x1]
    %v2227 = vsel %vm239, %v2223, 0.0
    %2228 = vadd.xlane.f32.xlu0 %v2227
    %v2229 = vpop.xlane.xlu0 %2228
    %v2230 = vsel %vm239, %v2224, 0.0
    %2231 = vadd.xlane.f32.xlu0 %v2230
    %v2232 = vpop.xlane.xlu0 %2231
    %v2233 = vmul.f32 %v2229, %v1995
    %v2234 = vmul.f32 %v2232, %v1995
    %v2235 = vsub.f32 %v2223, %v2233
    %v2236 = vsub.f32 %v2224, %v2234
    %v2237 = vmul.f32 %v2235, %v2235
    %v2238 = vmul.f32 %v2236, %v2236
    %v2239 = vsel %vm239, %v2237, 0.0
    %2240 = vadd.xlane.f32.xlu0 %v2239
    %v2241 = vpop.xlane.xlu0 %2240
    %v2242 = vsel %vm239, %v2238, 0.0
    %2243 = vadd.xlane.f32.xlu0 %v2242
    %v2244 = vpop.xlane.xlu0 %2243
    %v2245 = vmul.f32 %v2241, %v1995
    %v2246 = vmul.f32 %v2244, %v1995
    %v2247 = vadd.f32 %v2245, 1e-05
    %v2248 = vadd.f32 %v2246, 1e-05
    %v2249 = vrsqrt.pop %v2247
    %v2250 = vrsqrt.pop %v2248
    %v2251 = vmul.f32 %v2235, %v2249
    %v2252 = vmul.f32 %v2236, %v2250
    %v2254 = vlaneseq
    %v2255 = vshrl.u32 %v2254, 7
    %v2256 = vsub.s32 0, %v2255
    %v2257 = vrot.slane %v2225, %v2256
    %v2259 = vmul.f32 %v2251, %v2257
    %v2260 = vmul.f32 %v2252, %v2257
    %v2262 = vlaneseq
    %v2263 = vshrl.u32 %v2262, 7
    %v2264 = vsub.s32 0, %v2263
    %v2265 = vrot.slane %v2226, %v2264
    %v2267 = vadd.f32 %v2259, %v2265
    %v2268 = vadd.f32 %v2260, %v2265
    %s2269 = scalar_lea.vmem %s3, 32
    %v2270 = vld [vmem:[%s2269] sm:$0xff]
    %v2271 = vld [vmem:[%s2269 + $0x8] sm:$0xff]
    %v2272 = vld [vmem:[%s2269 + $0x10] sm:$0xff]
    %v2273 = vld [vmem:[%s2269 + $0x18] sm:$0xff]
    %s2274 = scalar_lea.vmem %s4, 1
    %v2275 = vld [vmem:[%s2274] sm:$0x1]
    %v2277 = vlaneseq
    %v2278 = vshrl.u32 %v2277, 7
    %v2279 = vsub.s32 0, %v2278
    %v2280 = vrot.slane %v2275, %v2279
    %v2283 = vsel %vm239, %v2267, 0
    %v2286 = vsel %vm239, %v2268, 0
    %2288 = vmatprep.subr.mxu0 0.0
    %2289 = vmatpush1.msra.mxu0 %v2270
    %2290 = vmatprep.subr.mxu0 0.0
    %2291 = vmatpush1.msra.mxu0 %v2271
    %2292 = vmatprep.subr.mxu0 0.0
    %2293 = vmatpush1.msra.mxu0 %v2272
    %2294 = vmatprep.subr.mxu0 0.0
    %2295 = vmatpush1.msra.mxu0 %v2273
    %2296 = vmatprep.subr.mxu0 0.0
    %2297 = vmatpush1.msra.mxu0 0.0
    %2298 = vmatprep.subr.mxu0 0.0
    %2299 = vmatpush1.msra.mxu0 0.0
    %2300 = vmatprep.subr.mxu0 0.0
    %2301 = vmatpush1.msra.mxu0 0.0
    %2302 = vmatprep.subr.mxu0 0.0
    %2303 = vmatpush1.msra.mxu0 0.0
    %2304 = vmatprep.subr.mxu0 0.0
    %2305 = vmatpush1.msra.mxu0 0.0
    %2306 = vmatprep.subr.mxu0 0.0
    %2307 = vmatpush1.msra.mxu0 0.0
    %2308 = vmatprep.subr.mxu0 0.0
    %2309 = vmatpush1.msra.mxu0 0.0
    %2310 = vmatprep.subr.mxu0 0.0
    %2311 = vmatpush1.msra.mxu0 0.0
    %2312 = vmatprep.subr.mxu0 0.0
    %2313 = vmatpush1.msra.mxu0 0.0
    %2314 = vmatprep.subr.mxu0 0.0
    %2315 = vmatpush1.msra.mxu0 0.0
    %2316 = vmatprep.subr.mxu0 0.0
    %2317 = vmatpush1.msra.mxu0 0.0
    %2318 = vmatprep.subr.mxu0 0.0
    %2319 = vmatpush1.msra.mxu0 0.0
    %2320 = vmatprep.subr.mxu0 0.0
    %2321 = vmatpush1.msra.mxu0 0.0
    %2322 = vmatprep.subr.mxu0 0.0
    %2323 = vmatpush1.msra.mxu0 0.0
    %2324 = vmatprep.subr.mxu0 0.0
    %2325 = vmatpush1.msra.mxu0 0.0
    %2326 = vmatprep.subr.mxu0 0.0
    %2327 = vmatpush1.msra.mxu0 0.0
    %2328 = vmatprep.subr.mxu0 0.0
    %2329 = vmatpush1.msra.mxu0 0.0
    %2330 = vmatprep.subr.mxu0 0.0
    %2331 = vmatpush1.msra.mxu0 0.0
    %2332 = vmatprep.subr.mxu0 0.0
    %2333 = vmatpush1.msra.mxu0 0.0
    %2334 = vmatprep.subr.mxu0 0.0
    %2335 = vmatpush1.msra.mxu0 0.0
    %2336 = vmatprep.subr.mxu0 0.0
    %2337 = vmatpush1.msra.mxu0 0.0
    %2338 = vmatprep.subr.mxu0 0.0
    %2339 = vmatpush1.msra.mxu0 0.0
    %2340 = vmatprep.subr.mxu0 0.0
    %2341 = vmatpush1.msra.mxu0 0.0
    %2342 = vmatprep.subr.mxu0 0.0
    %2343 = vmatpush1.msra.mxu0 0.0
    %2344 = vmatprep.subr.mxu0 0.0
    %2345 = vmatpush1.msra.mxu0 0.0
    %2346 = vmatprep.subr.mxu0 0.0
    %2347 = vmatpush1.msra.mxu0 0.0
    %2348 = vmatprep.subr.mxu0 0.0
    %2349 = vmatpush1.msra.mxu0 0.0
    %2350 = vmatprep.subr.mxu0 0.0
    %2351 = vmatpush1.msra.mxu0 0.0
    %2352 = vmatprep.mubr.f32.mxu0 0.0
    %2353 = vmatmul.mubr.f32.gmra.mrb[0].mxu0 %v2283
    %v2354 = vpop.f32.mrb[0].mxu0
    %v2355 = vadd.f32 %v2280, %v2354
    %v2356 = vpop.f32.mrb[0].mxu0
    %2357 = vmatprep.mubr.f32.mxu0 0.0
    %2358 = vmatmul.mubr.f32.gmra.mrb[0].mxu0 %v2286
    %v2359 = vpop.f32.mrb[0].mxu0
    %v2360 = vadd.f32 %v2280, %v2359
    %v2361 = vpop.f32.mrb[0].mxu0
    %2362 = vdwg.mxu0
    %s2363 = scalar_lea.vmem %s5, 32
    %v2364 = vld [vmem:[%s2363] sm:$0xff]
    %v2365 = vld [vmem:[%s2363 + $0x8] sm:$0xff]
    %v2366 = vld [vmem:[%s2363 + $0x10] sm:$0xff]
    %v2367 = vld [vmem:[%s2363 + $0x18] sm:$0xff]
    %v2368 = vmul.f32 %v2355, 0.35355338
    %v2369 = vmul.f32 %v2360, 0.35355338
    %2371 = vrot.lane.b32.xlu0 %v2355, 96
    %v2372 = vpop.permute.xlu0 %2371
    %v2374 = vsel %vm330, %v2368, 0
    %v2376 = vsel %vm330, %v2372, 0
    %2378 = vmatprep.subr.mxu0 0.0
    %2379 = vmatpush1.xpose.msra.mxu0 %v2376
    %2380 = vmatprep.subr.mxu0 0.0
    %2381 = vmatpush1.xpose.msra.mxu0 0.0
    %2382 = vmatprep.subr.mxu0 0.0
    %2383 = vmatpush1.xpose.msra.mxu0 0.0
    %2384 = vmatprep.subr.mxu0 0.0
    %2385 = vmatpush1.xpose.msra.mxu0 0.0
    %2386 = vmatprep.subr.mxu0 0.0
    %2387 = vmatpush1.xpose.msra.mxu0 0.0
    %2388 = vmatprep.subr.mxu0 0.0
    %2389 = vmatpush1.xpose.msra.mxu0 0.0
    %2390 = vmatprep.subr.mxu0 0.0
    %2391 = vmatpush1.xpose.msra.mxu0 0.0
    %2392 = vmatprep.subr.mxu0 0.0
    %2393 = vmatpush1.xpose.msra.mxu0 0.0
    %2394 = vmatprep.subr.mxu0 0.0
    %2395 = vmatpush1.xpose.msra.mxu0 0.0
    %2396 = vmatprep.subr.mxu0 0.0
    %2397 = vmatpush1.xpose.msra.mxu0 0.0
    %2398 = vmatprep.subr.mxu0 0.0
    %2399 = vmatpush1.xpose.msra.mxu0 0.0
    %2400 = vmatprep.subr.mxu0 0.0
    %2401 = vmatpush1.xpose.msra.mxu0 0.0
    %2402 = vmatprep.subr.mxu0 0.0
    %2403 = vmatpush1.xpose.msra.mxu0 0.0
    %2404 = vmatprep.subr.mxu0 0.0
    %2405 = vmatpush1.xpose.msra.mxu0 0.0
    %2406 = vmatprep.subr.mxu0 0.0
    %2407 = vmatpush1.xpose.msra.mxu0 0.0
    %2408 = vmatprep.subr.mxu0 0.0
    %2409 = vmatpush1.xpose.msra.mxu0 0.0
    %2410 = vmatprep.subr.mxu0 0.0
    %2411 = vmatpush1.xpose.msra.mxu0 0.0
    %2412 = vmatprep.subr.mxu0 0.0
    %2413 = vmatpush1.xpose.msra.mxu0 0.0
    %2414 = vmatprep.subr.mxu0 0.0
    %2415 = vmatpush1.xpose.msra.mxu0 0.0
    %2416 = vmatprep.subr.mxu0 0.0
    %2417 = vmatpush1.xpose.msra.mxu0 0.0
    %2418 = vmatprep.subr.mxu0 0.0
    %2419 = vmatpush1.xpose.msra.mxu0 0.0
    %2420 = vmatprep.subr.mxu0 0.0
    %2421 = vmatpush1.xpose.msra.mxu0 0.0
    %2422 = vmatprep.subr.mxu0 0.0
    %2423 = vmatpush1.xpose.msra.mxu0 0.0
    %2424 = vmatprep.subr.mxu0 0.0
    %2425 = vmatpush1.xpose.msra.mxu0 0.0
    %2426 = vmatprep.subr.mxu0 0.0
    %2427 = vmatpush1.xpose.msra.mxu0 0.0
    %2428 = vmatprep.subr.mxu0 0.0
    %2429 = vmatpush1.xpose.msra.mxu0 0.0
    %2430 = vmatprep.subr.mxu0 0.0
    %2431 = vmatpush1.xpose.msra.mxu0 0.0
    %2432 = vmatprep.subr.mxu0 0.0
    %2433 = vmatpush1.xpose.msra.mxu0 0.0
    %2434 = vmatprep.subr.mxu0 0.0
    %2435 = vmatpush1.xpose.msra.mxu0 0.0
    %2436 = vmatprep.subr.mxu0 0.0
    %2437 = vmatpush1.xpose.msra.mxu0 0.0
    %2438 = vmatprep.subr.mxu0 0.0
    %2439 = vmatpush1.xpose.msra.mxu0 0.0
    %2440 = vmatprep.subr.mxu0 0.0
    %2441 = vmatpush1.xpose.msra.mxu0 0.0
    %2442 = vmatprep.mubr.f32.mxu0 0.0
    %2443 = vmatmul.mubr.f32.gmra.mrb[0].mxu0 %v2374
    %v2444 = vpop.f32.mrb[0].mxu0
    %v2445 = vadd.f32 0.0, %v2444
    %v2446 = vpop.f32.mrb[0].mxu0
    %2447 = vdwg.mxu0
    %2449 = vrot.lane.b32.xlu0 %v2360, 96
    %v2450 = vpop.permute.xlu0 %2449
    %v2452 = vsel %vm330, %v2369, 0
    %v2454 = vsel %vm330, %v2450, 0
    %2456 = vmatprep.subr.mxu0 0.0
    %2457 = vmatpush1.xpose.msra.mxu0 %v2454
    %2458 = vmatprep.subr.mxu0 0.0
    %2459 = vmatpush1.xpose.msra.mxu0 0.0
    %2460 = vmatprep.subr.mxu0 0.0
    %2461 = vmatpush1.xpose.msra.mxu0 0.0
    %2462 = vmatprep.subr.mxu0 0.0
    %2463 = vmatpush1.xpose.msra.mxu0 0.0
    %2464 = vmatprep.subr.mxu0 0.0
    %2465 = vmatpush1.xpose.msra.mxu0 0.0
    %2466 = vmatprep.subr.mxu0 0.0
    %2467 = vmatpush1.xpose.msra.mxu0 0.0
    %2468 = vmatprep.subr.mxu0 0.0
    %2469 = vmatpush1.xpose.msra.mxu0 0.0
    %2470 = vmatprep.subr.mxu0 0.0
    %2471 = vmatpush1.xpose.msra.mxu0 0.0
    %2472 = vmatprep.subr.mxu0 0.0
    %2473 = vmatpush1.xpose.msra.mxu0 0.0
    %2474 = vmatprep.subr.mxu0 0.0
    %2475 = vmatpush1.xpose.msra.mxu0 0.0
    %2476 = vmatprep.subr.mxu0 0.0
    %2477 = vmatpush1.xpose.msra.mxu0 0.0
    %2478 = vmatprep.subr.mxu0 0.0
    %2479 = vmatpush1.xpose.msra.mxu0 0.0
    %2480 = vmatprep.subr.mxu0 0.0
    %2481 = vmatpush1.xpose.msra.mxu0 0.0
    %2482 = vmatprep.subr.mxu0 0.0
    %2483 = vmatpush1.xpose.msra.mxu0 0.0
    %2484 = vmatprep.subr.mxu0 0.0
    %2485 = vmatpush1.xpose.msra.mxu0 0.0
    %2486 = vmatprep.subr.mxu0 0.0
    %2487 = vmatpush1.xpose.msra.mxu0 0.0
    %2488 = vmatprep.subr.mxu0 0.0
    %2489 = vmatpush1.xpose.msra.mxu0 0.0
    %2490 = vmatprep.subr.mxu0 0.0
    %2491 = vmatpush1.xpose.msra.mxu0 0.0
    %2492 = vmatprep.subr.mxu0 0.0
    %2493 = vmatpush1.xpose.msra.mxu0 0.0
    %2494 = vmatprep.subr.mxu0 0.0
    %2495 = vmatpush1.xpose.msra.mxu0 0.0
    %2496 = vmatprep.subr.mxu0 0.0
    %2497 = vmatpush1.xpose.msra.mxu0 0.0
    %2498 = vmatprep.subr.mxu0 0.0
    %2499 = vmatpush1.xpose.msra.mxu0 0.0
    %2500 = vmatprep.subr.mxu0 0.0
    %2501 = vmatpush1.xpose.msra.mxu0 0.0
    %2502 = vmatprep.subr.mxu0 0.0
    %2503 = vmatpush1.xpose.msra.mxu0 0.0
    %2504 = vmatprep.subr.mxu0 0.0
    %2505 = vmatpush1.xpose.msra.mxu0 0.0
    %2506 = vmatprep.subr.mxu0 0.0
    %2507 = vmatpush1.xpose.msra.mxu0 0.0
    %2508 = vmatprep.subr.mxu0 0.0
    %2509 = vmatpush1.xpose.msra.mxu0 0.0
    %2510 = vmatprep.subr.mxu0 0.0
    %2511 = vmatpush1.xpose.msra.mxu0 0.0
    %2512 = vmatprep.subr.mxu0 0.0
    %2513 = vmatpush1.xpose.msra.mxu0 0.0
    %2514 = vmatprep.subr.mxu0 0.0
    %2515 = vmatpush1.xpose.msra.mxu0 0.0
    %2516 = vmatprep.subr.mxu0 0.0
    %2517 = vmatpush1.xpose.msra.mxu0 0.0
    %2518 = vmatprep.subr.mxu0 0.0
    %2519 = vmatpush1.xpose.msra.mxu0 0.0
    %2520 = vmatprep.mubr.f32.mxu0 0.0
    %2521 = vmatmul.mubr.f32.gmra.mrb[0].mxu0 %v2452
    %v2522 = vpop.f32.mrb[0].mxu0
    %v2523 = vadd.f32 0.0, %v2522
    %v2524 = vpop.f32.mrb[0].mxu0
    %2525 = vdwg.mxu0
    %v2526 = vsel %vm330, %v2445, -inf
    %2527 = vmax.xlane.f32.xlu0 %v2526
    %v2528 = vpop.xlane.xlu0 %2527
    %v2529 = vsel %vm330, %v2523, -inf
    %2530 = vmax.xlane.f32.xlu0 %v2529
    %v2531 = vpop.xlane.xlu0 %2530
    %v2532 = vsub.f32 %v2445, %v2528
    %v2533 = vsub.f32 %v2523, %v2531
    %v2534 = vmul.f32 %v2532, 1.442695
    %v2535 = vpow.pop %v2534
    %v2536 = vmul.f32 %v2533, 1.442695
    %v2537 = vpow.pop %v2536
    %v2538 = vsel %vm330, %v2535, 0.0
    %2539 = vadd.xlane.f32.xlu0 %v2538
    %v2540 = vpop.xlane.xlu0 %2539
    %v2541 = vsel %vm330, %v2537, 0.0
    %2542 = vadd.xlane.f32.xlu0 %v2541
    %v2543 = vpop.xlane.xlu0 %2542
    %v2544 = vrcp.pop %v2540
    %v2545 = vmul.f32 %v2535, %v2544
    %v2546 = vrcp.pop %v2543
    %v2547 = vmul.f32 %v2537, %v2546
    %2548 = vrot.lane.b32.xlu0 %v2355, 64
    %v2549 = vpop.permute.xlu0 %2548
    %v2552 = vsel %vm330, %v2545, 0
    %2554 = vmatprep.subr.mxu0 0.0
    %2555 = vmatpush1.msra.mxu0 %v2549
    %2556 = vmatprep.subr.mxu0 0.0
    %2557 = vmatpush1.msra.mxu0 0.0
    %2558 = vmatprep.subr.mxu0 0.0
    %2559 = vmatpush1.msra.mxu0 0.0
    %2560 = vmatprep.subr.mxu0 0.0
    %2561 = vmatpush1.msra.mxu0 0.0
    %2562 = vmatprep.subr.mxu0 0.0
    %2563 = vmatpush1.msra.mxu0 0.0
    %2564 = vmatprep.subr.mxu0 0.0
    %2565 = vmatpush1.msra.mxu0 0.0
    %2566 = vmatprep.subr.mxu0 0.0
    %2567 = vmatpush1.msra.mxu0 0.0
    %2568 = vmatprep.subr.mxu0 0.0
    %2569 = vmatpush1.msra.mxu0 0.0
    %2570 = vmatprep.subr.mxu0 0.0
    %2571 = vmatpush1.msra.mxu0 0.0
    %2572 = vmatprep.subr.mxu0 0.0
    %2573 = vmatpush1.msra.mxu0 0.0
    %2574 = vmatprep.subr.mxu0 0.0
    %2575 = vmatpush1.msra.mxu0 0.0
    %2576 = vmatprep.subr.mxu0 0.0
    %2577 = vmatpush1.msra.mxu0 0.0
    %2578 = vmatprep.subr.mxu0 0.0
    %2579 = vmatpush1.msra.mxu0 0.0
    %2580 = vmatprep.subr.mxu0 0.0
    %2581 = vmatpush1.msra.mxu0 0.0
    %2582 = vmatprep.subr.mxu0 0.0
    %2583 = vmatpush1.msra.mxu0 0.0
    %2584 = vmatprep.subr.mxu0 0.0
    %2585 = vmatpush1.msra.mxu0 0.0
    %2586 = vmatprep.subr.mxu0 0.0
    %2587 = vmatpush1.msra.mxu0 0.0
    %2588 = vmatprep.subr.mxu0 0.0
    %2589 = vmatpush1.msra.mxu0 0.0
    %2590 = vmatprep.subr.mxu0 0.0
    %2591 = vmatpush1.msra.mxu0 0.0
    %2592 = vmatprep.subr.mxu0 0.0
    %2593 = vmatpush1.msra.mxu0 0.0
    %2594 = vmatprep.subr.mxu0 0.0
    %2595 = vmatpush1.msra.mxu0 0.0
    %2596 = vmatprep.subr.mxu0 0.0
    %2597 = vmatpush1.msra.mxu0 0.0
    %2598 = vmatprep.subr.mxu0 0.0
    %2599 = vmatpush1.msra.mxu0 0.0
    %2600 = vmatprep.subr.mxu0 0.0
    %2601 = vmatpush1.msra.mxu0 0.0
    %2602 = vmatprep.subr.mxu0 0.0
    %2603 = vmatpush1.msra.mxu0 0.0
    %2604 = vmatprep.subr.mxu0 0.0
    %2605 = vmatpush1.msra.mxu0 0.0
    %2606 = vmatprep.subr.mxu0 0.0
    %2607 = vmatpush1.msra.mxu0 0.0
    %2608 = vmatprep.subr.mxu0 0.0
    %2609 = vmatpush1.msra.mxu0 0.0
    %2610 = vmatprep.subr.mxu0 0.0
    %2611 = vmatpush1.msra.mxu0 0.0
    %2612 = vmatprep.subr.mxu0 0.0
    %2613 = vmatpush1.msra.mxu0 0.0
    %2614 = vmatprep.subr.mxu0 0.0
    %2615 = vmatpush1.msra.mxu0 0.0
    %2616 = vmatprep.subr.mxu0 0.0
    %2617 = vmatpush1.msra.mxu0 0.0
    %2618 = vmatprep.mubr.f32.mxu0 0.0
    %2619 = vmatmul.mubr.f32.gmra.mrb[0].mxu0 %v2552
    %v2620 = vpop.f32.mrb[0].mxu0
    %v2621 = vadd.f32 0.0, %v2620
    %v2622 = vpop.f32.mrb[0].mxu0
    %2623 = vdwg.mxu0
    %2624 = vrot.lane.b32.xlu0 %v2360, 64
    %v2625 = vpop.permute.xlu0 %2624
    %v2628 = vsel %vm330, %v2547, 0
    %2630 = vmatprep.subr.mxu0 0.0
    %2631 = vmatpush1.msra.mxu0 %v2625
    %2632 = vmatprep.subr.mxu0 0.0
    %2633 = vmatpush1.msra.mxu0 0.0
    %2634 = vmatprep.subr.mxu0 0.0
    %2635 = vmatpush1.msra.mxu0 0.0
    %2636 = vmatprep.subr.mxu0 0.0
    %2637 = vmatpush1.msra.mxu0 0.0
    %2638 = vmatprep.subr.mxu0 0.0
    %2639 = vmatpush1.msra.mxu0 0.0
    %2640 = vmatprep.subr.mxu0 0.0
    %2641 = vmatpush1.msra.mxu0 0.0
    %2642 = vmatprep.subr.mxu0 0.0
    %2643 = vmatpush1.msra.mxu0 0.0
    %2644 = vmatprep.subr.mxu0 0.0
    %2645 = vmatpush1.msra.mxu0 0.0
    %2646 = vmatprep.subr.mxu0 0.0
    %2647 = vmatpush1.msra.mxu0 0.0
    %2648 = vmatprep.subr.mxu0 0.0
    %2649 = vmatpush1.msra.mxu0 0.0
    %2650 = vmatprep.subr.mxu0 0.0
    %2651 = vmatpush1.msra.mxu0 0.0
    %2652 = vmatprep.subr.mxu0 0.0
    %2653 = vmatpush1.msra.mxu0 0.0
    %2654 = vmatprep.subr.mxu0 0.0
    %2655 = vmatpush1.msra.mxu0 0.0
    %2656 = vmatprep.subr.mxu0 0.0
    %2657 = vmatpush1.msra.mxu0 0.0
    %2658 = vmatprep.subr.mxu0 0.0
    %2659 = vmatpush1.msra.mxu0 0.0
    %2660 = vmatprep.subr.mxu0 0.0
    %2661 = vmatpush1.msra.mxu0 0.0
    %2662 = vmatprep.subr.mxu0 0.0
    %2663 = vmatpush1.msra.mxu0 0.0
    %2664 = vmatprep.subr.mxu0 0.0
    %2665 = vmatpush1.msra.mxu0 0.0
    %2666 = vmatprep.subr.mxu0 0.0
    %2667 = vmatpush1.msra.mxu0 0.0
    %2668 = vmatprep.subr.mxu0 0.0
    %2669 = vmatpush1.msra.mxu0 0.0
    %2670 = vmatprep.subr.mxu0 0.0
    %2671 = vmatpush1.msra.mxu0 0.0
    %2672 = vmatprep.subr.mxu0 0.0
    %2673 = vmatpush1.msra.mxu0 0.0
    %2674 = vmatprep.subr.mxu0 0.0
    %2675 = vmatpush1.msra.mxu0 0.0
    %2676 = vmatprep.subr.mxu0 0.0
    %2677 = vmatpush1.msra.mxu0 0.0
    %2678 = vmatprep.subr.mxu0 0.0
    %2679 = vmatpush1.msra.mxu0 0.0
    %2680 = vmatprep.subr.mxu0 0.0
    %2681 = vmatpush1.msra.mxu0 0.0
    %2682 = vmatprep.subr.mxu0 0.0
    %2683 = vmatpush1.msra.mxu0 0.0
    %2684 = vmatprep.subr.mxu0 0.0
    %2685 = vmatpush1.msra.mxu0 0.0
    %2686 = vmatprep.subr.mxu0 0.0
    %2687 = vmatpush1.msra.mxu0 0.0
    %2688 = vmatprep.subr.mxu0 0.0
    %2689 = vmatpush1.msra.mxu0 0.0
    %2690 = vmatprep.subr.mxu0 0.0
    %2691 = vmatpush1.msra.mxu0 0.0
    %2692 = vmatprep.subr.mxu0 0.0
    %2693 = vmatpush1.msra.mxu0 0.0
    %2694 = vmatprep.mubr.f32.mxu0 0.0
    %2695 = vmatmul.mubr.f32.gmra.mrb[0].mxu0 %v2628
    %v2696 = vpop.f32.mrb[0].mxu0
    %v2697 = vadd.f32 0.0, %v2696
    %v2698 = vpop.f32.mrb[0].mxu0
    %2699 = vdwg.mxu0
    %2700 = vrot.lane.b32.xlu0 %v2368, 120
    %v2701 = vpop.permute.xlu0 %2700
    %2702 = vrot.lane.b32.xlu0 %v2355, 88
    %v2703 = vpop.permute.xlu0 %2702
    %v2704 = vsel %vm330, %v2701, 0
    %v2706 = vsel %vm330, %v2703, 0
    %2708 = vmatprep.subr.mxu0 0.0
    %2709 = vmatpush1.xpose.msra.mxu0 %v2706
    %2710 = vmatprep.subr.mxu0 0.0
    %2711 = vmatpush1.xpose.msra.mxu0 0.0
    %2712 = vmatprep.subr.mxu0 0.0
    %2713 = vmatpush1.xpose.msra.mxu0 0.0
    %2714 = vmatprep.subr.mxu0 0.0
    %2715 = vmatpush1.xpose.msra.mxu0 0.0
    %2716 = vmatprep.subr.mxu0 0.0
    %2717 = vmatpush1.xpose.msra.mxu0 0.0
    %2718 = vmatprep.subr.mxu0 0.0
    %2719 = vmatpush1.xpose.msra.mxu0 0.0
    %2720 = vmatprep.subr.mxu0 0.0
    %2721 = vmatpush1.xpose.msra.mxu0 0.0
    %2722 = vmatprep.subr.mxu0 0.0
    %2723 = vmatpush1.xpose.msra.mxu0 0.0
    %2724 = vmatprep.subr.mxu0 0.0
    %2725 = vmatpush1.xpose.msra.mxu0 0.0
    %2726 = vmatprep.subr.mxu0 0.0
    %2727 = vmatpush1.xpose.msra.mxu0 0.0
    %2728 = vmatprep.subr.mxu0 0.0
    %2729 = vmatpush1.xpose.msra.mxu0 0.0
    %2730 = vmatprep.subr.mxu0 0.0
    %2731 = vmatpush1.xpose.msra.mxu0 0.0
    %2732 = vmatprep.subr.mxu0 0.0
    %2733 = vmatpush1.xpose.msra.mxu0 0.0
    %2734 = vmatprep.subr.mxu0 0.0
    %2735 = vmatpush1.xpose.msra.mxu0 0.0
    %2736 = vmatprep.subr.mxu0 0.0
    %2737 = vmatpush1.xpose.msra.mxu0 0.0
    %2738 = vmatprep.subr.mxu0 0.0
    %2739 = vmatpush1.xpose.msra.mxu0 0.0
    %2740 = vmatprep.subr.mxu0 0.0
    %2741 = vmatpush1.xpose.msra.mxu0 0.0
    %2742 = vmatprep.subr.mxu0 0.0
    %2743 = vmatpush1.xpose.msra.mxu0 0.0
    %2744 = vmatprep.subr.mxu0 0.0
    %2745 = vmatpush1.xpose.msra.mxu0 0.0
    %2746 = vmatprep.subr.mxu0 0.0
    %2747 = vmatpush1.xpose.msra.mxu0 0.0
    %2748 = vmatprep.subr.mxu0 0.0
    %2749 = vmatpush1.xpose.msra.mxu0 0.0
    %2750 = vmatprep.subr.mxu0 0.0
    %2751 = vmatpush1.xpose.msra.mxu0 0.0
    %2752 = vmatprep.subr.mxu0 0.0
    %2753 = vmatpush1.xpose.msra.mxu0 0.0
    %2754 = vmatprep.subr.mxu0 0.0
    %2755 = vmatpush1.xpose.msra.mxu0 0.0
    %2756 = vmatprep.subr.mxu0 0.0
    %2757 = vmatpush1.xpose.msra.mxu0 0.0
    %2758 = vmatprep.subr.mxu0 0.0
    %2759 = vmatpush1.xpose.msra.mxu0 0.0
    %2760 = vmatprep.subr.mxu0 0.0
    %2761 = vmatpush1.xpose.msra.mxu0 0.0
    %2762 = vmatprep.subr.mxu0 0.0
    %2763 = vmatpush1.xpose.msra.mxu0 0.0
    %2764 = vmatprep.subr.mxu0 0.0
    %2765 = vmatpush1.xpose.msra.mxu0 0.0
    %2766 = vmatprep.subr.mxu0 0.0
    %2767 = vmatpush1.xpose.msra.mxu0 0.0
    %2768 = vmatprep.subr.mxu0 0.0
    %2769 = vmatpush1.xpose.msra.mxu0 0.0
    %2770 = vmatprep.subr.mxu0 0.0
    %2771 = vmatpush1.xpose.msra.mxu0 0.0
    %2772 = vmatprep.mubr.f32.mxu0 0.0
    %2773 = vmatmul.mubr.f32.gmra.mrb[0].mxu0 %v2704
    %v2774 = vpop.f32.mrb[0].mxu0
    %v2775 = vadd.f32 0.0, %v2774
    %v2776 = vpop.f32.mrb[0].mxu0
    %2777 = vdwg.mxu0
    %2778 = vrot.lane.b32.xlu0 %v2369, 120
    %v2779 = vpop.permute.xlu0 %2778
    %2780 = vrot.lane.b32.xlu0 %v2360, 88
    %v2781 = vpop.permute.xlu0 %2780
    %v2782 = vsel %vm330, %v2779, 0
    %v2784 = vsel %vm330, %v2781, 0
    %2786 = vmatprep.subr.mxu0 0.0
    %2787 = vmatpush1.xpose.msra.mxu0 %v2784
    %2788 = vmatprep.subr.mxu0 0.0
    %2789 = vmatpush1.xpose.msra.mxu0 0.0
    %2790 = vmatprep.subr.mxu0 0.0
    %2791 = vmatpush1.xpose.msra.mxu0 0.0
    %2792 = vmatprep.subr.mxu0 0.0
    %2793 = vmatpush1.xpose.msra.mxu0 0.0
    %2794 = vmatprep.subr.mxu0 0.0
    %2795 = vmatpush1.xpose.msra.mxu0 0.0
    %2796 = vmatprep.subr.mxu0 0.0
    %2797 = vmatpush1.xpose.msra.mxu0 0.0
    %2798 = vmatprep.subr.mxu0 0.0
    %2799 = vmatpush1.xpose.msra.mxu0 0.0
    %2800 = vmatprep.subr.mxu0 0.0
    %2801 = vmatpush1.xpose.msra.mxu0 0.0
    %2802 = vmatprep.subr.mxu0 0.0
    %2803 = vmatpush1.xpose.msra.mxu0 0.0
    %2804 = vmatprep.subr.mxu0 0.0
    %2805 = vmatpush1.xpose.msra.mxu0 0.0
    %2806 = vmatprep.subr.mxu0 0.0
    %2807 = vmatpush1.xpose.msra.mxu0 0.0
    %2808 = vmatprep.subr.mxu0 0.0
    %2809 = vmatpush1.xpose.msra.mxu0 0.0
    %2810 = vmatprep.subr.mxu0 0.0
    %2811 = vmatpush1.xpose.msra.mxu0 0.0
    %2812 = vmatprep.subr.mxu0 0.0
    %2813 = vmatpush1.xpose.msra.mxu0 0.0
    %2814 = vmatprep.subr.mxu0 0.0
    %2815 = vmatpush1.xpose.msra.mxu0 0.0
    %2816 = vmatprep.subr.mxu0 0.0
    %2817 = vmatpush1.xpose.msra.mxu0 0.0
    %2818 = vmatprep.subr.mxu0 0.0
    %2819 = vmatpush1.xpose.msra.mxu0 0.0
    %2820 = vmatprep.subr.mxu0 0.0
    %2821 = vmatpush1.xpose.msra.mxu0 0.0
    %2822 = vmatprep.subr.mxu0 0.0
    %2823 = vmatpush1.xpose.msra.mxu0 0.0
    %2824 = vmatprep.subr.mxu0 0.0
    %2825 = vmatpush1.xpose.msra.mxu0 0.0
    %2826 = vmatprep.subr.mxu0 0.0
    %2827 = vmatpush1.xpose.msra.mxu0 0.0
    %2828 = vmatprep.subr.mxu0 0.0
    %2829 = vmatpush1.xpose.msra.mxu0 0.0
    %2830 = vmatprep.subr.mxu0 0.0
    %2831 = vmatpush1.xpose.msra.mxu0 0.0
    %2832 = vmatprep.subr.mxu0 0.0
    %2833 = vmatpush1.xpose.msra.mxu0 0.0
    %2834 = vmatprep.subr.mxu0 0.0
    %2835 = vmatpush1.xpose.msra.mxu0 0.0
    %2836 = vmatprep.subr.mxu0 0.0
    %2837 = vmatpush1.xpose.msra.mxu0 0.0
    %2838 = vmatprep.subr.mxu0 0.0
    %2839 = vmatpush1.xpose.msra.mxu0 0.0
    %2840 = vmatprep.subr.mxu0 0.0
    %2841 = vmatpush1.xpose.msra.mxu0 0.0
    %2842 = vmatprep.subr.mxu0 0.0
    %2843 = vmatpush1.xpose.msra.mxu0 0.0
    %2844 = vmatprep.subr.mxu0 0.0
    %2845 = vmatpush1.xpose.msra.mxu0 0.0
    %2846 = vmatprep.subr.mxu0 0.0
    %2847 = vmatpush1.xpose.msra.mxu0 0.0
    %2848 = vmatprep.subr.mxu0 0.0
    %2849 = vmatpush1.xpose.msra.mxu0 0.0
    %2850 = vmatprep.mubr.f32.mxu0 0.0
    %2851 = vmatmul.mubr.f32.gmra.mrb[0].mxu0 %v2782
    %v2852 = vpop.f32.mrb[0].mxu0
    %v2853 = vadd.f32 0.0, %v2852
    %v2854 = vpop.f32.mrb[0].mxu0
    %2855 = vdwg.mxu0
    %v2856 = vsel %vm330, %v2775, -inf
    %2857 = vmax.xlane.f32.xlu0 %v2856
    %v2858 = vpop.xlane.xlu0 %2857
    %v2859 = vsel %vm330, %v2853, -inf
    %2860 = vmax.xlane.f32.xlu0 %v2859
    %v2861 = vpop.xlane.xlu0 %2860
    %v2862 = vsub.f32 %v2775, %v2858
    %v2863 = vsub.f32 %v2853, %v2861
    %v2864 = vmul.f32 %v2862, 1.442695
    %v2865 = vpow.pop %v2864
    %v2866 = vmul.f32 %v2863, 1.442695
    %v2867 = vpow.pop %v2866
    %v2868 = vsel %vm330, %v2865, 0.0
    %2869 = vadd.xlane.f32.xlu0 %v2868
    %v2870 = vpop.xlane.xlu0 %2869
    %v2871 = vsel %vm330, %v2867, 0.0
    %2872 = vadd.xlane.f32.xlu0 %v2871
    %v2873 = vpop.xlane.xlu0 %2872
    %v2874 = vrcp.pop %v2870
    %v2875 = vmul.f32 %v2865, %v2874
    %v2876 = vrcp.pop %v2873
    %v2877 = vmul.f32 %v2867, %v2876
    %2878 = vrot.lane.b32.xlu0 %v2355, 56
    %v2879 = vpop.permute.xlu0 %2878
    %v2882 = vsel %vm330, %v2875, 0
    %2884 = vmatprep.subr.mxu0 0.0
    %2885 = vmatpush1.msra.mxu0 %v2879
    %2886 = vmatprep.subr.mxu0 0.0
    %2887 = vmatpush1.msra.mxu0 0.0
    %2888 = vmatprep.subr.mxu0 0.0
    %2889 = vmatpush1.msra.mxu0 0.0
    %2890 = vmatprep.subr.mxu0 0.0
    %2891 = vmatpush1.msra.mxu0 0.0
    %2892 = vmatprep.subr.mxu0 0.0
    %2893 = vmatpush1.msra.mxu0 0.0
    %2894 = vmatprep.subr.mxu0 0.0
    %2895 = vmatpush1.msra.mxu0 0.0
    %2896 = vmatprep.subr.mxu0 0.0
    %2897 = vmatpush1.msra.mxu0 0.0
    %2898 = vmatprep.subr.mxu0 0.0
    %2899 = vmatpush1.msra.mxu0 0.0
    %2900 = vmatprep.subr.mxu0 0.0
    %2901 = vmatpush1.msra.mxu0 0.0
    %2902 = vmatprep.subr.mxu0 0.0
    %2903 = vmatpush1.msra.mxu0 0.0
    %2904 = vmatprep.subr.mxu0 0.0
    %2905 = vmatpush1.msra.mxu0 0.0
    %2906 = vmatprep.subr.mxu0 0.0
    %2907 = vmatpush1.msra.mxu0 0.0
    %2908 = vmatprep.subr.mxu0 0.0
    %2909 = vmatpush1.msra.mxu0 0.0
    %2910 = vmatprep.subr.mxu0 0.0
    %2911 = vmatpush1.msra.mxu0 0.0
    %2912 = vmatprep.subr.mxu0 0.0
    %2913 = vmatpush1.msra.mxu0 0.0
    %2914 = vmatprep.subr.mxu0 0.0
    %2915 = vmatpush1.msra.mxu0 0.0
    %2916 = vmatprep.subr.mxu0 0.0
    %2917 = vmatpush1.msra.mxu0 0.0
    %2918 = vmatprep.subr.mxu0 0.0
    %2919 = vmatpush1.msra.mxu0 0.0
    %2920 = vmatprep.subr.mxu0 0.0
    %2921 = vmatpush1.msra.mxu0 0.0
    %2922 = vmatprep.subr.mxu0 0.0
    %2923 = vmatpush1.msra.mxu0 0.0
    %2924 = vmatprep.subr.mxu0 0.0
    %2925 = vmatpush1.msra.mxu0 0.0
    %2926 = vmatprep.subr.mxu0 0.0
    %2927 = vmatpush1.msra.mxu0 0.0
    %2928 = vmatprep.subr.mxu0 0.0
    %2929 = vmatpush1.msra.mxu0 0.0
    %2930 = vmatprep.subr.mxu0 0.0
    %2931 = vmatpush1.msra.mxu0 0.0
    %2932 = vmatprep.subr.mxu0 0.0
    %2933 = vmatpush1.msra.mxu0 0.0
    %2934 = vmatprep.subr.mxu0 0.0
    %2935 = vmatpush1.msra.mxu0 0.0
    %2936 = vmatprep.subr.mxu0 0.0
    %2937 = vmatpush1.msra.mxu0 0.0
    %2938 = vmatprep.subr.mxu0 0.0
    %2939 = vmatpush1.msra.mxu0 0.0
    %2940 = vmatprep.subr.mxu0 0.0
    %2941 = vmatpush1.msra.mxu0 0.0
    %2942 = vmatprep.subr.mxu0 0.0
    %2943 = vmatpush1.msra.mxu0 0.0
    %2944 = vmatprep.subr.mxu0 0.0
    %2945 = vmatpush1.msra.mxu0 0.0
    %2946 = vmatprep.subr.mxu0 0.0
    %2947 = vmatpush1.msra.mxu0 0.0
    %2948 = vmatprep.mubr.f32.mxu0 0.0
    %2949 = vmatmul.mubr.f32.gmra.mrb[0].mxu0 %v2882
    %v2950 = vpop.f32.mrb[0].mxu0
    %v2951 = vadd.f32 0.0, %v2950
    %v2952 = vpop.f32.mrb[0].mxu0
    %2953 = vdwg.mxu0
    %2954 = vrot.lane.b32.xlu0 %v2360, 56
    %v2955 = vpop.permute.xlu0 %2954
    %v2958 = vsel %vm330, %v2877, 0
    %2960 = vmatprep.subr.mxu0 0.0
    %2961 = vmatpush1.msra.mxu0 %v2955
    %2962 = vmatprep.subr.mxu0 0.0
    %2963 = vmatpush1.msra.mxu0 0.0
    %2964 = vmatprep.subr.mxu0 0.0
    %2965 = vmatpush1.msra.mxu0 0.0
    %2966 = vmatprep.subr.mxu0 0.0
    %2967 = vmatpush1.msra.mxu0 0.0
    %2968 = vmatprep.subr.mxu0 0.0
    %2969 = vmatpush1.msra.mxu0 0.0
    %2970 = vmatprep.subr.mxu0 0.0
    %2971 = vmatpush1.msra.mxu0 0.0
    %2972 = vmatprep.subr.mxu0 0.0
    %2973 = vmatpush1.msra.mxu0 0.0
    %2974 = vmatprep.subr.mxu0 0.0
    %2975 = vmatpush1.msra.mxu0 0.0
    %2976 = vmatprep.subr.mxu0 0.0
    %2977 = vmatpush1.msra.mxu0 0.0
    %2978 = vmatprep.subr.mxu0 0.0
    %2979 = vmatpush1.msra.mxu0 0.0
    %2980 = vmatprep.subr.mxu0 0.0
    %2981 = vmatpush1.msra.mxu0 0.0
    %2982 = vmatprep.subr.mxu0 0.0
    %2983 = vmatpush1.msra.mxu0 0.0
    %2984 = vmatprep.subr.mxu0 0.0
    %2985 = vmatpush1.msra.mxu0 0.0
    %2986 = vmatprep.subr.mxu0 0.0
    %2987 = vmatpush1.msra.mxu0 0.0
    %2988 = vmatprep.subr.mxu0 0.0
    %2989 = vmatpush1.msra.mxu0 0.0
    %2990 = vmatprep.subr.mxu0 0.0
    %2991 = vmatpush1.msra.mxu0 0.0
    %2992 = vmatprep.subr.mxu0 0.0
    %2993 = vmatpush1.msra.mxu0 0.0
    %2994 = vmatprep.subr.mxu0 0.0
    %2995 = vmatpush1.msra.mxu0 0.0
    %2996 = vmatprep.subr.mxu0 0.0
    %2997 = vmatpush1.msra.mxu0 0.0
    %2998 = vmatprep.subr.mxu0 0.0
    %2999 = vmatpush1.msra.mxu0 0.0
    %3000 = vmatprep.subr.mxu0 0.0
    %3001 = vmatpush1.msra.mxu0 0.0
    %3002 = vmatprep.subr.mxu0 0.0
    %3003 = vmatpush1.msra.mxu0 0.0
    %3004 = vmatprep.subr.mxu0 0.0
    %3005 = vmatpush1.msra.mxu0 0.0
    %3006 = vmatprep.subr.mxu0 0.0
    %3007 = vmatpush1.msra.mxu0 0.0
    %3008 = vmatprep.subr.mxu0 0.0
    %3009 = vmatpush1.msra.mxu0 0.0
    %3010 = vmatprep.subr.mxu0 0.0
    %3011 = vmatpush1.msra.mxu0 0.0
    %3012 = vmatprep.subr.mxu0 0.0
    %3013 = vmatpush1.msra.mxu0 0.0
    %3014 = vmatprep.subr.mxu0 0.0
    %3015 = vmatpush1.msra.mxu0 0.0
    %3016 = vmatprep.subr.mxu0 0.0
    %3017 = vmatpush1.msra.mxu0 0.0
    %3018 = vmatprep.subr.mxu0 0.0
    %3019 = vmatpush1.msra.mxu0 0.0
    %3020 = vmatprep.subr.mxu0 0.0
    %3021 = vmatpush1.msra.mxu0 0.0
    %3022 = vmatprep.subr.mxu0 0.0
    %3023 = vmatpush1.msra.mxu0 0.0
    %3024 = vmatprep.mubr.f32.mxu0 0.0
    %3025 = vmatmul.mubr.f32.gmra.mrb[0].mxu0 %v2958
    %v3026 = vpop.f32.mrb[0].mxu0
    %v3027 = vadd.f32 0.0, %v3026
    %v3028 = vpop.f32.mrb[0].mxu0
    %3029 = vdwg.mxu0
    %v3031 = vsel %vm330, %v2951, 0
    %v3034 = vsel %vm330, %v3027, 0
    %3036 = vmatprep.subr.mxu0 0.0
    %3037 = vmatpush1.msra.mxu0 %v2365
    %3038 = vmatprep.subr.mxu0 0.0
    %3039 = vmatpush1.msra.mxu0 0.0
    %3040 = vmatprep.subr.mxu0 0.0
    %3041 = vmatpush1.msra.mxu0 0.0
    %3042 = vmatprep.subr.mxu0 0.0
    %3043 = vmatpush1.msra.mxu0 0.0
    %3044 = vmatprep.subr.mxu0 0.0
    %3045 = vmatpush1.msra.mxu0 0.0
    %3046 = vmatprep.subr.mxu0 0.0
    %3047 = vmatpush1.msra.mxu0 0.0
    %3048 = vmatprep.subr.mxu0 0.0
    %3049 = vmatpush1.msra.mxu0 0.0
    %3050 = vmatprep.subr.mxu0 0.0
    %3051 = vmatpush1.msra.mxu0 0.0
    %3052 = vmatprep.subr.mxu0 0.0
    %3053 = vmatpush1.msra.mxu0 0.0
    %3054 = vmatprep.subr.mxu0 0.0
    %3055 = vmatpush1.msra.mxu0 0.0
    %3056 = vmatprep.subr.mxu0 0.0
    %3057 = vmatpush1.msra.mxu0 0.0
    %3058 = vmatprep.subr.mxu0 0.0
    %3059 = vmatpush1.msra.mxu0 0.0
    %3060 = vmatprep.subr.mxu0 0.0
    %3061 = vmatpush1.msra.mxu0 0.0
    %3062 = vmatprep.subr.mxu0 0.0
    %3063 = vmatpush1.msra.mxu0 0.0
    %3064 = vmatprep.subr.mxu0 0.0
    %3065 = vmatpush1.msra.mxu0 0.0
    %3066 = vmatprep.subr.mxu0 0.0
    %3067 = vmatpush1.msra.mxu0 0.0
    %3068 = vmatprep.subr.mxu0 0.0
    %3069 = vmatpush1.msra.mxu0 0.0
    %3070 = vmatprep.subr.mxu0 0.0
    %3071 = vmatpush1.msra.mxu0 0.0
    %3072 = vmatprep.subr.mxu0 0.0
    %3073 = vmatpush1.msra.mxu0 0.0
    %3074 = vmatprep.subr.mxu0 0.0
    %3075 = vmatpush1.msra.mxu0 0.0
    %3076 = vmatprep.subr.mxu0 0.0
    %3077 = vmatpush1.msra.mxu0 0.0
    %3078 = vmatprep.subr.mxu0 0.0
    %3079 = vmatpush1.msra.mxu0 0.0
    %3080 = vmatprep.subr.mxu0 0.0
    %3081 = vmatpush1.msra.mxu0 0.0
    %3082 = vmatprep.subr.mxu0 0.0
    %3083 = vmatpush1.msra.mxu0 0.0
    %3084 = vmatprep.subr.mxu0 0.0
    %3085 = vmatpush1.msra.mxu0 0.0
    %3086 = vmatprep.subr.mxu0 0.0
    %3087 = vmatpush1.msra.mxu0 0.0
    %3088 = vmatprep.subr.mxu0 0.0
    %3089 = vmatpush1.msra.mxu0 0.0
    %3090 = vmatprep.subr.mxu0 0.0
    %3091 = vmatpush1.msra.mxu0 0.0
    %3092 = vmatprep.subr.mxu0 0.0
    %3093 = vmatpush1.msra.mxu0 0.0
    %3094 = vmatprep.subr.mxu0 0.0
    %3095 = vmatpush1.msra.mxu0 0.0
    %3096 = vmatprep.subr.mxu0 0.0
    %3097 = vmatpush1.msra.mxu0 0.0
    %3098 = vmatprep.subr.mxu0 0.0
    %3099 = vmatpush1.msra.mxu0 0.0
    %3100 = vmatprep.mubr.f32.mxu0 0.0
    %3101 = vmatmul.mubr.f32.gmra.mrb[0].mxu0 %v3031
    %v3102 = vpop.f32.mrb[0].mxu0
    %v3103 = vadd.f32 0.0, %v3102
    %v3104 = vpop.f32.mrb[0].mxu0
    %3105 = vmatprep.mubr.f32.mxu0 0.0
    %3106 = vmatmul.mubr.f32.gmra.mrb[0].mxu0 %v3034
    %v3107 = vpop.f32.mrb[0].mxu0
    %v3108 = vadd.f32 0.0, %v3107
    %v3109 = vpop.f32.mrb[0].mxu0
    %3110 = vdwg.mxu0
    %v3112 = vsel %vm330, %v2621, 0
    %v3115 = vsel %vm330, %v2697, 0
    %3117 = vmatprep.subr.mxu0 0.0
    %3118 = vmatpush1.msra.mxu0 %v2364
    %3119 = vmatprep.subr.mxu0 0.0
    %3120 = vmatpush1.msra.mxu0 0.0
    %3121 = vmatprep.subr.mxu0 0.0
    %3122 = vmatpush1.msra.mxu0 0.0
    %3123 = vmatprep.subr.mxu0 0.0
    %3124 = vmatpush1.msra.mxu0 0.0
    %3125 = vmatprep.subr.mxu0 0.0
    %3126 = vmatpush1.msra.mxu0 0.0
    %3127 = vmatprep.subr.mxu0 0.0
    %3128 = vmatpush1.msra.mxu0 0.0
    %3129 = vmatprep.subr.mxu0 0.0
    %3130 = vmatpush1.msra.mxu0 0.0
    %3131 = vmatprep.subr.mxu0 0.0
    %3132 = vmatpush1.msra.mxu0 0.0
    %3133 = vmatprep.subr.mxu0 0.0
    %3134 = vmatpush1.msra.mxu0 0.0
    %3135 = vmatprep.subr.mxu0 0.0
    %3136 = vmatpush1.msra.mxu0 0.0
    %3137 = vmatprep.subr.mxu0 0.0
    %3138 = vmatpush1.msra.mxu0 0.0
    %3139 = vmatprep.subr.mxu0 0.0
    %3140 = vmatpush1.msra.mxu0 0.0
    %3141 = vmatprep.subr.mxu0 0.0
    %3142 = vmatpush1.msra.mxu0 0.0
    %3143 = vmatprep.subr.mxu0 0.0
    %3144 = vmatpush1.msra.mxu0 0.0
    %3145 = vmatprep.subr.mxu0 0.0
    %3146 = vmatpush1.msra.mxu0 0.0
    %3147 = vmatprep.subr.mxu0 0.0
    %3148 = vmatpush1.msra.mxu0 0.0
    %3149 = vmatprep.subr.mxu0 0.0
    %3150 = vmatpush1.msra.mxu0 0.0
    %3151 = vmatprep.subr.mxu0 0.0
    %3152 = vmatpush1.msra.mxu0 0.0
    %3153 = vmatprep.subr.mxu0 0.0
    %3154 = vmatpush1.msra.mxu0 0.0
    %3155 = vmatprep.subr.mxu0 0.0
    %3156 = vmatpush1.msra.mxu0 0.0
    %3157 = vmatprep.subr.mxu0 0.0
    %3158 = vmatpush1.msra.mxu0 0.0
    %3159 = vmatprep.subr.mxu0 0.0
    %3160 = vmatpush1.msra.mxu0 0.0
    %3161 = vmatprep.subr.mxu0 0.0
    %3162 = vmatpush1.msra.mxu0 0.0
    %3163 = vmatprep.subr.mxu0 0.0
    %3164 = vmatpush1.msra.mxu0 0.0
    %3165 = vmatprep.subr.mxu0 0.0
    %3166 = vmatpush1.msra.mxu0 0.0
    %3167 = vmatprep.subr.mxu0 0.0
    %3168 = vmatpush1.msra.mxu0 0.0
    %3169 = vmatprep.subr.mxu0 0.0
    %3170 = vmatpush1.msra.mxu0 0.0
    %3171 = vmatprep.subr.mxu0 0.0
    %3172 = vmatpush1.msra.mxu0 0.0
    %3173 = vmatprep.subr.mxu0 0.0
    %3174 = vmatpush1.msra.mxu0 0.0
    %3175 = vmatprep.subr.mxu0 0.0
    %3176 = vmatpush1.msra.mxu0 0.0
    %3177 = vmatprep.subr.mxu0 0.0
    %3178 = vmatpush1.msra.mxu0 0.0
    %3179 = vmatprep.subr.mxu0 0.0
    %3180 = vmatpush1.msra.mxu0 0.0
    %3181 = vmatprep.mubr.f32.mxu0 0.0
    %3182 = vmatmul.mubr.f32.gmra.mrb[0].mxu0 %v3112
    %v3183 = vpop.f32.mrb[0].mxu0
    %v3184 = vadd.f32 %v3103, %v3183
    %v3185 = vpop.f32.mrb[0].mxu0
    %3186 = vmatprep.mubr.f32.mxu0 0.0
    %3187 = vmatmul.mubr.f32.gmra.mrb[0].mxu0 %v3115
    %v3188 = vpop.f32.mrb[0].mxu0
    %v3189 = vadd.f32 %v3108, %v3188
    %v3190 = vpop.f32.mrb[0].mxu0
    %3191 = vdwg.mxu0
    %3192 = vrot.lane.b32.xlu0 %v2368, 112
    %v3193 = vpop.permute.xlu0 %3192
    %3194 = vrot.lane.b32.xlu0 %v2355, 80
    %v3195 = vpop.permute.xlu0 %3194
    %v3196 = vsel %vm330, %v3193, 0
    %v3198 = vsel %vm330, %v3195, 0
    %3200 = vmatprep.subr.mxu0 0.0
    %3201 = vmatpush1.xpose.msra.mxu0 %v3198
    %3202 = vmatprep.subr.mxu0 0.0
    %3203 = vmatpush1.xpose.msra.mxu0 0.0
    %3204 = vmatprep.subr.mxu0 0.0
    %3205 = vmatpush1.xpose.msra.mxu0 0.0
    %3206 = vmatprep.subr.mxu0 0.0
    %3207 = vmatpush1.xpose.msra.mxu0 0.0
    %3208 = vmatprep.subr.mxu0 0.0
    %3209 = vmatpush1.xpose.msra.mxu0 0.0
    %3210 = vmatprep.subr.mxu0 0.0
    %3211 = vmatpush1.xpose.msra.mxu0 0.0
    %3212 = vmatprep.subr.mxu0 0.0
    %3213 = vmatpush1.xpose.msra.mxu0 0.0
    %3214 = vmatprep.subr.mxu0 0.0
    %3215 = vmatpush1.xpose.msra.mxu0 0.0
    %3216 = vmatprep.subr.mxu0 0.0
    %3217 = vmatpush1.xpose.msra.mxu0 0.0
    %3218 = vmatprep.subr.mxu0 0.0
    %3219 = vmatpush1.xpose.msra.mxu0 0.0
    %3220 = vmatprep.subr.mxu0 0.0
    %3221 = vmatpush1.xpose.msra.mxu0 0.0
    %3222 = vmatprep.subr.mxu0 0.0
    %3223 = vmatpush1.xpose.msra.mxu0 0.0
    %3224 = vmatprep.subr.mxu0 0.0
    %3225 = vmatpush1.xpose.msra.mxu0 0.0
    %3226 = vmatprep.subr.mxu0 0.0
    %3227 = vmatpush1.xpose.msra.mxu0 0.0
    %3228 = vmatprep.subr.mxu0 0.0
    %3229 = vmatpush1.xpose.msra.mxu0 0.0
    %3230 = vmatprep.subr.mxu0 0.0
    %3231 = vmatpush1.xpose.msra.mxu0 0.0
    %3232 = vmatprep.subr.mxu0 0.0
    %3233 = vmatpush1.xpose.msra.mxu0 0.0
    %3234 = vmatprep.subr.mxu0 0.0
    %3235 = vmatpush1.xpose.msra.mxu0 0.0
    %3236 = vmatprep.subr.mxu0 0.0
    %3237 = vmatpush1.xpose.msra.mxu0 0.0
    %3238 = vmatprep.subr.mxu0 0.0
    %3239 = vmatpush1.xpose.msra.mxu0 0.0
    %3240 = vmatprep.subr.mxu0 0.0
    %3241 = vmatpush1.xpose.msra.mxu0 0.0
    %3242 = vmatprep.subr.mxu0 0.0
    %3243 = vmatpush1.xpose.msra.mxu0 0.0
    %3244 = vmatprep.subr.mxu0 0.0
    %3245 = vmatpush1.xpose.msra.mxu0 0.0
    %3246 = vmatprep.subr.mxu0 0.0
    %3247 = vmatpush1.xpose.msra.mxu0 0.0
    %3248 = vmatprep.subr.mxu0 0.0
    %3249 = vmatpush1.xpose.msra.mxu0 0.0
    %3250 = vmatprep.subr.mxu0 0.0
    %3251 = vmatpush1.xpose.msra.mxu0 0.0
    %3252 = vmatprep.subr.mxu0 0.0
    %3253 = vmatpush1.xpose.msra.mxu0 0.0
    %3254 = vmatprep.subr.mxu0 0.0
    %3255 = vmatpush1.xpose.msra.mxu0 0.0
    %3256 = vmatprep.subr.mxu0 0.0
    %3257 = vmatpush1.xpose.msra.mxu0 0.0
    %3258 = vmatprep.subr.mxu0 0.0
    %3259 = vmatpush1.xpose.msra.mxu0 0.0
    %3260 = vmatprep.subr.mxu0 0.0
    %3261 = vmatpush1.xpose.msra.mxu0 0.0
    %3262 = vmatprep.subr.mxu0 0.0
    %3263 = vmatpush1.xpose.msra.mxu0 0.0
    %3264 = vmatprep.mubr.f32.mxu0 0.0
    %3265 = vmatmul.mubr.f32.gmra.mrb[0].mxu0 %v3196
    %v3266 = vpop.f32.mrb[0].mxu0
    %v3267 = vadd.f32 0.0, %v3266
    %v3268 = vpop.f32.mrb[0].mxu0
    %3269 = vdwg.mxu0
    %3270 = vrot.lane.b32.xlu0 %v2369, 112
    %v3271 = vpop.permute.xlu0 %3270
    %3272 = vrot.lane.b32.xlu0 %v2360, 80
    %v3273 = vpop.permute.xlu0 %3272
    %v3274 = vsel %vm330, %v3271, 0
    %v3276 = vsel %vm330, %v3273, 0
    %3278 = vmatprep.subr.mxu0 0.0
    %3279 = vmatpush1.xpose.msra.mxu0 %v3276
    %3280 = vmatprep.subr.mxu0 0.0
    %3281 = vmatpush1.xpose.msra.mxu0 0.0
    %3282 = vmatprep.subr.mxu0 0.0
    %3283 = vmatpush1.xpose.msra.mxu0 0.0
    %3284 = vmatprep.subr.mxu0 0.0
    %3285 = vmatpush1.xpose.msra.mxu0 0.0
    %3286 = vmatprep.subr.mxu0 0.0
    %3287 = vmatpush1.xpose.msra.mxu0 0.0
    %3288 = vmatprep.subr.mxu0 0.0
    %3289 = vmatpush1.xpose.msra.mxu0 0.0
    %3290 = vmatprep.subr.mxu0 0.0
    %3291 = vmatpush1.xpose.msra.mxu0 0.0
    %3292 = vmatprep.subr.mxu0 0.0
    %3293 = vmatpush1.xpose.msra.mxu0 0.0
    %3294 = vmatprep.subr.mxu0 0.0
    %3295 = vmatpush1.xpose.msra.mxu0 0.0
    %3296 = vmatprep.subr.mxu0 0.0
    %3297 = vmatpush1.xpose.msra.mxu0 0.0
    %3298 = vmatprep.subr.mxu0 0.0
    %3299 = vmatpush1.xpose.msra.mxu0 0.0
    %3300 = vmatprep.subr.mxu0 0.0
    %3301 = vmatpush1.xpose.msra.mxu0 0.0
    %3302 = vmatprep.subr.mxu0 0.0
    %3303 = vmatpush1.xpose.msra.mxu0 0.0
    %3304 = vmatprep.subr.mxu0 0.0
    %3305 = vmatpush1.xpose.msra.mxu0 0.0
    %3306 = vmatprep.subr.mxu0 0.0
    %3307 = vmatpush1.xpose.msra.mxu0 0.0
    %3308 = vmatprep.subr.mxu0 0.0
    %3309 = vmatpush1.xpose.msra.mxu0 0.0
    %3310 = vmatprep.subr.mxu0 0.0
    %3311 = vmatpush1.xpose.msra.mxu0 0.0
    %3312 = vmatprep.subr.mxu0 0.0
    %3313 = vmatpush1.xpose.msra.mxu0 0.0
    %3314 = vmatprep.subr.mxu0 0.0
    %3315 = vmatpush1.xpose.msra.mxu0 0.0
    %3316 = vmatprep.subr.mxu0 0.0
    %3317 = vmatpush1.xpose.msra.mxu0 0.0
    %3318 = vmatprep.subr.mxu0 0.0
    %3319 = vmatpush1.xpose.msra.mxu0 0.0
    %3320 = vmatprep.subr.mxu0 0.0
    %3321 = vmatpush1.xpose.msra.mxu0 0.0
    %3322 = vmatprep.subr.mxu0 0.0
    %3323 = vmatpush1.xpose.msra.mxu0 0.0
    %3324 = vmatprep.subr.mxu0 0.0
    %3325 = vmatpush1.xpose.msra.mxu0 0.0
    %3326 = vmatprep.subr.mxu0 0.0
    %3327 = vmatpush1.xpose.msra.mxu0 0.0
    %3328 = vmatprep.subr.mxu0 0.0
    %3329 = vmatpush1.xpose.msra.mxu0 0.0
    %3330 = vmatprep.subr.mxu0 0.0
    %3331 = vmatpush1.xpose.msra.mxu0 0.0
    %3332 = vmatprep.subr.mxu0 0.0
    %3333 = vmatpush1.xpose.msra.mxu0 0.0
    %3334 = vmatprep.subr.mxu0 0.0
    %3335 = vmatpush1.xpose.msra.mxu0 0.0
    %3336 = vmatprep.subr.mxu0 0.0
    %3337 = vmatpush1.xpose.msra.mxu0 0.0
    %3338 = vmatprep.subr.mxu0 0.0
    %3339 = vmatpush1.xpose.msra.mxu0 0.0
    %3340 = vmatprep.subr.mxu0 0.0
    %3341 = vmatpush1.xpose.msra.mxu0 0.0
    %3342 = vmatprep.mubr.f32.mxu0 0.0
    %3343 = vmatmul.mubr.f32.gmra.mrb[0].mxu0 %v3274
    %v3344 = vpop.f32.mrb[0].mxu0
    %v3345 = vadd.f32 0.0, %v3344
    %v3346 = vpop.f32.mrb[0].mxu0
    %3347 = vdwg.mxu0
    %v3348 = vsel %vm330, %v3267, -inf
    %3349 = vmax.xlane.f32.xlu0 %v3348
    %v3350 = vpop.xlane.xlu0 %3349
    %v3351 = vsel %vm330, %v3345, -inf
    %3352 = vmax.xlane.f32.xlu0 %v3351
    %v3353 = vpop.xlane.xlu0 %3352
    %v3354 = vsub.f32 %v3267, %v3350
    %v3355 = vsub.f32 %v3345, %v3353
    %v3356 = vmul.f32 %v3354, 1.442695
    %v3357 = vpow.pop %v3356
    %v3358 = vmul.f32 %v3355, 1.442695
    %v3359 = vpow.pop %v3358
    %v3360 = vsel %vm330, %v3357, 0.0
    %3361 = vadd.xlane.f32.xlu0 %v3360
    %v3362 = vpop.xlane.xlu0 %3361
    %v3363 = vsel %vm330, %v3359, 0.0
    %3364 = vadd.xlane.f32.xlu0 %v3363
    %v3365 = vpop.xlane.xlu0 %3364
    %v3366 = vrcp.pop %v3362
    %v3367 = vmul.f32 %v3357, %v3366
    %v3368 = vrcp.pop %v3365
    %v3369 = vmul.f32 %v3359, %v3368
    %3370 = vrot.lane.b32.xlu0 %v2355, 48
    %v3371 = vpop.permute.xlu0 %3370
    %v3374 = vsel %vm330, %v3367, 0
    %3376 = vmatprep.subr.mxu0 0.0
    %3377 = vmatpush1.msra.mxu0 %v3371
    %3378 = vmatprep.subr.mxu0 0.0
    %3379 = vmatpush1.msra.mxu0 0.0
    %3380 = vmatprep.subr.mxu0 0.0
    %3381 = vmatpush1.msra.mxu0 0.0
    %3382 = vmatprep.subr.mxu0 0.0
    %3383 = vmatpush1.msra.mxu0 0.0
    %3384 = vmatprep.subr.mxu0 0.0
    %3385 = vmatpush1.msra.mxu0 0.0
    %3386 = vmatprep.subr.mxu0 0.0
    %3387 = vmatpush1.msra.mxu0 0.0
    %3388 = vmatprep.subr.mxu0 0.0
    %3389 = vmatpush1.msra.mxu0 0.0
    %3390 = vmatprep.subr.mxu0 0.0
    %3391 = vmatpush1.msra.mxu0 0.0
    %3392 = vmatprep.subr.mxu0 0.0
    %3393 = vmatpush1.msra.mxu0 0.0
    %3394 = vmatprep.subr.mxu0 0.0
    %3395 = vmatpush1.msra.mxu0 0.0
    %3396 = vmatprep.subr.mxu0 0.0
    %3397 = vmatpush1.msra.mxu0 0.0
    %3398 = vmatprep.subr.mxu0 0.0
    %3399 = vmatpush1.msra.mxu0 0.0
    %3400 = vmatprep.subr.mxu0 0.0
    %3401 = vmatpush1.msra.mxu0 0.0
    %3402 = vmatprep.subr.mxu0 0.0
    %3403 = vmatpush1.msra.mxu0 0.0
    %3404 = vmatprep.subr.mxu0 0.0
    %3405 = vmatpush1.msra.mxu0 0.0
    %3406 = vmatprep.subr.mxu0 0.0
    %3407 = vmatpush1.msra.mxu0 0.0
    %3408 = vmatprep.subr.mxu0 0.0
    %3409 = vmatpush1.msra.mxu0 0.0
    %3410 = vmatprep.subr.mxu0 0.0
    %3411 = vmatpush1.msra.mxu0 0.0
    %3412 = vmatprep.subr.mxu0 0.0
    %3413 = vmatpush1.msra.mxu0 0.0
    %3414 = vmatprep.subr.mxu0 0.0
    %3415 = vmatpush1.msra.mxu0 0.0
    %3416 = vmatprep.subr.mxu0 0.0
    %3417 = vmatpush1.msra.mxu0 0.0
    %3418 = vmatprep.subr.mxu0 0.0
    %3419 = vmatpush1.msra.mxu0 0.0
    %3420 = vmatprep.subr.mxu0 0.0
    %3421 = vmatpush1.msra.mxu0 0.0
    %3422 = vmatprep.subr.mxu0 0.0
    %3423 = vmatpush1.msra.mxu0 0.0
    %3424 = vmatprep.subr.mxu0 0.0
    %3425 = vmatpush1.msra.mxu0 0.0
    %3426 = vmatprep.subr.mxu0 0.0
    %3427 = vmatpush1.msra.mxu0 0.0
    %3428 = vmatprep.subr.mxu0 0.0
    %3429 = vmatpush1.msra.mxu0 0.0
    %3430 = vmatprep.subr.mxu0 0.0
    %3431 = vmatpush1.msra.mxu0 0.0
    %3432 = vmatprep.subr.mxu0 0.0
    %3433 = vmatpush1.msra.mxu0 0.0
    %3434 = vmatprep.subr.mxu0 0.0
    %3435 = vmatpush1.msra.mxu0 0.0
    %3436 = vmatprep.subr.mxu0 0.0
    %3437 = vmatpush1.msra.mxu0 0.0
    %3438 = vmatprep.subr.mxu0 0.0
    %3439 = vmatpush1.msra.mxu0 0.0
    %3440 = vmatprep.mubr.f32.mxu0 0.0
    %3441 = vmatmul.mubr.f32.gmra.mrb[0].mxu0 %v3374
    %v3442 = vpop.f32.mrb[0].mxu0
    %v3443 = vadd.f32 0.0, %v3442
    %v3444 = vpop.f32.mrb[0].mxu0
    %3445 = vdwg.mxu0
    %3446 = vrot.lane.b32.xlu0 %v2360, 48
    %v3447 = vpop.permute.xlu0 %3446
    %v3450 = vsel %vm330, %v3369, 0
    %3452 = vmatprep.subr.mxu0 0.0
    %3453 = vmatpush1.msra.mxu0 %v3447
    %3454 = vmatprep.subr.mxu0 0.0
    %3455 = vmatpush1.msra.mxu0 0.0
    %3456 = vmatprep.subr.mxu0 0.0
    %3457 = vmatpush1.msra.mxu0 0.0
    %3458 = vmatprep.subr.mxu0 0.0
    %3459 = vmatpush1.msra.mxu0 0.0
    %3460 = vmatprep.subr.mxu0 0.0
    %3461 = vmatpush1.msra.mxu0 0.0
    %3462 = vmatprep.subr.mxu0 0.0
    %3463 = vmatpush1.msra.mxu0 0.0
    %3464 = vmatprep.subr.mxu0 0.0
    %3465 = vmatpush1.msra.mxu0 0.0
    %3466 = vmatprep.subr.mxu0 0.0
    %3467 = vmatpush1.msra.mxu0 0.0
    %3468 = vmatprep.subr.mxu0 0.0
    %3469 = vmatpush1.msra.mxu0 0.0
    %3470 = vmatprep.subr.mxu0 0.0
    %3471 = vmatpush1.msra.mxu0 0.0
    %3472 = vmatprep.subr.mxu0 0.0
    %3473 = vmatpush1.msra.mxu0 0.0
    %3474 = vmatprep.subr.mxu0 0.0
    %3475 = vmatpush1.msra.mxu0 0.0
    %3476 = vmatprep.subr.mxu0 0.0
    %3477 = vmatpush1.msra.mxu0 0.0
    %3478 = vmatprep.subr.mxu0 0.0
    %3479 = vmatpush1.msra.mxu0 0.0
    %3480 = vmatprep.subr.mxu0 0.0
    %3481 = vmatpush1.msra.mxu0 0.0
    %3482 = vmatprep.subr.mxu0 0.0
    %3483 = vmatpush1.msra.mxu0 0.0
    %3484 = vmatprep.subr.mxu0 0.0
    %3485 = vmatpush1.msra.mxu0 0.0
    %3486 = vmatprep.subr.mxu0 0.0
    %3487 = vmatpush1.msra.mxu0 0.0
    %3488 = vmatprep.subr.mxu0 0.0
    %3489 = vmatpush1.msra.mxu0 0.0
    %3490 = vmatprep.subr.mxu0 0.0
    %3491 = vmatpush1.msra.mxu0 0.0
    %3492 = vmatprep.subr.mxu0 0.0
    %3493 = vmatpush1.msra.mxu0 0.0
    %3494 = vmatprep.subr.mxu0 0.0
    %3495 = vmatpush1.msra.mxu0 0.0
    %3496 = vmatprep.subr.mxu0 0.0
    %3497 = vmatpush1.msra.mxu0 0.0
    %3498 = vmatprep.subr.mxu0 0.0
    %3499 = vmatpush1.msra.mxu0 0.0
    %3500 = vmatprep.subr.mxu0 0.0
    %3501 = vmatpush1.msra.mxu0 0.0
    %3502 = vmatprep.subr.mxu0 0.0
    %3503 = vmatpush1.msra.mxu0 0.0
    %3504 = vmatprep.subr.mxu0 0.0
    %3505 = vmatpush1.msra.mxu0 0.0
    %3506 = vmatprep.subr.mxu0 0.0
    %3507 = vmatpush1.msra.mxu0 0.0
    %3508 = vmatprep.subr.mxu0 0.0
    %3509 = vmatpush1.msra.mxu0 0.0
    %3510 = vmatprep.subr.mxu0 0.0
    %3511 = vmatpush1.msra.mxu0 0.0
    %3512 = vmatprep.subr.mxu0 0.0
    %3513 = vmatpush1.msra.mxu0 0.0
    %3514 = vmatprep.subr.mxu0 0.0
    %3515 = vmatpush1.msra.mxu0 0.0
    %3516 = vmatprep.mubr.f32.mxu0 0.0
    %3517 = vmatmul.mubr.f32.gmra.mrb[0].mxu0 %v3450
    %v3518 = vpop.f32.mrb[0].mxu0
    %v3519 = vadd.f32 0.0, %v3518
    %v3520 = vpop.f32.mrb[0].mxu0
    %3521 = vdwg.mxu0
    %v3523 = vsel %vm330, %v3443, 0
    %v3526 = vsel %vm330, %v3519, 0
    %3528 = vmatprep.subr.mxu0 0.0
    %3529 = vmatpush1.msra.mxu0 %v2366
    %3530 = vmatprep.subr.mxu0 0.0
    %3531 = vmatpush1.msra.mxu0 0.0
    %3532 = vmatprep.subr.mxu0 0.0
    %3533 = vmatpush1.msra.mxu0 0.0
    %3534 = vmatprep.subr.mxu0 0.0
    %3535 = vmatpush1.msra.mxu0 0.0
    %3536 = vmatprep.subr.mxu0 0.0
    %3537 = vmatpush1.msra.mxu0 0.0
    %3538 = vmatprep.subr.mxu0 0.0
    %3539 = vmatpush1.msra.mxu0 0.0
    %3540 = vmatprep.subr.mxu0 0.0
    %3541 = vmatpush1.msra.mxu0 0.0
    %3542 = vmatprep.subr.mxu0 0.0
    %3543 = vmatpush1.msra.mxu0 0.0
    %3544 = vmatprep.subr.mxu0 0.0
    %3545 = vmatpush1.msra.mxu0 0.0
    %3546 = vmatprep.subr.mxu0 0.0
    %3547 = vmatpush1.msra.mxu0 0.0
    %3548 = vmatprep.subr.mxu0 0.0
    %3549 = vmatpush1.msra.mxu0 0.0
    %3550 = vmatprep.subr.mxu0 0.0
    %3551 = vmatpush1.msra.mxu0 0.0
    %3552 = vmatprep.subr.mxu0 0.0
    %3553 = vmatpush1.msra.mxu0 0.0
    %3554 = vmatprep.subr.mxu0 0.0
    %3555 = vmatpush1.msra.mxu0 0.0
    %3556 = vmatprep.subr.mxu0 0.0
    %3557 = vmatpush1.msra.mxu0 0.0
    %3558 = vmatprep.subr.mxu0 0.0
    %3559 = vmatpush1.msra.mxu0 0.0
    %3560 = vmatprep.subr.mxu0 0.0
    %3561 = vmatpush1.msra.mxu0 0.0
    %3562 = vmatprep.subr.mxu0 0.0
    %3563 = vmatpush1.msra.mxu0 0.0
    %3564 = vmatprep.subr.mxu0 0.0
    %3565 = vmatpush1.msra.mxu0 0.0
    %3566 = vmatprep.subr.mxu0 0.0
    %3567 = vmatpush1.msra.mxu0 0.0
    %3568 = vmatprep.subr.mxu0 0.0
    %3569 = vmatpush1.msra.mxu0 0.0
    %3570 = vmatprep.subr.mxu0 0.0
    %3571 = vmatpush1.msra.mxu0 0.0
    %3572 = vmatprep.subr.mxu0 0.0
    %3573 = vmatpush1.msra.mxu0 0.0
    %3574 = vmatprep.subr.mxu0 0.0
    %3575 = vmatpush1.msra.mxu0 0.0
    %3576 = vmatprep.subr.mxu0 0.0
    %3577 = vmatpush1.msra.mxu0 0.0
    %3578 = vmatprep.subr.mxu0 0.0
    %3579 = vmatpush1.msra.mxu0 0.0
    %3580 = vmatprep.subr.mxu0 0.0
    %3581 = vmatpush1.msra.mxu0 0.0
    %3582 = vmatprep.subr.mxu0 0.0
    %3583 = vmatpush1.msra.mxu0 0.0
    %3584 = vmatprep.subr.mxu0 0.0
    %3585 = vmatpush1.msra.mxu0 0.0
    %3586 = vmatprep.subr.mxu0 0.0
    %3587 = vmatpush1.msra.mxu0 0.0
    %3588 = vmatprep.subr.mxu0 0.0
    %3589 = vmatpush1.msra.mxu0 0.0
    %3590 = vmatprep.subr.mxu0 0.0
    %3591 = vmatpush1.msra.mxu0 0.0
    %3592 = vmatprep.mubr.f32.mxu0 0.0
    %3593 = vmatmul.mubr.f32.gmra.mrb[0].mxu0 %v3523
    %v3594 = vpop.f32.mrb[0].mxu0
    %v3595 = vadd.f32 0.0, %v3594
    %v3596 = vpop.f32.mrb[0].mxu0
    %3597 = vmatprep.mubr.f32.mxu0 0.0
    %3598 = vmatmul.mubr.f32.gmra.mrb[0].mxu0 %v3526
    %v3599 = vpop.f32.mrb[0].mxu0
    %v3600 = vadd.f32 0.0, %v3599
    %v3601 = vpop.f32.mrb[0].mxu0
    %3602 = vdwg.mxu0
    %v3603 = vadd.f32 %v3184, %v3595
    %v3604 = vadd.f32 %v3189, %v3600
    %3605 = vrot.lane.b32.xlu0 %v2368, 104
    %v3606 = vpop.permute.xlu0 %3605
    %3607 = vrot.lane.b32.xlu0 %v2355, 72
    %v3608 = vpop.permute.xlu0 %3607
    %v3609 = vsel %vm330, %v3606, 0
    %v3611 = vsel %vm330, %v3608, 0
    %3613 = vmatprep.subr.mxu0 0.0
    %3614 = vmatpush1.xpose.msra.mxu0 %v3611
    %3615 = vmatprep.subr.mxu0 0.0
    %3616 = vmatpush1.xpose.msra.mxu0 0.0
    %3617 = vmatprep.subr.mxu0 0.0
    %3618 = vmatpush1.xpose.msra.mxu0 0.0
    %3619 = vmatprep.subr.mxu0 0.0
    %3620 = vmatpush1.xpose.msra.mxu0 0.0
    %3621 = vmatprep.subr.mxu0 0.0
    %3622 = vmatpush1.xpose.msra.mxu0 0.0
    %3623 = vmatprep.subr.mxu0 0.0
    %3624 = vmatpush1.xpose.msra.mxu0 0.0
    %3625 = vmatprep.subr.mxu0 0.0
    %3626 = vmatpush1.xpose.msra.mxu0 0.0
    %3627 = vmatprep.subr.mxu0 0.0
    %3628 = vmatpush1.xpose.msra.mxu0 0.0
    %3629 = vmatprep.subr.mxu0 0.0
    %3630 = vmatpush1.xpose.msra.mxu0 0.0
    %3631 = vmatprep.subr.mxu0 0.0
    %3632 = vmatpush1.xpose.msra.mxu0 0.0
    %3633 = vmatprep.subr.mxu0 0.0
    %3634 = vmatpush1.xpose.msra.mxu0 0.0
    %3635 = vmatprep.subr.mxu0 0.0
    %3636 = vmatpush1.xpose.msra.mxu0 0.0
    %3637 = vmatprep.subr.mxu0 0.0
    %3638 = vmatpush1.xpose.msra.mxu0 0.0
    %3639 = vmatprep.subr.mxu0 0.0
    %3640 = vmatpush1.xpose.msra.mxu0 0.0
    %3641 = vmatprep.subr.mxu0 0.0
    %3642 = vmatpush1.xpose.msra.mxu0 0.0
    %3643 = vmatprep.subr.mxu0 0.0
    %3644 = vmatpush1.xpose.msra.mxu0 0.0
    %3645 = vmatprep.subr.mxu0 0.0
    %3646 = vmatpush1.xpose.msra.mxu0 0.0
    %3647 = vmatprep.subr.mxu0 0.0
    %3648 = vmatpush1.xpose.msra.mxu0 0.0
    %3649 = vmatprep.subr.mxu0 0.0
    %3650 = vmatpush1.xpose.msra.mxu0 0.0
    %3651 = vmatprep.subr.mxu0 0.0
    %3652 = vmatpush1.xpose.msra.mxu0 0.0
    %3653 = vmatprep.subr.mxu0 0.0
    %3654 = vmatpush1.xpose.msra.mxu0 0.0
    %3655 = vmatprep.subr.mxu0 0.0
    %3656 = vmatpush1.xpose.msra.mxu0 0.0
    %3657 = vmatprep.subr.mxu0 0.0
    %3658 = vmatpush1.xpose.msra.mxu0 0.0
    %3659 = vmatprep.subr.mxu0 0.0
    %3660 = vmatpush1.xpose.msra.mxu0 0.0
    %3661 = vmatprep.subr.mxu0 0.0
    %3662 = vmatpush1.xpose.msra.mxu0 0.0
    %3663 = vmatprep.subr.mxu0 0.0
    %3664 = vmatpush1.xpose.msra.mxu0 0.0
    %3665 = vmatprep.subr.mxu0 0.0
    %3666 = vmatpush1.xpose.msra.mxu0 0.0
    %3667 = vmatprep.subr.mxu0 0.0
    %3668 = vmatpush1.xpose.msra.mxu0 0.0
    %3669 = vmatprep.subr.mxu0 0.0
    %3670 = vmatpush1.xpose.msra.mxu0 0.0
    %3671 = vmatprep.subr.mxu0 0.0
    %3672 = vmatpush1.xpose.msra.mxu0 0.0
    %3673 = vmatprep.subr.mxu0 0.0
    %3674 = vmatpush1.xpose.msra.mxu0 0.0
    %3675 = vmatprep.subr.mxu0 0.0
    %3676 = vmatpush1.xpose.msra.mxu0 0.0
    %3677 = vmatprep.mubr.f32.mxu0 0.0
    %3678 = vmatmul.mubr.f32.gmra.mrb[0].mxu0 %v3609
    %v3679 = vpop.f32.mrb[0].mxu0
    %v3680 = vadd.f32 0.0, %v3679
    %v3681 = vpop.f32.mrb[0].mxu0
    %3682 = vdwg.mxu0
    %3683 = vrot.lane.b32.xlu0 %v2369, 104
    %v3684 = vpop.permute.xlu0 %3683
    %3685 = vrot.lane.b32.xlu0 %v2360, 72
    %v3686 = vpop.permute.xlu0 %3685
    %v3687 = vsel %vm330, %v3684, 0
    %v3689 = vsel %vm330, %v3686, 0
    %3691 = vmatprep.subr.mxu0 0.0
    %3692 = vmatpush1.xpose.msra.mxu0 %v3689
    %3693 = vmatprep.subr.mxu0 0.0
    %3694 = vmatpush1.xpose.msra.mxu0 0.0
    %3695 = vmatprep.subr.mxu0 0.0
    %3696 = vmatpush1.xpose.msra.mxu0 0.0
    %3697 = vmatprep.subr.mxu0 0.0
    %3698 = vmatpush1.xpose.msra.mxu0 0.0
    %3699 = vmatprep.subr.mxu0 0.0
    %3700 = vmatpush1.xpose.msra.mxu0 0.0
    %3701 = vmatprep.subr.mxu0 0.0
    %3702 = vmatpush1.xpose.msra.mxu0 0.0
    %3703 = vmatprep.subr.mxu0 0.0
    %3704 = vmatpush1.xpose.msra.mxu0 0.0
    %3705 = vmatprep.subr.mxu0 0.0
    %3706 = vmatpush1.xpose.msra.mxu0 0.0
    %3707 = vmatprep.subr.mxu0 0.0
    %3708 = vmatpush1.xpose.msra.mxu0 0.0
    %3709 = vmatprep.subr.mxu0 0.0
    %3710 = vmatpush1.xpose.msra.mxu0 0.0
    %3711 = vmatprep.subr.mxu0 0.0
    %3712 = vmatpush1.xpose.msra.mxu0 0.0
    %3713 = vmatprep.subr.mxu0 0.0
    %3714 = vmatpush1.xpose.msra.mxu0 0.0
    %3715 = vmatprep.subr.mxu0 0.0
    %3716 = vmatpush1.xpose.msra.mxu0 0.0
    %3717 = vmatprep.subr.mxu0 0.0
    %3718 = vmatpush1.xpose.msra.mxu0 0.0
    %3719 = vmatprep.subr.mxu0 0.0
    %3720 = vmatpush1.xpose.msra.mxu0 0.0
    %3721 = vmatprep.subr.mxu0 0.0
    %3722 = vmatpush1.xpose.msra.mxu0 0.0
    %3723 = vmatprep.subr.mxu0 0.0
    %3724 = vmatpush1.xpose.msra.mxu0 0.0
    %3725 = vmatprep.subr.mxu0 0.0
    %3726 = vmatpush1.xpose.msra.mxu0 0.0
    %3727 = vmatprep.subr.mxu0 0.0
    %3728 = vmatpush1.xpose.msra.mxu0 0.0
    %3729 = vmatprep.subr.mxu0 0.0
    %3730 = vmatpush1.xpose.msra.mxu0 0.0
    %3731 = vmatprep.subr.mxu0 0.0
    %3732 = vmatpush1.xpose.msra.mxu0 0.0
    %3733 = vmatprep.subr.mxu0 0.0
    %3734 = vmatpush1.xpose.msra.mxu0 0.0
    %3735 = vmatprep.subr.mxu0 0.0
    %3736 = vmatpush1.xpose.msra.mxu0 0.0
    %3737 = vmatprep.subr.mxu0 0.0
    %3738 = vmatpush1.xpose.msra.mxu0 0.0
    %3739 = vmatprep.subr.mxu0 0.0
    %3740 = vmatpush1.xpose.msra.mxu0 0.0
    %3741 = vmatprep.subr.mxu0 0.0
    %3742 = vmatpush1.xpose.msra.mxu0 0.0
    %3743 = vmatprep.subr.mxu0 0.0
    %3744 = vmatpush1.xpose.msra.mxu0 0.0
    %3745 = vmatprep.subr.mxu0 0.0
    %3746 = vmatpush1.xpose.msra.mxu0 0.0
    %3747 = vmatprep.subr.mxu0 0.0
    %3748 = vmatpush1.xpose.msra.mxu0 0.0
    %3749 = vmatprep.subr.mxu0 0.0
    %3750 = vmatpush1.xpose.msra.mxu0 0.0
    %3751 = vmatprep.subr.mxu0 0.0
    %3752 = vmatpush1.xpose.msra.mxu0 0.0
    %3753 = vmatprep.subr.mxu0 0.0
    %3754 = vmatpush1.xpose.msra.mxu0 0.0
    %3755 = vmatprep.mubr.f32.mxu0 0.0
    %3756 = vmatmul.mubr.f32.gmra.mrb[0].mxu0 %v3687
    %v3757 = vpop.f32.mrb[0].mxu0
    %v3758 = vadd.f32 0.0, %v3757
    %v3759 = vpop.f32.mrb[0].mxu0
    %3760 = vdwg.mxu0
    %v3761 = vsel %vm330, %v3680, -inf
    %3762 = vmax.xlane.f32.xlu0 %v3761
    %v3763 = vpop.xlane.xlu0 %3762
    %v3764 = vsel %vm330, %v3758, -inf
    %3765 = vmax.xlane.f32.xlu0 %v3764
    %v3766 = vpop.xlane.xlu0 %3765
    %v3767 = vsub.f32 %v3680, %v3763
    %v3768 = vsub.f32 %v3758, %v3766
    %v3769 = vmul.f32 %v3767, 1.442695
    %v3770 = vpow.pop %v3769
    %v3771 = vmul.f32 %v3768, 1.442695
    %v3772 = vpow.pop %v3771
    %v3773 = vsel %vm330, %v3770, 0.0
    %3774 = vadd.xlane.f32.xlu0 %v3773
    %v3775 = vpop.xlane.xlu0 %3774
    %v3776 = vsel %vm330, %v3772, 0.0
    %3777 = vadd.xlane.f32.xlu0 %v3776
    %v3778 = vpop.xlane.xlu0 %3777
    %v3779 = vrcp.pop %v3775
    %v3780 = vmul.f32 %v3770, %v3779
    %v3781 = vrcp.pop %v3778
    %v3782 = vmul.f32 %v3772, %v3781
    %3783 = vrot.lane.b32.xlu0 %v2355, 40
    %v3784 = vpop.permute.xlu0 %3783
    %v3787 = vsel %vm330, %v3780, 0
    %3789 = vmatprep.subr.mxu0 0.0
    %3790 = vmatpush1.msra.mxu0 %v3784
    %3791 = vmatprep.subr.mxu0 0.0
    %3792 = vmatpush1.msra.mxu0 0.0
    %3793 = vmatprep.subr.mxu0 0.0
    %3794 = vmatpush1.msra.mxu0 0.0
    %3795 = vmatprep.subr.mxu0 0.0
    %3796 = vmatpush1.msra.mxu0 0.0
    %3797 = vmatprep.subr.mxu0 0.0
    %3798 = vmatpush1.msra.mxu0 0.0
    %3799 = vmatprep.subr.mxu0 0.0
    %3800 = vmatpush1.msra.mxu0 0.0
    %3801 = vmatprep.subr.mxu0 0.0
    %3802 = vmatpush1.msra.mxu0 0.0
    %3803 = vmatprep.subr.mxu0 0.0
    %3804 = vmatpush1.msra.mxu0 0.0
    %3805 = vmatprep.subr.mxu0 0.0
    %3806 = vmatpush1.msra.mxu0 0.0
    %3807 = vmatprep.subr.mxu0 0.0
    %3808 = vmatpush1.msra.mxu0 0.0
    %3809 = vmatprep.subr.mxu0 0.0
    %3810 = vmatpush1.msra.mxu0 0.0
    %3811 = vmatprep.subr.mxu0 0.0
    %3812 = vmatpush1.msra.mxu0 0.0
    %3813 = vmatprep.subr.mxu0 0.0
    %3814 = vmatpush1.msra.mxu0 0.0
    %3815 = vmatprep.subr.mxu0 0.0
    %3816 = vmatpush1.msra.mxu0 0.0
    %3817 = vmatprep.subr.mxu0 0.0
    %3818 = vmatpush1.msra.mxu0 0.0
    %3819 = vmatprep.subr.mxu0 0.0
    %3820 = vmatpush1.msra.mxu0 0.0
    %3821 = vmatprep.subr.mxu0 0.0
    %3822 = vmatpush1.msra.mxu0 0.0
    %3823 = vmatprep.subr.mxu0 0.0
    %3824 = vmatpush1.msra.mxu0 0.0
    %3825 = vmatprep.subr.mxu0 0.0
    %3826 = vmatpush1.msra.mxu0 0.0
    %3827 = vmatprep.subr.mxu0 0.0
    %3828 = vmatpush1.msra.mxu0 0.0
    %3829 = vmatprep.subr.mxu0 0.0
    %3830 = vmatpush1.msra.mxu0 0.0
    %3831 = vmatprep.subr.mxu0 0.0
    %3832 = vmatpush1.msra.mxu0 0.0
    %3833 = vmatprep.subr.mxu0 0.0
    %3834 = vmatpush1.msra.mxu0 0.0
    %3835 = vmatprep.subr.mxu0 0.0
    %3836 = vmatpush1.msra.mxu0 0.0
    %3837 = vmatprep.subr.mxu0 0.0
    %3838 = vmatpush1.msra.mxu0 0.0
    %3839 = vmatprep.subr.mxu0 0.0
    %3840 = vmatpush1.msra.mxu0 0.0
    %3841 = vmatprep.subr.mxu0 0.0
    %3842 = vmatpush1.msra.mxu0 0.0
    %3843 = vmatprep.subr.mxu0 0.0
    %3844 = vmatpush1.msra.mxu0 0.0
    %3845 = vmatprep.subr.mxu0 0.0
    %3846 = vmatpush1.msra.mxu0 0.0
    %3847 = vmatprep.subr.mxu0 0.0
    %3848 = vmatpush1.msra.mxu0 0.0
    %3849 = vmatprep.subr.mxu0 0.0
    %3850 = vmatpush1.msra.mxu0 0.0
    %3851 = vmatprep.subr.mxu0 0.0
    %3852 = vmatpush1.msra.mxu0 0.0
    %3853 = vmatprep.mubr.f32.mxu0 0.0
    %3854 = vmatmul.mubr.f32.gmra.mrb[0].mxu0 %v3787
    %v3855 = vpop.f32.mrb[0].mxu0
    %v3856 = vadd.f32 0.0, %v3855
    %v3857 = vpop.f32.mrb[0].mxu0
    %3858 = vdwg.mxu0
    %3859 = vrot.lane.b32.xlu0 %v2360, 40
    %v3860 = vpop.permute.xlu0 %3859
    %v3863 = vsel %vm330, %v3782, 0
    %3865 = vmatprep.subr.mxu0 0.0
    %3866 = vmatpush1.msra.mxu0 %v3860
    %3867 = vmatprep.subr.mxu0 0.0
    %3868 = vmatpush1.msra.mxu0 0.0
    %3869 = vmatprep.subr.mxu0 0.0
    %3870 = vmatpush1.msra.mxu0 0.0
    %3871 = vmatprep.subr.mxu0 0.0
    %3872 = vmatpush1.msra.mxu0 0.0
    %3873 = vmatprep.subr.mxu0 0.0
    %3874 = vmatpush1.msra.mxu0 0.0
    %3875 = vmatprep.subr.mxu0 0.0
    %3876 = vmatpush1.msra.mxu0 0.0
    %3877 = vmatprep.subr.mxu0 0.0
    %3878 = vmatpush1.msra.mxu0 0.0
    %3879 = vmatprep.subr.mxu0 0.0
    %3880 = vmatpush1.msra.mxu0 0.0
    %3881 = vmatprep.subr.mxu0 0.0
    %3882 = vmatpush1.msra.mxu0 0.0
    %3883 = vmatprep.subr.mxu0 0.0
    %3884 = vmatpush1.msra.mxu0 0.0
    %3885 = vmatprep.subr.mxu0 0.0
    %3886 = vmatpush1.msra.mxu0 0.0
    %3887 = vmatprep.subr.mxu0 0.0
    %3888 = vmatpush1.msra.mxu0 0.0
    %3889 = vmatprep.subr.mxu0 0.0
    %3890 = vmatpush1.msra.mxu0 0.0
    %3891 = vmatprep.subr.mxu0 0.0
    %3892 = vmatpush1.msra.mxu0 0.0
    %3893 = vmatprep.subr.mxu0 0.0
    %3894 = vmatpush1.msra.mxu0 0.0
    %3895 = vmatprep.subr.mxu0 0.0
    %3896 = vmatpush1.msra.mxu0 0.0
    %3897 = vmatprep.subr.mxu0 0.0
    %3898 = vmatpush1.msra.mxu0 0.0
    %3899 = vmatprep.subr.mxu0 0.0
    %3900 = vmatpush1.msra.mxu0 0.0
    %3901 = vmatprep.subr.mxu0 0.0
    %3902 = vmatpush1.msra.mxu0 0.0
    %3903 = vmatprep.subr.mxu0 0.0
    %3904 = vmatpush1.msra.mxu0 0.0
    %3905 = vmatprep.subr.mxu0 0.0
    %3906 = vmatpush1.msra.mxu0 0.0
    %3907 = vmatprep.subr.mxu0 0.0
    %3908 = vmatpush1.msra.mxu0 0.0
    %3909 = vmatprep.subr.mxu0 0.0
    %3910 = vmatpush1.msra.mxu0 0.0
    %3911 = vmatprep.subr.mxu0 0.0
    %3912 = vmatpush1.msra.mxu0 0.0
    %3913 = vmatprep.subr.mxu0 0.0
    %3914 = vmatpush1.msra.mxu0 0.0
    %3915 = vmatprep.subr.mxu0 0.0
    %3916 = vmatpush1.msra.mxu0 0.0
    %3917 = vmatprep.subr.mxu0 0.0
    %3918 = vmatpush1.msra.mxu0 0.0
    %3919 = vmatprep.subr.mxu0 0.0
    %3920 = vmatpush1.msra.mxu0 0.0
    %3921 = vmatprep.subr.mxu0 0.0
    %3922 = vmatpush1.msra.mxu0 0.0
    %3923 = vmatprep.subr.mxu0 0.0
    %3924 = vmatpush1.msra.mxu0 0.0
    %3925 = vmatprep.subr.mxu0 0.0
    %3926 = vmatpush1.msra.mxu0 0.0
    %3927 = vmatprep.subr.mxu0 0.0
    %3928 = vmatpush1.msra.mxu0 0.0
    %3929 = vmatprep.mubr.f32.mxu0 0.0
    %3930 = vmatmul.mubr.f32.gmra.mrb[0].mxu0 %v3863
    %v3931 = vpop.f32.mrb[0].mxu0
    %v3932 = vadd.f32 0.0, %v3931
    %v3933 = vpop.f32.mrb[0].mxu0
    %3934 = vdwg.mxu0
    %v3936 = vsel %vm330, %v3856, 0
    %v3939 = vsel %vm330, %v3932, 0
    %3941 = vmatprep.subr.mxu0 0.0
    %3942 = vmatpush1.msra.mxu0 %v2367
    %3943 = vmatprep.subr.mxu0 0.0
    %3944 = vmatpush1.msra.mxu0 0.0
    %3945 = vmatprep.subr.mxu0 0.0
    %3946 = vmatpush1.msra.mxu0 0.0
    %3947 = vmatprep.subr.mxu0 0.0
    %3948 = vmatpush1.msra.mxu0 0.0
    %3949 = vmatprep.subr.mxu0 0.0
    %3950 = vmatpush1.msra.mxu0 0.0
    %3951 = vmatprep.subr.mxu0 0.0
    %3952 = vmatpush1.msra.mxu0 0.0
    %3953 = vmatprep.subr.mxu0 0.0
    %3954 = vmatpush1.msra.mxu0 0.0
    %3955 = vmatprep.subr.mxu0 0.0
    %3956 = vmatpush1.msra.mxu0 0.0
    %3957 = vmatprep.subr.mxu0 0.0
    %3958 = vmatpush1.msra.mxu0 0.0
    %3959 = vmatprep.subr.mxu0 0.0
    %3960 = vmatpush1.msra.mxu0 0.0
    %3961 = vmatprep.subr.mxu0 0.0
    %3962 = vmatpush1.msra.mxu0 0.0
    %3963 = vmatprep.subr.mxu0 0.0
    %3964 = vmatpush1.msra.mxu0 0.0
    %3965 = vmatprep.subr.mxu0 0.0
    %3966 = vmatpush1.msra.mxu0 0.0
    %3967 = vmatprep.subr.mxu0 0.0
    %3968 = vmatpush1.msra.mxu0 0.0
    %3969 = vmatprep.subr.mxu0 0.0
    %3970 = vmatpush1.msra.mxu0 0.0
    %3971 = vmatprep.subr.mxu0 0.0
    %3972 = vmatpush1.msra.mxu0 0.0
    %3973 = vmatprep.subr.mxu0 0.0
    %3974 = vmatpush1.msra.mxu0 0.0
    %3975 = vmatprep.subr.mxu0 0.0
    %3976 = vmatpush1.msra.mxu0 0.0
    %3977 = vmatprep.subr.mxu0 0.0
    %3978 = vmatpush1.msra.mxu0 0.0
    %3979 = vmatprep.subr.mxu0 0.0
    %3980 = vmatpush1.msra.mxu0 0.0
    %3981 = vmatprep.subr.mxu0 0.0
    %3982 = vmatpush1.msra.mxu0 0.0
    %3983 = vmatprep.subr.mxu0 0.0
    %3984 = vmatpush1.msra.mxu0 0.0
    %3985 = vmatprep.subr.mxu0 0.0
    %3986 = vmatpush1.msra.mxu0 0.0
    %3987 = vmatprep.subr.mxu0 0.0
    %3988 = vmatpush1.msra.mxu0 0.0
    %3989 = vmatprep.subr.mxu0 0.0
    %3990 = vmatpush1.msra.mxu0 0.0
    %3991 = vmatprep.subr.mxu0 0.0
    %3992 = vmatpush1.msra.mxu0 0.0
    %3993 = vmatprep.subr.mxu0 0.0
    %3994 = vmatpush1.msra.mxu0 0.0
    %3995 = vmatprep.subr.mxu0 0.0
    %3996 = vmatpush1.msra.mxu0 0.0
    %3997 = vmatprep.subr.mxu0 0.0
    %3998 = vmatpush1.msra.mxu0 0.0
    %3999 = vmatprep.subr.mxu0 0.0
    %4000 = vmatpush1.msra.mxu0 0.0
    %4001 = vmatprep.subr.mxu0 0.0
    %4002 = vmatpush1.msra.mxu0 0.0
    %4003 = vmatprep.subr.mxu0 0.0
    %4004 = vmatpush1.msra.mxu0 0.0
    %4005 = vmatprep.mubr.f32.mxu0 0.0
    %4006 = vmatmul.mubr.f32.gmra.mrb[0].mxu0 %v3936
    %v4007 = vpop.f32.mrb[0].mxu0
    %v4008 = vadd.f32 0.0, %v4007
    %v4009 = vpop.f32.mrb[0].mxu0
    %4010 = vmatprep.mubr.f32.mxu0 0.0
    %4011 = vmatmul.mubr.f32.gmra.mrb[0].mxu0 %v3939
    %v4012 = vpop.f32.mrb[0].mxu0
    %v4013 = vadd.f32 0.0, %v4012
    %v4014 = vpop.f32.mrb[0].mxu0
    %4015 = vdwg.mxu0
    %v4016 = vadd.f32 %v3603, %v4008
    %v4017 = vadd.f32 %v3604, %v4013
    %s4018 = scalar_lea.vmem %s6, 1
    %v4019 = vld [vmem:[%s4018] sm:$0x1]
    %v4021 = vlaneseq
    %v4022 = vshrl.u32 %v4021, 7
    %v4023 = vsub.s32 0, %v4022
    %v4024 = vrot.slane %v4019, %v4023
    %v4026 = vadd.f32 %v4016, %v4024
    %v4027 = vadd.f32 %v4017, %v4024
    %v4028 = vadd.f32 %v2267, %v4026
    %v4029 = vadd.f32 %v2268, %v4027
    %s4030 = scalar_lea.vmem %s7, 1
    %v4031 = vld [vmem:[%s4030] sm:$0x1]
    %s4032 = scalar_lea.vmem %s8, 1
    %v4033 = vld [vmem:[%s4032] sm:$0x1]
    %v4034 = vsel %vm239, %v4028, 0.0
    %4035 = vadd.xlane.f32.xlu0 %v4034
    %v4036 = vpop.xlane.xlu0 %4035
    %v4037 = vsel %vm239, %v4029, 0.0
    %4038 = vadd.xlane.f32.xlu0 %v4037
    %v4039 = vpop.xlane.xlu0 %4038
    %v4040 = vmul.f32 %v4036, %v1995
    %v4041 = vmul.f32 %v4039, %v1995
    %v4042 = vsub.f32 %v4028, %v4040
    %v4043 = vsub.f32 %v4029, %v4041
    %v4044 = vmul.f32 %v4042, %v4042
    %v4045 = vmul.f32 %v4043, %v4043
    %v4046 = vsel %vm239, %v4044, 0.0
    %4047 = vadd.xlane.f32.xlu0 %v4046
    %v4048 = vpop.xlane.xlu0 %4047
    %v4049 = vsel %vm239, %v4045, 0.0
    %4050 = vadd.xlane.f32.xlu0 %v4049
    %v4051 = vpop.xlane.xlu0 %4050
    %v4052 = vmul.f32 %v4048, %v1995
    %v4053 = vmul.f32 %v4051, %v1995
    %v4054 = vadd.f32 %v4052, 1e-05
    %v4055 = vadd.f32 %v4053, 1e-05
    %v4056 = vrsqrt.pop %v4054
    %v4057 = vrsqrt.pop %v4055
    %v4058 = vmul.f32 %v4042, %v4056
    %v4059 = vmul.f32 %v4043, %v4057
    %v4061 = vlaneseq
    %v4062 = vshrl.u32 %v4061, 7
    %v4063 = vsub.s32 0, %v4062
    %v4064 = vrot.slane %v4031, %v4063
    %v4066 = vmul.f32 %v4058, %v4064
    %v4067 = vmul.f32 %v4059, %v4064
    %v4069 = vlaneseq
    %v4070 = vshrl.u32 %v4069, 7
    %v4071 = vsub.s32 0, %v4070
    %v4072 = vrot.slane %v4033, %v4071
    %v4074 = vadd.f32 %v4066, %v4072
    %v4075 = vadd.f32 %v4067, %v4072
    %s4076 = scalar_lea.vmem %s9, 32
    %v4077 = vld [vmem:[%s4076] sm:$0xff]
    %v4078 = vld [vmem:[%s4076 + $0x8] sm:$0xff]
    %v4079 = vld [vmem:[%s4076 + $0x10] sm:$0xff]
    %v4080 = vld [vmem:[%s4076 + $0x18] sm:$0xff]
    %s4081 = scalar_lea.vmem [#allocation5], 1
    %v4082 = vld [vmem:[%s4081] sm:$0x1]
    %v4084 = vlaneseq
    %v4085 = vshrl.u32 %v4084, 7
    %v4086 = vsub.s32 0, %v4085
    %v4087 = vrot.slane %v4082, %v4086
    %v4090 = vsel %vm239, %v4074, 0
    %v4093 = vsel %vm239, %v4075, 0
    %4095 = vmatprep.subr.mxu0 0.0
    %4096 = vmatpush1.msra.mxu0 %v4077
    %4097 = vmatprep.subr.mxu0 0.0
    %4098 = vmatpush1.msra.mxu0 %v4078
    %4099 = vmatprep.subr.mxu0 0.0
    %4100 = vmatpush1.msra.mxu0 %v4079
    %4101 = vmatprep.subr.mxu0 0.0
    %4102 = vmatpush1.msra.mxu0 %v4080
    %4103 = vmatprep.subr.mxu0 0.0
    %4104 = vmatpush1.msra.mxu0 0.0
    %4105 = vmatprep.subr.mxu0 0.0
    %4106 = vmatpush1.msra.mxu0 0.0
    %4107 = vmatprep.subr.mxu0 0.0
    %4108 = vmatpush1.msra.mxu0 0.0
    %4109 = vmatprep.subr.mxu0 0.0
    %4110 = vmatpush1.msra.mxu0 0.0
    %4111 = vmatprep.subr.mxu0 0.0
    %4112 = vmatpush1.msra.mxu0 0.0
    %4113 = vmatprep.subr.mxu0 0.0
    %4114 = vmatpush1.msra.mxu0 0.0
    %4115 = vmatprep.subr.mxu0 0.0
    %4116 = vmatpush1.msra.mxu0 0.0
    %4117 = vmatprep.subr.mxu0 0.0
    %4118 = vmatpush1.msra.mxu0 0.0
    %4119 = vmatprep.subr.mxu0 0.0
    %4120 = vmatpush1.msra.mxu0 0.0
    %4121 = vmatprep.subr.mxu0 0.0
    %4122 = vmatpush1.msra.mxu0 0.0
    %4123 = vmatprep.subr.mxu0 0.0
    %4124 = vmatpush1.msra.mxu0 0.0
    %4125 = vmatprep.subr.mxu0 0.0
    %4126 = vmatpush1.msra.mxu0 0.0
    %4127 = vmatprep.subr.mxu0 0.0
    %4128 = vmatpush1.msra.mxu0 0.0
    %4129 = vmatprep.subr.mxu0 0.0
    %4130 = vmatpush1.msra.mxu0 0.0
    %4131 = vmatprep.subr.mxu0 0.0
    %4132 = vmatpush1.msra.mxu0 0.0
    %4133 = vmatprep.subr.mxu0 0.0
    %4134 = vmatpush1.msra.mxu0 0.0
    %4135 = vmatprep.subr.mxu0 0.0
    %4136 = vmatpush1.msra.mxu0 0.0
    %4137 = vmatprep.subr.mxu0 0.0
    %4138 = vmatpush1.msra.mxu0 0.0
    %4139 = vmatprep.subr.mxu0 0.0
    %4140 = vmatpush1.msra.mxu0 0.0
    %4141 = vmatprep.subr.mxu0 0.0
    %4142 = vmatpush1.msra.mxu0 0.0
    %4143 = vmatprep.subr.mxu0 0.0
    %4144 = vmatpush1.msra.mxu0 0.0
    %4145 = vmatprep.subr.mxu0 0.0
    %4146 = vmatpush1.msra.mxu0 0.0
    %4147 = vmatprep.subr.mxu0 0.0
    %4148 = vmatpush1.msra.mxu0 0.0
    %4149 = vmatprep.subr.mxu0 0.0
    %4150 = vmatpush1.msra.mxu0 0.0
    %4151 = vmatprep.subr.mxu0 0.0
    %4152 = vmatpush1.msra.mxu0 0.0
    %4153 = vmatprep.subr.mxu0 0.0
    %4154 = vmatpush1.msra.mxu0 0.0
    %4155 = vmatprep.subr.mxu0 0.0
    %4156 = vmatpush1.msra.mxu0 0.0
    %4157 = vmatprep.subr.mxu0 0.0
    %4158 = vmatpush1.msra.mxu0 0.0
    %4159 = vmatprep.mubr.f32.mxu0 0.0
    %4160 = vmatmul.mubr.f32.gmra.mrb[0].mxu0 %v4090
    %v4161 = vpop.f32.mrb[0].mxu0
    %v4162 = vadd.f32 %v4087, %v4161
    %v4163 = vpop.f32.mrb[0].mxu0
    %4164 = vmatprep.mubr.f32.mxu0 0.0
    %4165 = vmatmul.mubr.f32.gmra.mrb[0].mxu0 %v4093
    %v4166 = vpop.f32.mrb[0].mxu0
    %v4167 = vadd.f32 %v4087, %v4166
    %v4168 = vpop.f32.mrb[0].mxu0
    %4169 = vdwg.mxu0
    %v4170 = vmax.f32 %v4162, 0.0
    %v4171 = vmax.f32 %v4167, 0.0
    %s4172 = scalar_lea.vmem %s11, 64
    %v4173 = vld [vmem:[%s4172] sm:$0xff]
    %v4174 = vld [vmem:[%s4172 + $0x8] sm:$0xff]
    %v4175 = vld [vmem:[%s4172 + $0x10] sm:$0xff]
    %v4176 = vld [vmem:[%s4172 + $0x18] sm:$0xff]
    %v4177 = vld [vmem:[%s4172 + $0x20] sm:$0xff]
    %v4178 = vld [vmem:[%s4172 + $0x28] sm:$0xff]
    %v4179 = vld [vmem:[%s4172 + $0x30] sm:$0xff]
    %v4180 = vld [vmem:[%s4172 + $0x38] sm:$0xff]
    %s4181 = scalar_lea.vmem [#allocation7], 1
    %v4182 = vld [vmem:[%s4181] sm:$0x1]
    %v4184 = vlaneseq
    %v4185 = vshrl.u32 %v4184, 7
    %v4186 = vsub.s32 0, %v4185
    %v4187 = vrot.slane %v4182, %v4186
    %v4190 = vsel %vm2141, %v4170, 0
    %v4193 = vsel %vm2141, %v4171, 0
    %4195 = vmatprep.subr.mxu0 0.0
    %4196 = vmatpush1.msra.mxu0 %v4173
    %4197 = vmatprep.subr.mxu0 0.0
    %4198 = vmatpush1.msra.mxu0 %v4174
    %4199 = vmatprep.subr.mxu0 0.0
    %4200 = vmatpush1.msra.mxu0 %v4175
    %4201 = vmatprep.subr.mxu0 0.0
    %4202 = vmatpush1.msra.mxu0 %v4176
    %4203 = vmatprep.subr.mxu0 0.0
    %4204 = vmatpush1.msra.mxu0 %v4177
    %4205 = vmatprep.subr.mxu0 0.0
    %4206 = vmatpush1.msra.mxu0 %v4178
    %4207 = vmatprep.subr.mxu0 0.0
    %4208 = vmatpush1.msra.mxu0 %v4179
    %4209 = vmatprep.subr.mxu0 0.0
    %4210 = vmatpush1.msra.mxu0 %v4180
    %4211 = vmatprep.subr.mxu0 0.0
    %4212 = vmatpush1.msra.mxu0 0.0
    %4213 = vmatprep.subr.mxu0 0.0
    %4214 = vmatpush1.msra.mxu0 0.0
    %4215 = vmatprep.subr.mxu0 0.0
    %4216 = vmatpush1.msra.mxu0 0.0
    %4217 = vmatprep.subr.mxu0 0.0
    %4218 = vmatpush1.msra.mxu0 0.0
    %4219 = vmatprep.subr.mxu0 0.0
    %4220 = vmatpush1.msra.mxu0 0.0
    %4221 = vmatprep.subr.mxu0 0.0
    %4222 = vmatpush1.msra.mxu0 0.0
    %4223 = vmatprep.subr.mxu0 0.0
    %4224 = vmatpush1.msra.mxu0 0.0
    %4225 = vmatprep.subr.mxu0 0.0
    %4226 = vmatpush1.msra.mxu0 0.0
    %4227 = vmatprep.subr.mxu0 0.0
    %4228 = vmatpush1.msra.mxu0 0.0
    %4229 = vmatprep.subr.mxu0 0.0
    %4230 = vmatpush1.msra.mxu0 0.0
    %4231 = vmatprep.subr.mxu0 0.0
    %4232 = vmatpush1.msra.mxu0 0.0
    %4233 = vmatprep.subr.mxu0 0.0
    %4234 = vmatpush1.msra.mxu0 0.0
    %4235 = vmatprep.subr.mxu0 0.0
    %4236 = vmatpush1.msra.mxu0 0.0
    %4237 = vmatprep.subr.mxu0 0.0
    %4238 = vmatpush1.msra.mxu0 0.0
    %4239 = vmatprep.subr.mxu0 0.0
    %4240 = vmatpush1.msra.mxu0 0.0
    %4241 = vmatprep.subr.mxu0 0.0
    %4242 = vmatpush1.msra.mxu0 0.0
    %4243 = vmatprep.subr.mxu0 0.0
    %4244 = vmatpush1.msra.mxu0 0.0
    %4245 = vmatprep.subr.mxu0 0.0
    %4246 = vmatpush1.msra.mxu0 0.0
    %4247 = vmatprep.subr.mxu0 0.0
    %4248 = vmatpush1.msra.mxu0 0.0
    %4249 = vmatprep.subr.mxu0 0.0
    %4250 = vmatpush1.msra.mxu0 0.0
    %4251 = vmatprep.subr.mxu0 0.0
    %4252 = vmatpush1.msra.mxu0 0.0
    %4253 = vmatprep.subr.mxu0 0.0
    %4254 = vmatpush1.msra.mxu0 0.0
    %4255 = vmatprep.subr.mxu0 0.0
    %4256 = vmatpush1.msra.mxu0 0.0
    %4257 = vmatprep.subr.mxu0 0.0
    %4258 = vmatpush1.msra.mxu0 0.0
    %4259 = vmatprep.mubr.f32.mxu0 0.0
    %4260 = vmatmul.mubr.f32.gmra.mrb[0].mxu0 %v4190
    %v4261 = vpop.f32.mrb[0].mxu0
    %v4262 = vadd.f32 %v4187, %v4261
    %v4263 = vpop.f32.mrb[0].mxu0
    %4264 = vmatprep.mubr.f32.mxu0 0.0
    %4265 = vmatmul.mubr.f32.gmra.mrb[0].mxu0 %v4193
    %v4266 = vpop.f32.mrb[0].mxu0
    %v4267 = vadd.f32 %v4187, %v4266
    %v4268 = vpop.f32.mrb[0].mxu0
    %4269 = vdwg.mxu0
    %v4270 = vadd.f32 %v4074, %v4262
    %v4271 = vadd.f32 %v4075, %v4267
    %s4272 = scalar_lea.vmem [#allocation8], 1
    %v4273 = vld [vmem:[%s4272] sm:$0x1]
    %s4274 = scalar_lea.vmem [#allocation10], 1
    %v4275 = vld [vmem:[%s4274] sm:$0x1]
    %v4276 = vsel %vm239, %v4270, 0.0
    %4277 = vadd.xlane.f32.xlu0 %v4276
    %v4278 = vpop.xlane.xlu0 %4277
    %v4279 = vsel %vm239, %v4271, 0.0
    %4280 = vadd.xlane.f32.xlu0 %v4279
    %v4281 = vpop.xlane.xlu0 %4280
    %v4282 = vmul.f32 %v4278, %v1995
    %v4283 = vmul.f32 %v4281, %v1995
    %v4284 = vsub.f32 %v4270, %v4282
    %v4285 = vsub.f32 %v4271, %v4283
    %v4286 = vmul.f32 %v4284, %v4284
    %v4287 = vmul.f32 %v4285, %v4285
    %v4288 = vsel %vm239, %v4286, 0.0
    %4289 = vadd.xlane.f32.xlu0 %v4288
    %v4290 = vpop.xlane.xlu0 %4289
    %v4291 = vsel %vm239, %v4287, 0.0
    %4292 = vadd.xlane.f32.xlu0 %v4291
    %v4293 = vpop.xlane.xlu0 %4292
    %v4294 = vmul.f32 %v4290, %v1995
    %v4295 = vmul.f32 %v4293, %v1995
    %v4296 = vadd.f32 %v4294, 1e-05
    %v4297 = vadd.f32 %v4295, 1e-05
    %v4298 = vrsqrt.pop %v4296
    %v4299 = vrsqrt.pop %v4297
    %v4300 = vmul.f32 %v4284, %v4298
    %v4301 = vmul.f32 %v4285, %v4299
    %v4303 = vlaneseq
    %v4304 = vshrl.u32 %v4303, 7
    %v4305 = vsub.s32 0, %v4304
    %v4306 = vrot.slane %v4273, %v4305
    %v4308 = vmul.f32 %v4300, %v4306
    %v4309 = vmul.f32 %v4301, %v4306
    %v4311 = vlaneseq
    %v4312 = vshrl.u32 %v4311, 7
    %v4313 = vsub.s32 0, %v4312
    %v4314 = vrot.slane %v4275, %v4313
    %v4316 = vadd.f32 %v4308, %v4314
    %v4317 = vadd.f32 %v4309, %v4314
    %v4318 = vld [vmem:[%s15] sm:$0xff]
    %v4319 = vld [vmem:[%s15 + $0x8] sm:$0xff]
    %v4320 = vld [vmem:[%s15 + $0x10] sm:$0xff]
    %v4321 = vld [vmem:[%s15 + $0x18] sm:$0xff]
    %v4322 = vld [vmem:[#allocation11] sm:$0x1]
    %v4324 = vlaneseq
    %v4325 = vshrl.u32 %v4324, 7
    %v4326 = vsub.s32 0, %v4325
    %v4327 = vrot.slane %v4322, %v4326
    %v4330 = vsel %vm239, %v4316, 0
    %v4333 = vsel %vm239, %v4317, 0
    %4335 = vmatprep.subr.mxu0 0.0
    %4336 = vmatpush1.msra.mxu0 %v4318
    %4337 = vmatprep.subr.mxu0 0.0
    %4338 = vmatpush1.msra.mxu0 %v4319
    %4339 = vmatprep.subr.mxu0 0.0
    %4340 = vmatpush1.msra.mxu0 %v4320
    %4341 = vmatprep.subr.mxu0 0.0
    %4342 = vmatpush1.msra.mxu0 %v4321
    %4343 = vmatprep.subr.mxu0 0.0
    %4344 = vmatpush1.msra.mxu0 0.0
    %4345 = vmatprep.subr.mxu0 0.0
    %4346 = vmatpush1.msra.mxu0 0.0
    %4347 = vmatprep.subr.mxu0 0.0
    %4348 = vmatpush1.msra.mxu0 0.0
    %4349 = vmatprep.subr.mxu0 0.0
    %4350 = vmatpush1.msra.mxu0 0.0
    %4351 = vmatprep.subr.mxu0 0.0
    %4352 = vmatpush1.msra.mxu0 0.0
    %4353 = vmatprep.subr.mxu0 0.0
    %4354 = vmatpush1.msra.mxu0 0.0
    %4355 = vmatprep.subr.mxu0 0.0
    %4356 = vmatpush1.msra.mxu0 0.0
    %4357 = vmatprep.subr.mxu0 0.0
    %4358 = vmatpush1.msra.mxu0 0.0
    %4359 = vmatprep.subr.mxu0 0.0
    %4360 = vmatpush1.msra.mxu0 0.0
    %4361 = vmatprep.subr.mxu0 0.0
    %4362 = vmatpush1.msra.mxu0 0.0
    %4363 = vmatprep.subr.mxu0 0.0
    %4364 = vmatpush1.msra.mxu0 0.0
    %4365 = vmatprep.subr.mxu0 0.0
    %4366 = vmatpush1.msra.mxu0 0.0
    %4367 = vmatprep.subr.mxu0 0.0
    %4368 = vmatpush1.msra.mxu0 0.0
    %4369 = vmatprep.subr.mxu0 0.0
    %4370 = vmatpush1.msra.mxu0 0.0
    %4371 = vmatprep.subr.mxu0 0.0
    %4372 = vmatpush1.msra.mxu0 0.0
    %4373 = vmatprep.subr.mxu0 0.0
    %4374 = vmatpush1.msra.mxu0 0.0
    %4375 = vmatprep.subr.mxu0 0.0
    %4376 = vmatpush1.msra.mxu0 0.0
    %4377 = vmatprep.subr.mxu0 0.0
    %4378 = vmatpush1.msra.mxu0 0.0
    %4379 = vmatprep.subr.mxu0 0.0
    %4380 = vmatpush1.msra.mxu0 0.0
    %4381 = vmatprep.subr.mxu0 0.0
    %4382 = vmatpush1.msra.mxu0 0.0
    %4383 = vmatprep.subr.mxu0 0.0
    %4384 = vmatpush1.msra.mxu0 0.0
    %4385 = vmatprep.subr.mxu0 0.0
    %4386 = vmatpush1.msra.mxu0 0.0
    %4387 = vmatprep.subr.mxu0 0.0
    %4388 = vmatpush1.msra.mxu0 0.0
    %4389 = vmatprep.subr.mxu0 0.0
    %4390 = vmatpush1.msra.mxu0 0.0
    %4391 = vmatprep.subr.mxu0 0.0
    %4392 = vmatpush1.msra.mxu0 0.0
    %4393 = vmatprep.subr.mxu0 0.0
    %4394 = vmatpush1.msra.mxu0 0.0
    %4395 = vmatprep.subr.mxu0 0.0
    %4396 = vmatpush1.msra.mxu0 0.0
    %4397 = vmatprep.subr.mxu0 0.0
    %4398 = vmatpush1.msra.mxu0 0.0
    %4399 = vmatprep.mubr.f32.mxu0 0.0
    %4400 = vmatmul.mubr.f32.gmra.mrb[0].mxu0 %v4330
    %v4401 = vpop.f32.mrb[0].mxu0
    %v4402 = vadd.f32 %v4327, %v4401
    %v4403 = vpop.f32.mrb[0].mxu0
    %4404 = vmatprep.mubr.f32.mxu0 0.0
    %4405 = vmatmul.mubr.f32.gmra.mrb[0].mxu0 %v4333
    %v4406 = vpop.f32.mrb[0].mxu0
    %v4407 = vadd.f32 %v4327, %v4406
    %v4408 = vpop.f32.mrb[0].mxu0
    %4409 = vdwg.mxu0
    %4410 = vst.msk [vmem:[#allocation13] sm:$0xff] %vm146, %v4402
    %4411 = vst.msk [vmem:[#allocation13 + $0x8] sm:$0xff] %vm146, %v4407
    // Predicated region
    $region94: #{gpt_forward.1} parent=1 // pred_check
      _
    $region95: #{gpt_forward.1} parent=1 // pred_check_branch
      %4413 = sbr.rel (0) target = $region97
    $region96: #{gpt_forward.1} parent=1 // pred_region
      %s4415 = ssub.s32 256, 256
      %4416 = vsyncadd [#allocation4], %s4415
      %s4417 = sshll.u32 [#allocation13], 4
      %s4418 = int_to_ptr.vmem [resolvable:$true] %s4417
      %4423 = dma.vmem_to_hbm [thread:$0]  %s4418, 256, %s17, [#allocation4], 128, 128, 8
    $region97: #{gpt_forward.1} parent=1 // pred_fallthru
      _
    // Predicated region
    $region98: #{gpt_forward.1} parent=1 // pred_check
      _
    $region99: #{gpt_forward.1} parent=1 // pred_check_branch
      %4425 = sbr.rel (0) target = $region101
    $region100: #{gpt_forward.1} parent=1 // pred_region
      %4426 = dma.done [#allocation4], 256
    $region101: #{gpt_forward.1} parent=1 // pred_fallthru
      _
    %4427 = vsyncpa [#allocation3], 1
    %4428 = vsyncpa [#allocation6], 1
    %4429 = vsyncpa [#allocation9], 1
    %4430 = vsyncpa [#allocation12], 1
    %4431 = vsyncpa [#allocation4], 1

</llo_original>
